<compile_context>
chip_gen: v7x
topology: tpu7x:2x2x1
jax: 0.10.0
libtpu: 0.0.40
codegen_flags: <defaults>
</compile_context>

<pallas_src>
import jax
import jax.numpy as jnp
from jax.experimental import pallas as pl
from jax.experimental.pallas import tpu as pltpu


# --------------------------------------------------------------------------
# Host-side weight preparation (block-Toeplitz expansion, zero block removed)
# --------------------------------------------------------------------------
def _expand_cell(cell, T, p):
    """Per GGCM cell, build (w1x_big, w1g_big, w2_big, bx_big, bg_big).

    Input lanes (t'-major): x(t', din).  Output lanes: h(t, dout).
    w*_big: [T*Din, T*Dout] bf16, b*_big: [1, T*Dout] f32.
    """
    w1x, w1g, w2 = cell["w1x"], cell["w1g"], cell["w2"]
    b1x, b1g, b2 = cell["b1x"], cell["b1g"], cell["b2"]
    PD, Dout = w2.shape
    Din = PD // p

    def toeplitz(w):
        wr = w.reshape(p, Din, Dout)
        big = jnp.zeros((T, Din, T, Dout), jnp.float32)
        for t in range(T):            # output timestep
            for j in range(p):        # patch offset (input timestep t + j)
                if t + j < T:         # beyond T-1 the input is zero padding
                    big = big.at[t + j, :, t, :].set(wr[j])
        return big.reshape(T * Din, T * Dout)

    w1x_big = toeplitz(w1x).astype(jnp.bfloat16)
    w1g_big = toeplitz(w1g).astype(jnp.bfloat16)
    w2_big = toeplitz(w2).astype(jnp.bfloat16)
    bx_big = jnp.tile(b1x + b2, (1, T)).astype(jnp.float32)
    bg_big = jnp.tile(b1g, (1, T)).astype(jnp.float32)
    return (w1x_big, w1g_big, w2_big, bx_big, bg_big), Dout


def _expand_ggcm(cells, T, p):
    packed, douts = [], []
    for cell in cells:
        tup, dout = _expand_cell(cell, T, p)
        packed.append(tup)
        douts.append(dout)
    return packed, douts


# --------------------------------------------------------------------------
# The fused Pallas kernel (whole STG2Seq forward, batch folded into sublanes)
# --------------------------------------------------------------------------
def _make_stg2seq_kernel(n_long, n_short, SW, n_pred, D, P):
    def kernel(*refs):
        x_ref, g_ref = refs[0], refs[1]
        idx = 2
        long_cells = [refs[idx + 5 * c: idx + 5 * (c + 1)] for c in range(n_long)]
        idx += 5 * n_long
        short_cells = [refs[idx + 5 * c: idx + 5 * (c + 1)] for c in range(n_short)]
        idx += 5 * n_short
        ws_ref, em_ref, rm_ref, ab_ref = refs[idx: idx + 4]
        o_ref = refs[idx + 4]

        g = g_ref[...]                                  # [BN, BN] bf16 (block-diag)

        def ggcm_layer(a, cell):
            # a: [BN, T*din] bf16.  One gated graph-conv layer, three dots,
            # no structural-zero FLOPs, no concatenate.
            w1x_ref, w1g_ref, w2_ref, bx_ref, bg_ref = cell
            xg = jnp.dot(g, a, preferred_element_type=jnp.float32)
            xg = xg.astype(jnp.bfloat16)
            hx = (jnp.dot(xg, w1x_ref[...], preferred_element_type=jnp.float32)
                  + jnp.dot(a, w2_ref[...], preferred_element_type=jnp.float32)
                  + bx_ref[...])
            gate = (jnp.dot(xg, w1g_ref[...], preferred_element_type=jnp.float32)
                    + bg_ref[...])
            return (hx * jax.nn.sigmoid(gate)).astype(jnp.bfloat16)

        hist = x_ref[...]                               # [BN, Th*D] bf16

        # ---- long-term GGCM stack (computed once) ----------------------
        a = hist
        for cell in long_cells:
            a = ggcm_layer(a, cell)
        long_out = a                                    # [BN, Th*D] bf16

        ws = ws_ref[...]                                # [Ta*D, Ta] bf16
        em = em_ref[...]                                # [Ta, Ta*D] bf16
        rm = rm_ref[...]                                # [Ta*D, D]  bf16
        ab = ab_ref[0, 0]                               # f32 scalar from SMEM

        # zero-fill the lane padding of the output slab once
        if P > n_pred * D:
            o_ref[:, n_pred * D:] = jnp.zeros(
                (o_ref.shape[0], P - n_pred * D), jnp.float32)

        # ---- autoregressive decode with a fixed sliding window ---------
        win = hist[:, hist.shape[1] - SW * D:]          # [BN, SW*D] bf16
        for k in range(n_pred):
            s = win
            for cell in short_cells:
                s = ggcm_layer(s, cell)
            x_att = jnp.concatenate([long_out, s], axis=-1)     # [BN, Ta*D] bf16

            # temporal attention with time on the lane axis
            sc = jnp.tanh(jnp.dot(x_att, ws,
                                  preferred_element_type=jnp.float32) + ab)
            m = jnp.max(sc, axis=-1, keepdims=True)
            e = jnp.exp(sc - m)
            alfa = e * pl.reciprocal(jnp.sum(e, axis=-1, keepdims=True),
                                     approx=True)               # [BN, Ta] f32
            alfa_b = jnp.dot(alfa.astype(jnp.bfloat16), em,
                             preferred_element_type=jnp.float32)
            alfa_x = (alfa_b * x_att.astype(jnp.float32)).astype(jnp.bfloat16)
            out = jnp.dot(alfa_x, rm,
                          preferred_element_type=jnp.float32)   # [BN, D] f32

            o_ref[:, k * D:(k + 1) * D] = out           # direct lane-slice store
            win = jnp.concatenate([win[:, D:], out.astype(jnp.bfloat16)],
                                  axis=-1)              # fixed-size feedback window

    return kernel


# --------------------------------------------------------------------------
# Wrapper: layout plumbing + single no-grid pallas_call
# --------------------------------------------------------------------------
def stg2seq_forward(params, x, n_pred, sliding_window, patch_size):
    """x: [B, n_hist, N, D] -> [B, n_pred, N, D]  (targets=None inference path)."""
    B, Th, N, Din = x.shape
    SW = sliding_window
    assert SW <= Th, "sliding window must fit inside the history"

    graph = params["nodevec1"] @ params["nodevec2"] + params["graph"]   # [N, N]
    # batch folded into sublanes -> block-diagonal graph
    g_big = jnp.kron(jnp.eye(B, dtype=jnp.float32), graph).astype(jnp.bfloat16)

    # [B, Th, N, D] -> [B, N, Th, D] -> [B*N, Th*D]
    x_lane = jnp.transpose(x, (0, 2, 1, 3)).reshape(B * N, Th * Din)
    x_lane = x_lane.astype(jnp.bfloat16)

    long_cells, long_douts = _expand_ggcm(params["long_term"], Th, patch_size)
    short_cells, short_douts = _expand_ggcm(params["short_term"], SW, patch_size)
    D = long_douts[-1]
    assert D == Din, "decoder feeds outputs back in; needs output_dim == input_dim"
    assert short_douts[-1] == D
    Ta = Th + SW

    # attention helper matrices (constants, built on host)
    att_w = params["att_w"].astype(jnp.float32)                               # [1, D]
    ws = jnp.kron(jnp.eye(Ta, dtype=jnp.float32), att_w.reshape(D, 1))        # [Ta*D, Ta]
    em = jnp.kron(jnp.eye(Ta, dtype=jnp.float32), jnp.ones((1, D), jnp.float32))
    rm = jnp.kron(jnp.ones((Ta, 1), jnp.float32), jnp.eye(D, dtype=jnp.float32))
    ws, em, rm = (ws.astype(jnp.bfloat16), em.astype(jnp.bfloat16),
                  rm.astype(jnp.bfloat16))
    ab = params["att_b"].reshape(1, 1).astype(jnp.float32)                    # SMEM scalar

    flat_weights = []
    for cell in long_cells + short_cells:
        flat_weights.extend(cell)
    flat_weights += [ws, em, rm, ab]

    P = ((n_pred * D + 127) // 128) * 128          # lane-dense output slab width
    kernel = _make_stg2seq_kernel(len(long_cells), len(short_cells),
                                  SW, n_pred, D, P)

    n_in = 2 + len(flat_weights)
    in_specs = ([pl.BlockSpec(memory_space=pltpu.MemorySpace.VMEM)] * (n_in - 1)
                + [pl.BlockSpec(memory_space=pltpu.MemorySpace.SMEM)])   # ab scalar

    out = pl.pallas_call(
        kernel,
        out_shape=jax.ShapeDtypeStruct((B * N, P), jnp.float32),
        in_specs=in_specs,
        out_specs=pl.BlockSpec(memory_space=pltpu.MemorySpace.VMEM),
        compiler_params=pltpu.CompilerParams(vmem_limit_bytes=32 * 1024 * 1024),
    )(x_lane, g_big, *flat_weights)

    # [B*N, P] -> [B, n_pred, N, D]
    out = out[:, :n_pred * D].reshape(B, N, n_pred, D)
    return jnp.transpose(out, (0, 2, 1, 3))


# --------------------------------------------------------------------------
# Pure-JAX reference (same math as the PyTorch module) for a sanity check
# --------------------------------------------------------------------------
def _ref_graphconv(x_patch, graph, cp):
    p, B, N, din = x_patch.shape
    xf = jnp.transpose(x_patch, (2, 1, 0, 3)).reshape(N, -1)
    xg = graph @ xf
    xg = jnp.transpose(xg.reshape(N, B, p * din), (1, 0, 2))
    hx = xg @ cp["w1x"] + cp["b1x"]
    hg = xg @ cp["w1g"] + cp["b1g"]
    inp = jnp.transpose(x_patch, (1, 2, 0, 3)).reshape(B, N, -1)
    h2 = inp @ cp["w2"] + cp["b2"]
    return (hx + h2) * jax.nn.sigmoid(hg)


def _ref_cell(cp, x, graph, p):
    T, B, N, din = x.shape
    xp = jnp.concatenate([x, jnp.zeros((p - 1, B, N, din), x.dtype)], 0)
    return jnp.stack([_ref_graphconv(xp[i:i + p], graph, cp) for i in range(T)], 0)


def _ref_attention(x, wa, ba):
    s = jnp.tanh(jnp.einsum("tbnd,d->tbn", x, wa[0])[..., None] + ba[0, 0])
    alfa = jax.nn.softmax(s, axis=0)
    return jnp.sum(alfa * x, axis=0)


def ref_forward(params, x, n_pred, sw, p):
    graph = params["nodevec1"] @ params["nodevec2"] + params["graph"]
    x = jnp.transpose(x, (1, 0, 2, 3))
    lo = x
    for cp in params["long_term"]:
        lo = _ref_cell(cp, lo, graph, p)
    ys = []
    for _ in range(n_pred):
        so = x[-sw:]
        for cp in params["short_term"]:
            so = _ref_cell(cp, so, graph, p)
        out = _ref_attention(jnp.concatenate([lo, so], 0),
                             params["att_w"], params["att_b"])
        ys.append(out)
        x = jnp.concatenate([x, out[None]], 0)
    return jnp.stack(ys, 1)


# --------------------------------------------------------------------------
# Deterministic parameter construction
# --------------------------------------------------------------------------
def init_cell(key, din, dout, p, scale=0.1):
    k1, k2, k3, k4 = jax.random.split(key, 4)
    pd = din * p
    w1 = jax.random.normal(k1, (pd, 2 * dout), jnp.float32) * scale
    b1 = jax.random.normal(k2, (1, 2 * dout), jnp.float32) * scale
    w2 = jax.random.normal(k3, (pd, dout), jnp.float32) * scale
    b2 = jax.random.normal(k4, (1, dout), jnp.float32) * scale
    return dict(w1x=w1[:, :dout], b1x=b1[:, :dout],
                w1g=w1[:, dout:], b1g=b1[:, dout:], w2=w2, b2=b2)


def init_ggcm(key, length, din, dout, hidden, p):
    dims = [din] + [hidden] * (length - 1) + [dout]
    keys = jax.random.split(key, length)
    return [init_cell(keys[i], dims[i], dims[i + 1], p) for i in range(length)]


# --------------------------------------------------------------------------
if __name__ == "__main__":
    key = jax.random.PRNGKey(0)
    B, N = 2, 16
    input_dim = output_dim = 2        # must match (decoder feeds outputs back in)
    hidden_dim, adaptive_dim = 8, 4
    n_hist, n_pred = 8, 3
    patch_size, sliding_window = 3, 4
    longterm_len = shortterm_len = 2

    ks = jax.random.split(key, 9)
    params = dict(
        nodevec1=jax.random.normal(ks[0], (N, adaptive_dim), jnp.float32) * 0.1,
        nodevec2=jax.random.normal(ks[1], (adaptive_dim, N), jnp.float32) * 0.1,
        graph=(jax.random.uniform(ks[2], (N, N)) < 0.3).astype(jnp.float32),
        long_term=init_ggcm(ks[3], longterm_len, input_dim, output_dim,
                            hidden_dim, patch_size),
        short_term=init_ggcm(ks[4], shortterm_len, input_dim, output_dim,
                             hidden_dim, patch_size),
        att_w=jax.random.normal(ks[5], (1, input_dim), jnp.float32) * 0.1,
        att_b=jnp.zeros((1, 1), jnp.float32),
    )

    x = jax.random.normal(ks[6], (B, n_hist, N, input_dim), jnp.float32)

    # TODO(synk): scheduled sampling (random teacher forcing with `targets`) is
    # a host-side random branch; only the targets=None inference path is run.
    fwd = jax.jit(lambda p, inp: stg2seq_forward(p, inp, n_pred,
                                                 sliding_window, patch_size))
    y = jax.block_until_ready(fwd(params, x))

    y_ref = ref_forward(params, x, n_pred, sliding_window, patch_size)
    assert y.shape == (B, n_pred, N, output_dim), y.shape
    # Kernel runs bf16 weights/activations (+ approx reciprocal) vs. the f32
    # reference -> ~1e-2-level differences; 5e-2 still catches structural bugs.
    assert jnp.allclose(y, y_ref, rtol=5e-2, atol=5e-2), "mismatch vs JAX reference"

    print("KERNEL_OK")
</pallas_src>

<mosaic_0001>
module attributes {stable_mosaic.version = 11 : i64} {
  func.func @kernel(%arg0: memref<32x16xbf16, #tpu.memory_space<vmem>>, %arg1: memref<32x32xbf16, #tpu.memory_space<vmem>>, %arg2: memref<16x64xbf16, #tpu.memory_space<vmem>>, %arg3: memref<16x64xbf16, #tpu.memory_space<vmem>>, %arg4: memref<16x64xbf16, #tpu.memory_space<vmem>>, %arg5: memref<1x64xf32, #tpu.memory_space<vmem>>, %arg6: memref<1x64xf32, #tpu.memory_space<vmem>>, %arg7: memref<64x16xbf16, #tpu.memory_space<vmem>>, %arg8: memref<64x16xbf16, #tpu.memory_space<vmem>>, %arg9: memref<64x16xbf16, #tpu.memory_space<vmem>>, %arg10: memref<1x16xf32, #tpu.memory_space<vmem>>, %arg11: memref<1x16xf32, #tpu.memory_space<vmem>>, %arg12: memref<8x32xbf16, #tpu.memory_space<vmem>>, %arg13: memref<8x32xbf16, #tpu.memory_space<vmem>>, %arg14: memref<8x32xbf16, #tpu.memory_space<vmem>>, %arg15: memref<1x32xf32, #tpu.memory_space<vmem>>, %arg16: memref<1x32xf32, #tpu.memory_space<vmem>>, %arg17: memref<32x8xbf16, #tpu.memory_space<vmem>>, %arg18: memref<32x8xbf16, #tpu.memory_space<vmem>>, %arg19: memref<32x8xbf16, #tpu.memory_space<vmem>>, %arg20: memref<1x8xf32, #tpu.memory_space<vmem>>, %arg21: memref<1x8xf32, #tpu.memory_space<vmem>>, %arg22: memref<24x12xbf16, #tpu.memory_space<vmem>>, %arg23: memref<12x24xbf16, #tpu.memory_space<vmem>>, %arg24: memref<24x2xbf16, #tpu.memory_space<vmem>>, %arg25: memref<1x1xf32, #tpu.memory_space<smem>>, %arg26: memref<32x128xf32, #tpu.memory_space<vmem>>) attributes {dimension_semantics = [], scalar_prefetch = 0 : i64, scratch_operands = 0 : i64, tpu.core_type = #tpu.core_type<tc>} {
    %c0 = arith.constant 0 : index
    %c0_0 = arith.constant 0 : index
    %0 = vector.load %arg1[%c0, %c0_0] : memref<32x32xbf16, #tpu.memory_space<vmem>>, vector<32x32xbf16>
    %c0_1 = arith.constant 0 : index
    %c0_2 = arith.constant 0 : index
    %1 = vector.load %arg0[%c0_1, %c0_2] : memref<32x16xbf16, #tpu.memory_space<vmem>>, vector<32x16xbf16>
    %cst = arith.constant dense<0.000000e+00> : vector<32x16xf32>
    %2 = tpu.matmul %0, %1, %cst {dimension_numbers = #tpu.dot_dimension_numbers<[1], [0], [0], [1], [0, 0, 1, 1], [], []>} : vector<32x32xbf16>, vector<32x16xbf16>, vector<32x16xf32> -> vector<32x16xf32>
    %3 = arith.truncf %2 : vector<32x16xf32> to vector<32x16xbf16>
    %c0_3 = arith.constant 0 : index
    %c0_4 = arith.constant 0 : index
    %4 = vector.load %arg2[%c0_3, %c0_4] : memref<16x64xbf16, #tpu.memory_space<vmem>>, vector<16x64xbf16>
    %cst_5 = arith.constant dense<0.000000e+00> : vector<32x64xf32>
    %5 = tpu.matmul %3, %4, %cst_5 {dimension_numbers = #tpu.dot_dimension_numbers<[1], [0], [0], [1], [0, 0, 1, 1], [], []>} : vector<32x16xbf16>, vector<16x64xbf16>, vector<32x64xf32> -> vector<32x64xf32>
    %c0_6 = arith.constant 0 : index
    %c0_7 = arith.constant 0 : index
    %6 = vector.load %arg4[%c0_6, %c0_7] : memref<16x64xbf16, #tpu.memory_space<vmem>>, vector<16x64xbf16>
    %cst_8 = arith.constant dense<0.000000e+00> : vector<32x64xf32>
    %7 = tpu.matmul %1, %6, %cst_8 {dimension_numbers = #tpu.dot_dimension_numbers<[1], [0], [0], [1], [0, 0, 1, 1], [], []>} : vector<32x16xbf16>, vector<16x64xbf16>, vector<32x64xf32> -> vector<32x64xf32>
    %8 = arith.addf %5, %7 : vector<32x64xf32>
    %c0_9 = arith.constant 0 : index
    %c0_10 = arith.constant 0 : index
    %9 = vector.load %arg5[%c0_9, %c0_10] : memref<1x64xf32, #tpu.memory_space<vmem>>, vector<1x64xf32>
    %10 = vector.broadcast %9 : vector<1x64xf32> to vector<32x64xf32>
    %11 = arith.addf %8, %10 : vector<32x64xf32>
    %c0_11 = arith.constant 0 : index
    %c0_12 = arith.constant 0 : index
    %12 = vector.load %arg3[%c0_11, %c0_12] : memref<16x64xbf16, #tpu.memory_space<vmem>>, vector<16x64xbf16>
    %cst_13 = arith.constant dense<0.000000e+00> : vector<32x64xf32>
    %13 = tpu.matmul %3, %12, %cst_13 {dimension_numbers = #tpu.dot_dimension_numbers<[1], [0], [0], [1], [0, 0, 1, 1], [], []>} : vector<32x16xbf16>, vector<16x64xbf16>, vector<32x64xf32> -> vector<32x64xf32>
    %c0_14 = arith.constant 0 : index
    %c0_15 = arith.constant 0 : index
    %14 = vector.load %arg6[%c0_14, %c0_15] : memref<1x64xf32, #tpu.memory_space<vmem>>, vector<1x64xf32>
    %15 = vector.broadcast %14 : vector<1x64xf32> to vector<32x64xf32>
    %16 = arith.addf %13, %15 : vector<32x64xf32>
    %17 = arith.negf %16 : vector<32x64xf32>
    %18 = math.exp %17 : vector<32x64xf32>
    %cst_16 = arith.constant 1.000000e+00 : f32
    %19 = vector.broadcast %cst_16 : f32 to vector<32x64xf32>
    %20 = arith.addf %19, %18 : vector<32x64xf32>
    %21 = arith.divf %19, %20 : vector<32x64xf32>
    %22 = arith.mulf %11, %21 : vector<32x64xf32>
    %23 = arith.truncf %22 : vector<32x64xf32> to vector<32x64xbf16>
    %cst_17 = arith.constant dense<0.000000e+00> : vector<32x64xf32>
    %24 = tpu.matmul %0, %23, %cst_17 {dimension_numbers = #tpu.dot_dimension_numbers<[1], [0], [0], [1], [0, 0, 1, 1], [], []>} : vector<32x32xbf16>, vector<32x64xbf16>, vector<32x64xf32> -> vector<32x64xf32>
    %25 = arith.truncf %24 : vector<32x64xf32> to vector<32x64xbf16>
    %c0_18 = arith.constant 0 : index
    %c0_19 = arith.constant 0 : index
    %26 = vector.load %arg7[%c0_18, %c0_19] : memref<64x16xbf16, #tpu.memory_space<vmem>>, vector<64x16xbf16>
    %cst_20 = arith.constant dense<0.000000e+00> : vector<32x16xf32>
    %27 = tpu.matmul %25, %26, %cst_20 {dimension_numbers = #tpu.dot_dimension_numbers<[1], [0], [0], [1], [0, 0, 1, 1], [], []>} : vector<32x64xbf16>, vector<64x16xbf16>, vector<32x16xf32> -> vector<32x16xf32>
    %c0_21 = arith.constant 0 : index
    %c0_22 = arith.constant 0 : index
    %28 = vector.load %arg9[%c0_21, %c0_22] : memref<64x16xbf16, #tpu.memory_space<vmem>>, vector<64x16xbf16>
    %cst_23 = arith.constant dense<0.000000e+00> : vector<32x16xf32>
    %29 = tpu.matmul %23, %28, %cst_23 {dimension_numbers = #tpu.dot_dimension_numbers<[1], [0], [0], [1], [0, 0, 1, 1], [], []>} : vector<32x64xbf16>, vector<64x16xbf16>, vector<32x16xf32> -> vector<32x16xf32>
    %30 = arith.addf %27, %29 : vector<32x16xf32>
    %c0_24 = arith.constant 0 : index
    %c0_25 = arith.constant 0 : index
    %31 = vector.load %arg10[%c0_24, %c0_25] : memref<1x16xf32, #tpu.memory_space<vmem>>, vector<1x16xf32>
    %32 = vector.broadcast %31 : vector<1x16xf32> to vector<32x16xf32>
    %33 = arith.addf %30, %32 : vector<32x16xf32>
    %c0_26 = arith.constant 0 : index
    %c0_27 = arith.constant 0 : index
    %34 = vector.load %arg8[%c0_26, %c0_27] : memref<64x16xbf16, #tpu.memory_space<vmem>>, vector<64x16xbf16>
    %cst_28 = arith.constant dense<0.000000e+00> : vector<32x16xf32>
    %35 = tpu.matmul %25, %34, %cst_28 {dimension_numbers = #tpu.dot_dimension_numbers<[1], [0], [0], [1], [0, 0, 1, 1], [], []>} : vector<32x64xbf16>, vector<64x16xbf16>, vector<32x16xf32> -> vector<32x16xf32>
    %c0_29 = arith.constant 0 : index
    %c0_30 = arith.constant 0 : index
    %36 = vector.load %arg11[%c0_29, %c0_30] : memref<1x16xf32, #tpu.memory_space<vmem>>, vector<1x16xf32>
    %37 = vector.broadcast %36 : vector<1x16xf32> to vector<32x16xf32>
    %38 = arith.addf %35, %37 : vector<32x16xf32>
    %39 = arith.negf %38 : vector<32x16xf32>
    %40 = math.exp %39 : vector<32x16xf32>
    %cst_31 = arith.constant 1.000000e+00 : f32
    %41 = vector.broadcast %cst_31 : f32 to vector<32x16xf32>
    %42 = arith.addf %41, %40 : vector<32x16xf32>
    %43 = arith.divf %41, %42 : vector<32x16xf32>
    %44 = arith.mulf %33, %43 : vector<32x16xf32>
    %45 = arith.truncf %44 : vector<32x16xf32> to vector<32x16xbf16>
    %c0_32 = arith.constant 0 : index
    %c0_33 = arith.constant 0 : index
    %46 = vector.load %arg22[%c0_32, %c0_33] : memref<24x12xbf16, #tpu.memory_space<vmem>>, vector<24x12xbf16>
    %c0_34 = arith.constant 0 : index
    %c0_35 = arith.constant 0 : index
    %47 = vector.load %arg23[%c0_34, %c0_35] : memref<12x24xbf16, #tpu.memory_space<vmem>>, vector<12x24xbf16>
    %c0_36 = arith.constant 0 : index
    %c0_37 = arith.constant 0 : index
    %48 = vector.load %arg24[%c0_36, %c0_37] : memref<24x2xbf16, #tpu.memory_space<vmem>>, vector<24x2xbf16>
    %c0_38 = arith.constant 0 : index
    %c0_39 = arith.constant 0 : index
    %49 = memref.load %arg25[%c0_38, %c0_39] : memref<1x1xf32, #tpu.memory_space<smem>>
    %cst_40 = arith.constant 0.000000e+00 : f32
    %50 = vector.broadcast %cst_40 : f32 to vector<32x122xf32>
    %c0_41 = arith.constant 0 : index
    %c6 = arith.constant 6 : index
    %51 = vector.load %arg26[%c0_41, %c6] : memref<32x128xf32, #tpu.memory_space<vmem>>, vector<32x122xf32>
    tpu.vector_store %arg26[%c0_41, %c6], %50 {strides = array<i32>} : memref<32x128xf32, #tpu.memory_space<vmem>>, vector<32x122xf32>,
    %52 = vector.extract_strided_slice %1 {offsets = [0, 8], sizes = [32, 8], strides = [1, 1]} : vector<32x16xbf16> to vector<32x8xbf16>
    %cst_42 = arith.constant dense<0.000000e+00> : vector<32x8xf32>
    %53 = tpu.matmul %0, %52, %cst_42 {dimension_numbers = #tpu.dot_dimension_numbers<[1], [0], [0], [1], [0, 0, 1, 1], [], []>} : vector<32x32xbf16>, vector<32x8xbf16>, vector<32x8xf32> -> vector<32x8xf32>
    %54 = arith.truncf %53 : vector<32x8xf32> to vector<32x8xbf16>
    %c0_43 = arith.constant 0 : index
    %c0_44 = arith.constant 0 : index
    %55 = vector.load %arg12[%c0_43, %c0_44] : memref<8x32xbf16, #tpu.memory_space<vmem>>, vector<8x32xbf16>
    %cst_45 = arith.constant dense<0.000000e+00> : vector<32x32xf32>
    %56 = tpu.matmul %54, %55, %cst_45 {dimension_numbers = #tpu.dot_dimension_numbers<[1], [0], [0], [1], [0, 0, 1, 1], [], []>} : vector<32x8xbf16>, vector<8x32xbf16>, vector<32x32xf32> -> vector<32x32xf32>
    %c0_46 = arith.constant 0 : index
    %c0_47 = arith.constant 0 : index
    %57 = vector.load %arg14[%c0_46, %c0_47] : memref<8x32xbf16, #tpu.memory_space<vmem>>, vector<8x32xbf16>
    %cst_48 = arith.constant dense<0.000000e+00> : vector<32x32xf32>
    %58 = tpu.matmul %52, %57, %cst_48 {dimension_numbers = #tpu.dot_dimension_numbers<[1], [0], [0], [1], [0, 0, 1, 1], [], []>} : vector<32x8xbf16>, vector<8x32xbf16>, vector<32x32xf32> -> vector<32x32xf32>
    %59 = arith.addf %56, %58 : vector<32x32xf32>
    %c0_49 = arith.constant 0 : index
    %c0_50 = arith.constant 0 : index
    %60 = vector.load %arg15[%c0_49, %c0_50] : memref<1x32xf32, #tpu.memory_space<vmem>>, vector<1x32xf32>
    %61 = vector.broadcast %60 : vector<1x32xf32> to vector<32x32xf32>
    %62 = arith.addf %59, %61 : vector<32x32xf32>
    %c0_51 = arith.constant 0 : index
    %c0_52 = arith.constant 0 : index
    %63 = vector.load %arg13[%c0_51, %c0_52] : memref<8x32xbf16, #tpu.memory_space<vmem>>, vector<8x32xbf16>
    %cst_53 = arith.constant dense<0.000000e+00> : vector<32x32xf32>
    %64 = tpu.matmul %54, %63, %cst_53 {dimension_numbers = #tpu.dot_dimension_numbers<[1], [0], [0], [1], [0, 0, 1, 1], [], []>} : vector<32x8xbf16>, vector<8x32xbf16>, vector<32x32xf32> -> vector<32x32xf32>
    %c0_54 = arith.constant 0 : index
    %c0_55 = arith.constant 0 : index
    %65 = vector.load %arg16[%c0_54, %c0_55] : memref<1x32xf32, #tpu.memory_space<vmem>>, vector<1x32xf32>
    %66 = vector.broadcast %65 : vector<1x32xf32> to vector<32x32xf32>
    %67 = arith.addf %64, %66 : vector<32x32xf32>
    %68 = arith.negf %67 : vector<32x32xf32>
    %69 = math.exp %68 : vector<32x32xf32>
    %cst_56 = arith.constant 1.000000e+00 : f32
    %70 = vector.broadcast %cst_56 : f32 to vector<32x32xf32>
    %71 = arith.addf %70, %69 : vector<32x32xf32>
    %72 = arith.divf %70, %71 : vector<32x32xf32>
    %73 = arith.mulf %62, %72 : vector<32x32xf32>
    %74 = arith.truncf %73 : vector<32x32xf32> to vector<32x32xbf16>
    %cst_57 = arith.constant dense<0.000000e+00> : vector<32x32xf32>
    %75 = tpu.matmul %0, %74, %cst_57 {dimension_numbers = #tpu.dot_dimension_numbers<[1], [0], [0], [1], [0, 0, 1, 1], [], []>} : vector<32x32xbf16>, vector<32x32xbf16>, vector<32x32xf32> -> vector<32x32xf32>
    %76 = arith.truncf %75 : vector<32x32xf32> to vector<32x32xbf16>
    %c0_58 = arith.constant 0 : index
    %c0_59 = arith.constant 0 : index
    %77 = vector.load %arg17[%c0_58, %c0_59] : memref<32x8xbf16, #tpu.memory_space<vmem>>, vector<32x8xbf16>
    %cst_60 = arith.constant dense<0.000000e+00> : vector<32x8xf32>
    %78 = tpu.matmul %76, %77, %cst_60 {dimension_numbers = #tpu.dot_dimension_numbers<[1], [0], [0], [1], [0, 0, 1, 1], [], []>} : vector<32x32xbf16>, vector<32x8xbf16>, vector<32x8xf32> -> vector<32x8xf32>
    %c0_61 = arith.constant 0 : index
    %c0_62 = arith.constant 0 : index
    %79 = vector.load %arg19[%c0_61, %c0_62] : memref<32x8xbf16, #tpu.memory_space<vmem>>, vector<32x8xbf16>
    %cst_63 = arith.constant dense<0.000000e+00> : vector<32x8xf32>
    %80 = tpu.matmul %74, %79, %cst_63 {dimension_numbers = #tpu.dot_dimension_numbers<[1], [0], [0], [1], [0, 0, 1, 1], [], []>} : vector<32x32xbf16>, vector<32x8xbf16>, vector<32x8xf32> -> vector<32x8xf32>
    %81 = arith.addf %78, %80 : vector<32x8xf32>
    %c0_64 = arith.constant 0 : index
    %c0_65 = arith.constant 0 : index
    %82 = vector.load %arg20[%c0_64, %c0_65] : memref<1x8xf32, #tpu.memory_space<vmem>>, vector<1x8xf32>
    %83 = vector.broadcast %82 : vector<1x8xf32> to vector<32x8xf32>
    %84 = arith.addf %81, %83 : vector<32x8xf32>
    %c0_66 = arith.constant 0 : index
    %c0_67 = arith.constant 0 : index
    %85 = vector.load %arg18[%c0_66, %c0_67] : memref<32x8xbf16, #tpu.memory_space<vmem>>, vector<32x8xbf16>
    %cst_68 = arith.constant dense<0.000000e+00> : vector<32x8xf32>
    %86 = tpu.matmul %76, %85, %cst_68 {dimension_numbers = #tpu.dot_dimension_numbers<[1], [0], [0], [1], [0, 0, 1, 1], [], []>} : vector<32x32xbf16>, vector<32x8xbf16>, vector<32x8xf32> -> vector<32x8xf32>
    %c0_69 = arith.constant 0 : index
    %c0_70 = arith.constant 0 : index
    %87 = vector.load %arg21[%c0_69, %c0_70] : memref<1x8xf32, #tpu.memory_space<vmem>>, vector<1x8xf32>
    %88 = vector.broadcast %87 : vector<1x8xf32> to vector<32x8xf32>
    %89 = arith.addf %86, %88 : vector<32x8xf32>
    %90 = arith.negf %89 : vector<32x8xf32>
    %91 = math.exp %90 : vector<32x8xf32>
    %cst_71 = arith.constant 1.000000e+00 : f32
    %92 = vector.broadcast %cst_71 : f32 to vector<32x8xf32>
    %93 = arith.addf %92, %91 : vector<32x8xf32>
    %94 = arith.divf %92, %93 : vector<32x8xf32>
    %95 = arith.mulf %84, %94 : vector<32x8xf32>
    %96 = arith.truncf %95 : vector<32x8xf32> to vector<32x8xbf16>
    %97 = tpu.concatenate %45, %96 in 1 : vector<32x16xbf16>, vector<32x8xbf16> -> vector<32x24xbf16>
    %cst_72 = arith.constant dense<0.000000e+00> : vector<32x12xf32>
    %98 = tpu.matmul %97, %46, %cst_72 {dimension_numbers = #tpu.dot_dimension_numbers<[1], [0], [0], [1], [0, 0, 1, 1], [], []>} : vector<32x24xbf16>, vector<24x12xbf16>, vector<32x12xf32> -> vector<32x12xf32>
    %99 = vector.broadcast %49 : f32 to vector<32x12xf32>
    %100 = arith.addf %98, %99 : vector<32x12xf32>
    %101 = math.tanh %100 : vector<32x12xf32>
    %cst_73 = arith.constant dense<0xFF800000> : vector<32xf32>
    %102 = vector.multi_reduction <maximumf>, %101, %cst_73 [1] : vector<32x12xf32> to vector<32xf32>
    %103 = vector.shape_cast %102 : vector<32xf32> to vector<32x1xf32>
    %104 = vector.broadcast %103 : vector<32x1xf32> to vector<32x12xf32>
    %105 = arith.subf %101, %104 : vector<32x12xf32>
    %106 = math.exp %105 : vector<32x12xf32>
    %cst_74 = arith.constant dense<0.000000e+00> : vector<32xf32>
    %107 = vector.multi_reduction <add>, %106, %cst_74 [1] : vector<32x12xf32> to vector<32xf32>
    %108 = vector.shape_cast %107 : vector<32xf32> to vector<32x1xf32>
    %109 = tpu.reciprocal %108 {approx = true} : vector<32x1xf32> -> vector<32x1xf32>
    %110 = vector.broadcast %109 : vector<32x1xf32> to vector<32x12xf32>
    %111 = arith.mulf %106, %110 : vector<32x12xf32>
    %112 = arith.truncf %111 : vector<32x12xf32> to vector<32x12xbf16>
    %cst_75 = arith.constant dense<0.000000e+00> : vector<32x24xf32>
    %113 = tpu.matmul %112, %47, %cst_75 {dimension_numbers = #tpu.dot_dimension_numbers<[1], [0], [0], [1], [0, 0, 1, 1], [], []>} : vector<32x12xbf16>, vector<12x24xbf16>, vector<32x24xf32> -> vector<32x24xf32>
    %114 = arith.extf %97 : vector<32x24xbf16> to vector<32x24xf32>
    %115 = arith.mulf %113, %114 : vector<32x24xf32>
    %116 = arith.truncf %115 : vector<32x24xf32> to vector<32x24xbf16>
    %cst_76 = arith.constant dense<0.000000e+00> : vector<32x2xf32>
    %117 = tpu.matmul %116, %48, %cst_76 {dimension_numbers = #tpu.dot_dimension_numbers<[1], [0], [0], [1], [0, 0, 1, 1], [], []>} : vector<32x24xbf16>, vector<24x2xbf16>, vector<32x2xf32> -> vector<32x2xf32>
    %c0_77 = arith.constant 0 : index
    %c0_78 = arith.constant 0 : index
    %118 = vector.load %arg26[%c0_77, %c0_78] : memref<32x128xf32, #tpu.memory_space<vmem>>, vector<32x2xf32>
    tpu.vector_store %arg26[%c0_77, %c0_78], %117 {strides = array<i32>} : memref<32x128xf32, #tpu.memory_space<vmem>>, vector<32x2xf32>,
    %119 = vector.extract_strided_slice %52 {offsets = [0, 2], sizes = [32, 6], strides = [1, 1]} : vector<32x8xbf16> to vector<32x6xbf16>
    %120 = arith.truncf %117 : vector<32x2xf32> to vector<32x2xbf16>
    %121 = tpu.concatenate %119, %120 in 1 : vector<32x6xbf16>, vector<32x2xbf16> -> vector<32x8xbf16>
    %cst_79 = arith.constant dense<0.000000e+00> : vector<32x8xf32>
    %122 = tpu.matmul %0, %121, %cst_79 {dimension_numbers = #tpu.dot_dimension_numbers<[1], [0], [0], [1], [0, 0, 1, 1], [], []>} : vector<32x32xbf16>, vector<32x8xbf16>, vector<32x8xf32> -> vector<32x8xf32>
    %123 = arith.truncf %122 : vector<32x8xf32> to vector<32x8xbf16>
    %c0_80 = arith.constant 0 : index
    %c0_81 = arith.constant 0 : index
    %124 = vector.load %arg12[%c0_80, %c0_81] : memref<8x32xbf16, #tpu.memory_space<vmem>>, vector<8x32xbf16>
    %cst_82 = arith.constant dense<0.000000e+00> : vector<32x32xf32>
    %125 = tpu.matmul %123, %124, %cst_82 {dimension_numbers = #tpu.dot_dimension_numbers<[1], [0], [0], [1], [0, 0, 1, 1], [], []>} : vector<32x8xbf16>, vector<8x32xbf16>, vector<32x32xf32> -> vector<32x32xf32>
    %c0_83 = arith.constant 0 : index
    %c0_84 = arith.constant 0 : index
    %126 = vector.load %arg14[%c0_83, %c0_84] : memref<8x32xbf16, #tpu.memory_space<vmem>>, vector<8x32xbf16>
    %cst_85 = arith.constant dense<0.000000e+00> : vector<32x32xf32>
    %127 = tpu.matmul %121, %126, %cst_85 {dimension_numbers = #tpu.dot_dimension_numbers<[1], [0], [0], [1], [0, 0, 1, 1], [], []>} : vector<32x8xbf16>, vector<8x32xbf16>, vector<32x32xf32> -> vector<32x32xf32>
    %128 = arith.addf %125, %127 : vector<32x32xf32>
    %c0_86 = arith.constant 0 : index
    %c0_87 = arith.constant 0 : index
    %129 = vector.load %arg15[%c0_86, %c0_87] : memref<1x32xf32, #tpu.memory_space<vmem>>, vector<1x32xf32>
    %130 = vector.broadcast %129 : vector<1x32xf32> to vector<32x32xf32>
    %131 = arith.addf %128, %130 : vector<32x32xf32>
    %c0_88 = arith.constant 0 : index
    %c0_89 = arith.constant 0 : index
    %132 = vector.load %arg13[%c0_88, %c0_89] : memref<8x32xbf16, #tpu.memory_space<vmem>>, vector<8x32xbf16>
    %cst_90 = arith.constant dense<0.000000e+00> : vector<32x32xf32>
    %133 = tpu.matmul %123, %132, %cst_90 {dimension_numbers = #tpu.dot_dimension_numbers<[1], [0], [0], [1], [0, 0, 1, 1], [], []>} : vector<32x8xbf16>, vector<8x32xbf16>, vector<32x32xf32> -> vector<32x32xf32>
    %c0_91 = arith.constant 0 : index
    %c0_92 = arith.constant 0 : index
    %134 = vector.load %arg16[%c0_91, %c0_92] : memref<1x32xf32, #tpu.memory_space<vmem>>, vector<1x32xf32>
    %135 = vector.broadcast %134 : vector<1x32xf32> to vector<32x32xf32>
    %136 = arith.addf %133, %135 : vector<32x32xf32>
    %137 = arith.negf %136 : vector<32x32xf32>
    %138 = math.exp %137 : vector<32x32xf32>
    %cst_93 = arith.constant 1.000000e+00 : f32
    %139 = vector.broadcast %cst_93 : f32 to vector<32x32xf32>
    %140 = arith.addf %139, %138 : vector<32x32xf32>
    %141 = arith.divf %139, %140 : vector<32x32xf32>
    %142 = arith.mulf %131, %141 : vector<32x32xf32>
    %143 = arith.truncf %142 : vector<32x32xf32> to vector<32x32xbf16>
    %cst_94 = arith.constant dense<0.000000e+00> : vector<32x32xf32>
    %144 = tpu.matmul %0, %143, %cst_94 {dimension_numbers = #tpu.dot_dimension_numbers<[1], [0], [0], [1], [0, 0, 1, 1], [], []>} : vector<32x32xbf16>, vector<32x32xbf16>, vector<32x32xf32> -> vector<32x32xf32>
    %145 = arith.truncf %144 : vector<32x32xf32> to vector<32x32xbf16>
    %c0_95 = arith.constant 0 : index
    %c0_96 = arith.constant 0 : index
    %146 = vector.load %arg17[%c0_95, %c0_96] : memref<32x8xbf16, #tpu.memory_space<vmem>>, vector<32x8xbf16>
    %cst_97 = arith.constant dense<0.000000e+00> : vector<32x8xf32>
    %147 = tpu.matmul %145, %146, %cst_97 {dimension_numbers = #tpu.dot_dimension_numbers<[1], [0], [0], [1], [0, 0, 1, 1], [], []>} : vector<32x32xbf16>, vector<32x8xbf16>, vector<32x8xf32> -> vector<32x8xf32>
    %c0_98 = arith.constant 0 : index
    %c0_99 = arith.constant 0 : index
    %148 = vector.load %arg19[%c0_98, %c0_99] : memref<32x8xbf16, #tpu.memory_space<vmem>>, vector<32x8xbf16>
    %cst_100 = arith.constant dense<0.000000e+00> : vector<32x8xf32>
    %149 = tpu.matmul %143, %148, %cst_100 {dimension_numbers = #tpu.dot_dimension_numbers<[1], [0], [0], [1], [0, 0, 1, 1], [], []>} : vector<32x32xbf16>, vector<32x8xbf16>, vector<32x8xf32> -> vector<32x8xf32>
    %150 = arith.addf %147, %149 : vector<32x8xf32>
    %c0_101 = arith.constant 0 : index
    %c0_102 = arith.constant 0 : index
    %151 = vector.load %arg20[%c0_101, %c0_102] : memref<1x8xf32, #tpu.memory_space<vmem>>, vector<1x8xf32>
    %152 = vector.broadcast %151 : vector<1x8xf32> to vector<32x8xf32>
    %153 = arith.addf %150, %152 : vector<32x8xf32>
    %c0_103 = arith.constant 0 : index
    %c0_104 = arith.constant 0 : index
    %154 = vector.load %arg18[%c0_103, %c0_104] : memref<32x8xbf16, #tpu.memory_space<vmem>>, vector<32x8xbf16>
    %cst_105 = arith.constant dense<0.000000e+00> : vector<32x8xf32>
    %155 = tpu.matmul %145, %154, %cst_105 {dimension_numbers = #tpu.dot_dimension_numbers<[1], [0], [0], [1], [0, 0, 1, 1], [], []>} : vector<32x32xbf16>, vector<32x8xbf16>, vector<32x8xf32> -> vector<32x8xf32>
    %c0_106 = arith.constant 0 : index
    %c0_107 = arith.constant 0 : index
    %156 = vector.load %arg21[%c0_106, %c0_107] : memref<1x8xf32, #tpu.memory_space<vmem>>, vector<1x8xf32>
    %157 = vector.broadcast %156 : vector<1x8xf32> to vector<32x8xf32>
    %158 = arith.addf %155, %157 : vector<32x8xf32>
    %159 = arith.negf %158 : vector<32x8xf32>
    %160 = math.exp %159 : vector<32x8xf32>
    %cst_108 = arith.constant 1.000000e+00 : f32
    %161 = vector.broadcast %cst_108 : f32 to vector<32x8xf32>
    %162 = arith.addf %161, %160 : vector<32x8xf32>
    %163 = arith.divf %161, %162 : vector<32x8xf32>
    %164 = arith.mulf %153, %163 : vector<32x8xf32>
    %165 = arith.truncf %164 : vector<32x8xf32> to vector<32x8xbf16>
    %166 = tpu.concatenate %45, %165 in 1 : vector<32x16xbf16>, vector<32x8xbf16> -> vector<32x24xbf16>
    %cst_109 = arith.constant dense<0.000000e+00> : vector<32x12xf32>
    %167 = tpu.matmul %166, %46, %cst_109 {dimension_numbers = #tpu.dot_dimension_numbers<[1], [0], [0], [1], [0, 0, 1, 1], [], []>} : vector<32x24xbf16>, vector<24x12xbf16>, vector<32x12xf32> -> vector<32x12xf32>
    %168 = vector.broadcast %49 : f32 to vector<32x12xf32>
    %169 = arith.addf %167, %168 : vector<32x12xf32>
    %170 = math.tanh %169 : vector<32x12xf32>
    %cst_110 = arith.constant dense<0xFF800000> : vector<32xf32>
    %171 = vector.multi_reduction <maximumf>, %170, %cst_110 [1] : vector<32x12xf32> to vector<32xf32>
    %172 = vector.shape_cast %171 : vector<32xf32> to vector<32x1xf32>
    %173 = vector.broadcast %172 : vector<32x1xf32> to vector<32x12xf32>
    %174 = arith.subf %170, %173 : vector<32x12xf32>
    %175 = math.exp %174 : vector<32x12xf32>
    %cst_111 = arith.constant dense<0.000000e+00> : vector<32xf32>
    %176 = vector.multi_reduction <add>, %175, %cst_111 [1] : vector<32x12xf32> to vector<32xf32>
    %177 = vector.shape_cast %176 : vector<32xf32> to vector<32x1xf32>
    %178 = tpu.reciprocal %177 {approx = true} : vector<32x1xf32> -> vector<32x1xf32>
    %179 = vector.broadcast %178 : vector<32x1xf32> to vector<32x12xf32>
    %180 = arith.mulf %175, %179 : vector<32x12xf32>
    %181 = arith.truncf %180 : vector<32x12xf32> to vector<32x12xbf16>
    %cst_112 = arith.constant dense<0.000000e+00> : vector<32x24xf32>
    %182 = tpu.matmul %181, %47, %cst_112 {dimension_numbers = #tpu.dot_dimension_numbers<[1], [0], [0], [1], [0, 0, 1, 1], [], []>} : vector<32x12xbf16>, vector<12x24xbf16>, vector<32x24xf32> -> vector<32x24xf32>
    %183 = arith.extf %166 : vector<32x24xbf16> to vector<32x24xf32>
    %184 = arith.mulf %182, %183 : vector<32x24xf32>
    %185 = arith.truncf %184 : vector<32x24xf32> to vector<32x24xbf16>
    %cst_113 = arith.constant dense<0.000000e+00> : vector<32x2xf32>
    %186 = tpu.matmul %185, %48, %cst_113 {dimension_numbers = #tpu.dot_dimension_numbers<[1], [0], [0], [1], [0, 0, 1, 1], [], []>} : vector<32x24xbf16>, vector<24x2xbf16>, vector<32x2xf32> -> vector<32x2xf32>
    %c0_114 = arith.constant 0 : index
    %c2 = arith.constant 2 : index
    %187 = vector.load %arg26[%c0_114, %c2] : memref<32x128xf32, #tpu.memory_space<vmem>>, vector<32x2xf32>
    tpu.vector_store %arg26[%c0_114, %c2], %186 {strides = array<i32>} : memref<32x128xf32, #tpu.memory_space<vmem>>, vector<32x2xf32>,
    %188 = vector.extract_strided_slice %121 {offsets = [0, 2], sizes = [32, 6], strides = [1, 1]} : vector<32x8xbf16> to vector<32x6xbf16>
    %189 = arith.truncf %186 : vector<32x2xf32> to vector<32x2xbf16>
    %190 = tpu.concatenate %188, %189 in 1 : vector<32x6xbf16>, vector<32x2xbf16> -> vector<32x8xbf16>
    %cst_115 = arith.constant dense<0.000000e+00> : vector<32x8xf32>
    %191 = tpu.matmul %0, %190, %cst_115 {dimension_numbers = #tpu.dot_dimension_numbers<[1], [0], [0], [1], [0, 0, 1, 1], [], []>} : vector<32x32xbf16>, vector<32x8xbf16>, vector<32x8xf32> -> vector<32x8xf32>
    %192 = arith.truncf %191 : vector<32x8xf32> to vector<32x8xbf16>
    %c0_116 = arith.constant 0 : index
    %c0_117 = arith.constant 0 : index
    %193 = vector.load %arg12[%c0_116, %c0_117] : memref<8x32xbf16, #tpu.memory_space<vmem>>, vector<8x32xbf16>
    %cst_118 = arith.constant dense<0.000000e+00> : vector<32x32xf32>
    %194 = tpu.matmul %192, %193, %cst_118 {dimension_numbers = #tpu.dot_dimension_numbers<[1], [0], [0], [1], [0, 0, 1, 1], [], []>} : vector<32x8xbf16>, vector<8x32xbf16>, vector<32x32xf32> -> vector<32x32xf32>
    %c0_119 = arith.constant 0 : index
    %c0_120 = arith.constant 0 : index
    %195 = vector.load %arg14[%c0_119, %c0_120] : memref<8x32xbf16, #tpu.memory_space<vmem>>, vector<8x32xbf16>
    %cst_121 = arith.constant dense<0.000000e+00> : vector<32x32xf32>
    %196 = tpu.matmul %190, %195, %cst_121 {dimension_numbers = #tpu.dot_dimension_numbers<[1], [0], [0], [1], [0, 0, 1, 1], [], []>} : vector<32x8xbf16>, vector<8x32xbf16>, vector<32x32xf32> -> vector<32x32xf32>
    %197 = arith.addf %194, %196 : vector<32x32xf32>
    %c0_122 = arith.constant 0 : index
    %c0_123 = arith.constant 0 : index
    %198 = vector.load %arg15[%c0_122, %c0_123] : memref<1x32xf32, #tpu.memory_space<vmem>>, vector<1x32xf32>
    %199 = vector.broadcast %198 : vector<1x32xf32> to vector<32x32xf32>
    %200 = arith.addf %197, %199 : vector<32x32xf32>
    %c0_124 = arith.constant 0 : index
    %c0_125 = arith.constant 0 : index
    %201 = vector.load %arg13[%c0_124, %c0_125] : memref<8x32xbf16, #tpu.memory_space<vmem>>, vector<8x32xbf16>
    %cst_126 = arith.constant dense<0.000000e+00> : vector<32x32xf32>
    %202 = tpu.matmul %192, %201, %cst_126 {dimension_numbers = #tpu.dot_dimension_numbers<[1], [0], [0], [1], [0, 0, 1, 1], [], []>} : vector<32x8xbf16>, vector<8x32xbf16>, vector<32x32xf32> -> vector<32x32xf32>
    %c0_127 = arith.constant 0 : index
    %c0_128 = arith.constant 0 : index
    %203 = vector.load %arg16[%c0_127, %c0_128] : memref<1x32xf32, #tpu.memory_space<vmem>>, vector<1x32xf32>
    %204 = vector.broadcast %203 : vector<1x32xf32> to vector<32x32xf32>
    %205 = arith.addf %202, %204 : vector<32x32xf32>
    %206 = arith.negf %205 : vector<32x32xf32>
    %207 = math.exp %206 : vector<32x32xf32>
    %cst_129 = arith.constant 1.000000e+00 : f32
    %208 = vector.broadcast %cst_129 : f32 to vector<32x32xf32>
    %209 = arith.addf %208, %207 : vector<32x32xf32>
    %210 = arith.divf %208, %209 : vector<32x32xf32>
    %211 = arith.mulf %200, %210 : vector<32x32xf32>
    %212 = arith.truncf %211 : vector<32x32xf32> to vector<32x32xbf16>
    %cst_130 = arith.constant dense<0.000000e+00> : vector<32x32xf32>
    %213 = tpu.matmul %0, %212, %cst_130 {dimension_numbers = #tpu.dot_dimension_numbers<[1], [0], [0], [1], [0, 0, 1, 1], [], []>} : vector<32x32xbf16>, vector<32x32xbf16>, vector<32x32xf32> -> vector<32x32xf32>
    %214 = arith.truncf %213 : vector<32x32xf32> to vector<32x32xbf16>
    %c0_131 = arith.constant 0 : index
    %c0_132 = arith.constant 0 : index
    %215 = vector.load %arg17[%c0_131, %c0_132] : memref<32x8xbf16, #tpu.memory_space<vmem>>, vector<32x8xbf16>
    %cst_133 = arith.constant dense<0.000000e+00> : vector<32x8xf32>
    %216 = tpu.matmul %214, %215, %cst_133 {dimension_numbers = #tpu.dot_dimension_numbers<[1], [0], [0], [1], [0, 0, 1, 1], [], []>} : vector<32x32xbf16>, vector<32x8xbf16>, vector<32x8xf32> -> vector<32x8xf32>
    %c0_134 = arith.constant 0 : index
    %c0_135 = arith.constant 0 : index
    %217 = vector.load %arg19[%c0_134, %c0_135] : memref<32x8xbf16, #tpu.memory_space<vmem>>, vector<32x8xbf16>
    %cst_136 = arith.constant dense<0.000000e+00> : vector<32x8xf32>
    %218 = tpu.matmul %212, %217, %cst_136 {dimension_numbers = #tpu.dot_dimension_numbers<[1], [0], [0], [1], [0, 0, 1, 1], [], []>} : vector<32x32xbf16>, vector<32x8xbf16>, vector<32x8xf32> -> vector<32x8xf32>
    %219 = arith.addf %216, %218 : vector<32x8xf32>
    %c0_137 = arith.constant 0 : index
    %c0_138 = arith.constant 0 : index
    %220 = vector.load %arg20[%c0_137, %c0_138] : memref<1x8xf32, #tpu.memory_space<vmem>>, vector<1x8xf32>
    %221 = vector.broadcast %220 : vector<1x8xf32> to vector<32x8xf32>
    %222 = arith.addf %219, %221 : vector<32x8xf32>
    %c0_139 = arith.constant 0 : index
    %c0_140 = arith.constant 0 : index
    %223 = vector.load %arg18[%c0_139, %c0_140] : memref<32x8xbf16, #tpu.memory_space<vmem>>, vector<32x8xbf16>
    %cst_141 = arith.constant dense<0.000000e+00> : vector<32x8xf32>
    %224 = tpu.matmul %214, %223, %cst_141 {dimension_numbers = #tpu.dot_dimension_numbers<[1], [0], [0], [1], [0, 0, 1, 1], [], []>} : vector<32x32xbf16>, vector<32x8xbf16>, vector<32x8xf32> -> vector<32x8xf32>
    %c0_142 = arith.constant 0 : index
    %c0_143 = arith.constant 0 : index
    %225 = vector.load %arg21[%c0_142, %c0_143] : memref<1x8xf32, #tpu.memory_space<vmem>>, vector<1x8xf32>
    %226 = vector.broadcast %225 : vector<1x8xf32> to vector<32x8xf32>
    %227 = arith.addf %224, %226 : vector<32x8xf32>
    %228 = arith.negf %227 : vector<32x8xf32>
    %229 = math.exp %228 : vector<32x8xf32>
    %cst_144 = arith.constant 1.000000e+00 : f32
    %230 = vector.broadcast %cst_144 : f32 to vector<32x8xf32>
    %231 = arith.addf %230, %229 : vector<32x8xf32>
    %232 = arith.divf %230, %231 : vector<32x8xf32>
    %233 = arith.mulf %222, %232 : vector<32x8xf32>
    %234 = arith.truncf %233 : vector<32x8xf32> to vector<32x8xbf16>
    %235 = tpu.concatenate %45, %234 in 1 : vector<32x16xbf16>, vector<32x8xbf16> -> vector<32x24xbf16>
    %cst_145 = arith.constant dense<0.000000e+00> : vector<32x12xf32>
    %236 = tpu.matmul %235, %46, %cst_145 {dimension_numbers = #tpu.dot_dimension_numbers<[1], [0], [0], [1], [0, 0, 1, 1], [], []>} : vector<32x24xbf16>, vector<24x12xbf16>, vector<32x12xf32> -> vector<32x12xf32>
    %237 = vector.broadcast %49 : f32 to vector<32x12xf32>
    %238 = arith.addf %236, %237 : vector<32x12xf32>
    %239 = math.tanh %238 : vector<32x12xf32>
    %cst_146 = arith.constant dense<0xFF800000> : vector<32xf32>
    %240 = vector.multi_reduction <maximumf>, %239, %cst_146 [1] : vector<32x12xf32> to vector<32xf32>
    %241 = vector.shape_cast %240 : vector<32xf32> to vector<32x1xf32>
    %242 = vector.broadcast %241 : vector<32x1xf32> to vector<32x12xf32>
    %243 = arith.subf %239, %242 : vector<32x12xf32>
    %244 = math.exp %243 : vector<32x12xf32>
    %cst_147 = arith.constant dense<0.000000e+00> : vector<32xf32>
    %245 = vector.multi_reduction <add>, %244, %cst_147 [1] : vector<32x12xf32> to vector<32xf32>
    %246 = vector.shape_cast %245 : vector<32xf32> to vector<32x1xf32>
    %247 = tpu.reciprocal %246 {approx = true} : vector<32x1xf32> -> vector<32x1xf32>
    %248 = vector.broadcast %247 : vector<32x1xf32> to vector<32x12xf32>
    %249 = arith.mulf %244, %248 : vector<32x12xf32>
    %250 = arith.truncf %249 : vector<32x12xf32> to vector<32x12xbf16>
    %cst_148 = arith.constant dense<0.000000e+00> : vector<32x24xf32>
    %251 = tpu.matmul %250, %47, %cst_148 {dimension_numbers = #tpu.dot_dimension_numbers<[1], [0], [0], [1], [0, 0, 1, 1], [], []>} : vector<32x12xbf16>, vector<12x24xbf16>, vector<32x24xf32> -> vector<32x24xf32>
    %252 = arith.extf %235 : vector<32x24xbf16> to vector<32x24xf32>
    %253 = arith.mulf %251, %252 : vector<32x24xf32>
    %254 = arith.truncf %253 : vector<32x24xf32> to vector<32x24xbf16>
    %cst_149 = arith.constant dense<0.000000e+00> : vector<32x2xf32>
    %255 = tpu.matmul %254, %48, %cst_149 {dimension_numbers = #tpu.dot_dimension_numbers<[1], [0], [0], [1], [0, 0, 1, 1], [], []>} : vector<32x24xbf16>, vector<24x2xbf16>, vector<32x2xf32> -> vector<32x2xf32>
    %c0_150 = arith.constant 0 : index
    %c4 = arith.constant 4 : index
    %256 = vector.load %arg26[%c0_150, %c4] : memref<32x128xf32, #tpu.memory_space<vmem>>, vector<32x2xf32>
    tpu.vector_store %arg26[%c0_150, %c4], %255 {strides = array<i32>} : memref<32x128xf32, #tpu.memory_space<vmem>>, vector<32x2xf32>,
    return
  }
}

</mosaic_0001>

<llo_original>
// kernel: _lambda_.1
$region0: #{_lambda_.1}
  #allocation0 [shape = 'u32[]', space=smem, size = 0x4, offset = 0x4, fixed_abs, tag = 'smem constant byte address 0x4 - core index']
  #allocation1 [shape = 'u32[144,128]{1,0:T(1,128)}', space=vmem, size = 0x12000, scoped, tag = 'internal scratch']
  #allocation2 [shape = 'f32[1,1]{1,0:T(1,128)S(6)}', space=smem, size = 0x200, scoped, tag = 'scoped memory for _lambda_.1']
  %s0 = inlined_call_operand.vmem [shape: bf16[32,16], index: 0, kind: input, shape index: {}]
  %s1 = inlined_call_operand.vmem [shape: bf16[32,32], index: 1, kind: input, shape index: {}]
  %s2 = inlined_call_operand.vmem [shape: bf16[16,64], index: 2, kind: input, shape index: {}]
  %s3 = inlined_call_operand.vmem [shape: bf16[16,64], index: 3, kind: input, shape index: {}]
  %s4 = inlined_call_operand.vmem [shape: bf16[16,64], index: 4, kind: input, shape index: {}]
  %s5 = inlined_call_operand.vmem [shape: f32[1,64], index: 5, kind: input, shape index: {}]
  %s6 = inlined_call_operand.vmem [shape: f32[1,64], index: 6, kind: input, shape index: {}]
  %s7 = inlined_call_operand.vmem [shape: bf16[64,16], index: 7, kind: input, shape index: {}]
  %s8 = inlined_call_operand.vmem [shape: bf16[64,16], index: 8, kind: input, shape index: {}]
  %s9 = inlined_call_operand.vmem [shape: bf16[64,16], index: 9, kind: input, shape index: {}]
  %s10 = inlined_call_operand.vmem [shape: f32[1,16], index: 10, kind: input, shape index: {}]
  %s11 = inlined_call_operand.vmem [shape: f32[1,16], index: 11, kind: input, shape index: {}]
  %s12 = inlined_call_operand.vmem [shape: bf16[8,32], index: 12, kind: input, shape index: {}]
  %s13 = inlined_call_operand.vmem [shape: bf16[8,32], index: 13, kind: input, shape index: {}]
  %s14 = inlined_call_operand.vmem [shape: bf16[8,32], index: 14, kind: input, shape index: {}]
  %s15 = inlined_call_operand.vmem [shape: f32[1,32], index: 15, kind: input, shape index: {}]
  %s16 = inlined_call_operand.vmem [shape: f32[1,32], index: 16, kind: input, shape index: {}]
  %s17 = inlined_call_operand.vmem [shape: bf16[32,8], index: 17, kind: input, shape index: {}]
  %s18 = inlined_call_operand.vmem [shape: bf16[32,8], index: 18, kind: input, shape index: {}]
  %s19 = inlined_call_operand.vmem [shape: bf16[32,8], index: 19, kind: input, shape index: {}]
  %s20 = inlined_call_operand.vmem [shape: f32[1,8], index: 20, kind: input, shape index: {}]
  %s21 = inlined_call_operand.vmem [shape: f32[1,8], index: 21, kind: input, shape index: {}]
  %s22 = inlined_call_operand.vmem [shape: bf16[24,12], index: 22, kind: input, shape index: {}]
  %s23 = inlined_call_operand.vmem [shape: bf16[12,24], index: 23, kind: input, shape index: {}]
  %s24 = inlined_call_operand.vmem [shape: bf16[24,2], index: 24, kind: input, shape index: {}]
  %s25 = inlined_call_operand.<no memory space> [shape: f32[1,1], index: 25, kind: input, shape index: {}]
  %s26 = inlined_call_operand.vmem [shape: f32[32,128], index: 26, kind: output, shape index: {}]
  %s27 = sld [smem:[#allocation0]]
  $region114: #{_lambda_.1} parent=0
    _
  %s29 = ssub.s32 1, %s27
  %s30 = scalar_select 0, %s29, %s27
  %31 = sst [smem:[#allocation2]] %s25
  // Predicated region
  $region2: #{_lambda_.1} parent=0 // pred_check
    _
  $region3: #{_lambda_.1} parent=0 // pred_check_branch
    %33 = sbr.rel (0) target = $region5
  $region4: #{_lambda_.1} parent=0 // pred_region
    _
  $region5: #{_lambda_.1} parent=0 // pred_fallthru
    _
  // Predicated region
  $region6: #{_lambda_.1} parent=0 // pred_check
    _
  $region7: #{_lambda_.1} parent=0 // pred_check_branch
    %35 = sbr.rel (0) target = $region9
  $region8: #{_lambda_.1} parent=0 // pred_region
    _
  $region9: #{_lambda_.1} parent=0 // pred_fallthru
    _
  // Predicated region
  $region10: #{_lambda_.1} parent=0 // pred_check
    _
  $region11: #{_lambda_.1} parent=0 // pred_check_branch
    %37 = sbr.rel (0) target = $region13
  $region12: #{_lambda_.1} parent=0 // pred_region
    _
  $region13: #{_lambda_.1} parent=0 // pred_fallthru
    _
  // Predicated region
  $region14: #{_lambda_.1} parent=0 // pred_check
    _
  $region15: #{_lambda_.1} parent=0 // pred_check_branch
    %39 = sbr.rel (0) target = $region17
  $region16: #{_lambda_.1} parent=0 // pred_region
    _
  $region17: #{_lambda_.1} parent=0 // pred_fallthru
    _
  // Predicated region
  $region18: #{_lambda_.1} parent=0 // pred_check
    _
  $region19: #{_lambda_.1} parent=0 // pred_check_branch
    %41 = sbr.rel (0) target = $region21
  $region20: #{_lambda_.1} parent=0 // pred_region
    _
  $region21: #{_lambda_.1} parent=0 // pred_fallthru
    _
  // Predicated region
  $region22: #{_lambda_.1} parent=0 // pred_check
    _
  $region23: #{_lambda_.1} parent=0 // pred_check_branch
    %43 = sbr.rel (0) target = $region25
  $region24: #{_lambda_.1} parent=0 // pred_region
    _
  $region25: #{_lambda_.1} parent=0 // pred_fallthru
    _
  // Predicated region
  $region26: #{_lambda_.1} parent=0 // pred_check
    _
  $region27: #{_lambda_.1} parent=0 // pred_check_branch
    %45 = sbr.rel (0) target = $region29
  $region28: #{_lambda_.1} parent=0 // pred_region
    _
  $region29: #{_lambda_.1} parent=0 // pred_fallthru
    _
  // Predicated region
  $region30: #{_lambda_.1} parent=0 // pred_check
    _
  $region31: #{_lambda_.1} parent=0 // pred_check_branch
    %47 = sbr.rel (0) target = $region33
  $region32: #{_lambda_.1} parent=0 // pred_region
    _
  $region33: #{_lambda_.1} parent=0 // pred_fallthru
    _
  // Predicated region
  $region34: #{_lambda_.1} parent=0 // pred_check
    _
  $region35: #{_lambda_.1} parent=0 // pred_check_branch
    %49 = sbr.rel (0) target = $region37
  $region36: #{_lambda_.1} parent=0 // pred_region
    _
  $region37: #{_lambda_.1} parent=0 // pred_fallthru
    _
  // Predicated region
  $region38: #{_lambda_.1} parent=0 // pred_check
    _
  $region39: #{_lambda_.1} parent=0 // pred_check_branch
    %51 = sbr.rel (0) target = $region41
  $region40: #{_lambda_.1} parent=0 // pred_region
    _
  $region41: #{_lambda_.1} parent=0 // pred_fallthru
    _
  // Predicated region
  $region42: #{_lambda_.1} parent=0 // pred_check
    _
  $region43: #{_lambda_.1} parent=0 // pred_check_branch
    %53 = sbr.rel (0) target = $region45
  $region44: #{_lambda_.1} parent=0 // pred_region
    _
  $region45: #{_lambda_.1} parent=0 // pred_fallthru
    _
  // Predicated region
  $region46: #{_lambda_.1} parent=0 // pred_check
    _
  $region47: #{_lambda_.1} parent=0 // pred_check_branch
    %55 = sbr.rel (0) target = $region49
  $region48: #{_lambda_.1} parent=0 // pred_region
    _
  $region49: #{_lambda_.1} parent=0 // pred_fallthru
    _
  // Predicated region
  $region50: #{_lambda_.1} parent=0 // pred_check
    _
  $region51: #{_lambda_.1} parent=0 // pred_check_branch
    %57 = sbr.rel (0) target = $region53
  $region52: #{_lambda_.1} parent=0 // pred_region
    _
  $region53: #{_lambda_.1} parent=0 // pred_fallthru
    _
  // Predicated region
  $region54: #{_lambda_.1} parent=0 // pred_check
    _
  $region55: #{_lambda_.1} parent=0 // pred_check_branch
    %59 = sbr.rel (0) target = $region57
  $region56: #{_lambda_.1} parent=0 // pred_region
    _
  $region57: #{_lambda_.1} parent=0 // pred_fallthru
    _
  // Predicated region
  $region58: #{_lambda_.1} parent=0 // pred_check
    _
  $region59: #{_lambda_.1} parent=0 // pred_check_branch
    %61 = sbr.rel (0) target = $region61
  $region60: #{_lambda_.1} parent=0 // pred_region
    _
  $region61: #{_lambda_.1} parent=0 // pred_fallthru
    _
  // Predicated region
  $region62: #{_lambda_.1} parent=0 // pred_check
    _
  $region63: #{_lambda_.1} parent=0 // pred_check_branch
    %63 = sbr.rel (0) target = $region65
  $region64: #{_lambda_.1} parent=0 // pred_region
    _
  $region65: #{_lambda_.1} parent=0 // pred_fallthru
    _
  // Predicated region
  $region66: #{_lambda_.1} parent=0 // pred_check
    _
  $region67: #{_lambda_.1} parent=0 // pred_check_branch
    %65 = sbr.rel (0) target = $region69
  $region68: #{_lambda_.1} parent=0 // pred_region
    _
  $region69: #{_lambda_.1} parent=0 // pred_fallthru
    _
  // Predicated region
  $region70: #{_lambda_.1} parent=0 // pred_check
    _
  $region71: #{_lambda_.1} parent=0 // pred_check_branch
    %67 = sbr.rel (0) target = $region73
  $region72: #{_lambda_.1} parent=0 // pred_region
    _
  $region73: #{_lambda_.1} parent=0 // pred_fallthru
    _
  // Predicated region
  $region74: #{_lambda_.1} parent=0 // pred_check
    _
  $region75: #{_lambda_.1} parent=0 // pred_check_branch
    %69 = sbr.rel (0) target = $region77
  $region76: #{_lambda_.1} parent=0 // pred_region
    _
  $region77: #{_lambda_.1} parent=0 // pred_fallthru
    _
  // Predicated region
  $region78: #{_lambda_.1} parent=0 // pred_check
    _
  $region79: #{_lambda_.1} parent=0 // pred_check_branch
    %71 = sbr.rel (0) target = $region81
  $region80: #{_lambda_.1} parent=0 // pred_region
    _
  $region81: #{_lambda_.1} parent=0 // pred_fallthru
    _
  // Predicated region
  $region82: #{_lambda_.1} parent=0 // pred_check
    _
  $region83: #{_lambda_.1} parent=0 // pred_check_branch
    %73 = sbr.rel (0) target = $region85
  $region84: #{_lambda_.1} parent=0 // pred_region
    _
  $region85: #{_lambda_.1} parent=0 // pred_fallthru
    _
  // Predicated region
  $region86: #{_lambda_.1} parent=0 // pred_check
    _
  $region87: #{_lambda_.1} parent=0 // pred_check_branch
    %75 = sbr.rel (0) target = $region89
  $region88: #{_lambda_.1} parent=0 // pred_region
    _
  $region89: #{_lambda_.1} parent=0 // pred_fallthru
    _
  // Predicated region
  $region90: #{_lambda_.1} parent=0 // pred_check
    _
  $region91: #{_lambda_.1} parent=0 // pred_check_branch
    %77 = sbr.rel (0) target = $region93
  $region92: #{_lambda_.1} parent=0 // pred_region
    _
  $region93: #{_lambda_.1} parent=0 // pred_fallthru
    _
  // Predicated region
  $region94: #{_lambda_.1} parent=0 // pred_check
    _
  $region95: #{_lambda_.1} parent=0 // pred_check_branch
    %79 = sbr.rel (0) target = $region97
  $region96: #{_lambda_.1} parent=0 // pred_region
    _
  $region97: #{_lambda_.1} parent=0 // pred_fallthru
    _
  // Predicated region
  $region98: #{_lambda_.1} parent=0 // pred_check
    _
  $region99: #{_lambda_.1} parent=0 // pred_check_branch
    %81 = sbr.rel (0) target = $region101
  $region100: #{_lambda_.1} parent=0 // pred_region
    _
  $region101: #{_lambda_.1} parent=0 // pred_fallthru
    _
  // Predicated region
  $region102: #{_lambda_.1} parent=0 // pred_check
    _
  $region103: #{_lambda_.1} parent=0 // pred_check_branch
    %83 = sbr.rel (0) target = $region105
  $region104: #{_lambda_.1} parent=0 // pred_region
    _
  $region105: #{_lambda_.1} parent=0 // pred_fallthru
    _
  %v85 = vld [vmem:[%s1] sm:$0xf]
  %v86 = vld [vmem:[%s1 + $0x4] sm:$0xf]
  %v87 = vld [vmem:[%s1 + $0x8] sm:$0xf]
  %v88 = vld [vmem:[%s1 + $0xc] sm:$0xf]
  %v89 = vld [vmem:[%s0] sm:$0xf]
  %v90 = vld [vmem:[%s0 + $0x4] sm:$0xf]
  %v91 = vld [vmem:[%s0 + $0x8] sm:$0xf]
  %v92 = vld [vmem:[%s0 + $0xc] sm:$0xf]
  %v97 = vunpack.c.l.b16 %v85
  %v98 = vunpack.c.l.b16 %v86
  %v99 = vunpack.c.l.b16 %v87
  %v100 = vunpack.c.l.b16 %v88
  %v101 = vpack.c.b16 %v98, %v97
  %v102 = vpack.c.b16 %v100, %v99
  %v107 = vunpack.c.l.b16 %v89
  %v108 = vunpack.c.l.b16 %v90
  %v109 = vunpack.c.l.b16 %v91
  %v110 = vunpack.c.l.b16 %v92
  %v111 = vpack.c.b16 %v108, %v107
  %v112 = vpack.c.b16 %v110, %v109
  %vm115 = vcmask 261120
  %v117 = vsel %vm115, %v101, 0
  %v120 = vsel %vm115, %v102, 0
  %122 = vmatprep.subr.bf16.mxu0 0
  %123 = vmatpush1.bf16.msra.mxu0 %v111
  %124 = vmatprep.subr.bf16.mxu0 0
  %125 = vmatpush1.bf16.msra.mxu0 %v112
  %126 = vmatprep.subr.bf16.mxu0 0
  %127 = vmatpush1.bf16.msra.mxu0 0
  %128 = vmatprep.subr.bf16.mxu0 0
  %129 = vmatpush1.bf16.msra.mxu0 0
  %130 = vmatprep.subr.bf16.mxu0 0
  %131 = vmatpush1.bf16.msra.mxu0 0
  %132 = vmatprep.subr.bf16.mxu0 0
  %133 = vmatpush1.bf16.msra.mxu0 0
  %134 = vmatprep.subr.bf16.mxu0 0
  %135 = vmatpush1.bf16.msra.mxu0 0
  %136 = vmatprep.subr.bf16.mxu0 0
  %137 = vmatpush1.bf16.msra.mxu0 0
  %138 = vmatprep.subr.bf16.mxu0 0
  %139 = vmatpush1.bf16.msra.mxu0 0
  %140 = vmatprep.subr.bf16.mxu0 0
  %141 = vmatpush1.bf16.msra.mxu0 0
  %142 = vmatprep.subr.bf16.mxu0 0
  %143 = vmatpush1.bf16.msra.mxu0 0
  %144 = vmatprep.subr.bf16.mxu0 0
  %145 = vmatpush1.bf16.msra.mxu0 0
  %146 = vmatprep.subr.bf16.mxu0 0
  %147 = vmatpush1.bf16.msra.mxu0 0
  %148 = vmatprep.subr.bf16.mxu0 0
  %149 = vmatpush1.bf16.msra.mxu0 0
  %150 = vmatprep.subr.bf16.mxu0 0
  %151 = vmatpush1.bf16.msra.mxu0 0
  %152 = vmatprep.subr.bf16.mxu0 0
  %153 = vmatpush1.bf16.msra.mxu0 0
  %154 = vmatprep.mubr.bf16.mxu0 0
  %155 = vmatmul.mubr.bf16.gmra.mrb[0].mxu0 %v117
  %v156 = vpop.f32.mrb[0].mxu0
  %v157 = vadd.f32 0.0, %v156
  %v158 = vpop.f32.mrb[0].mxu0
  %v159 = vpop.f32.mrb[0].mxu0
  %v160 = vadd.f32 0.0, %v159
  %v161 = vpop.f32.mrb[0].mxu0
  %162 = vmatprep.mubr.bf16.mxu0 0
  %163 = vmatmul.mubr.bf16.gmra.mrb[0].mxu0 %v120
  %v164 = vpop.f32.mrb[0].mxu0
  %v165 = vadd.f32 0.0, %v164
  %v166 = vpop.f32.mrb[0].mxu0
  %v167 = vpop.f32.mrb[0].mxu0
  %v168 = vadd.f32 0.0, %v167
  %v169 = vpop.f32.mrb[0].mxu0
  %170 = vdwg.mxu0
  %v171 = vpack.c.bf16 %v160, %v157
  %v172 = vpack.c.bf16 %v168, %v165
  %v173 = vld [vmem:[%s2] sm:$0xf]
  %v174 = vld [vmem:[%s2 + $0x4] sm:$0xf]
  %v175 = vld [vmem:[%s4] sm:$0xf]
  %v176 = vld [vmem:[%s4 + $0x4] sm:$0xf]
  %v179 = vunpack.c.l.b16 %v175
  %v180 = vunpack.c.l.b16 %v176
  %v181 = vpack.c.b16 %v180, %v179
  %vm183 = vcmask 130048
  %v185 = vsel %vm183, %v111, 0
  %v188 = vsel %vm183, %v112, 0
  %190 = vmatprep.subr.bf16.mxu0 0
  %191 = vmatpush1.bf16.msra.mxu0 %v181
  %192 = vmatprep.subr.bf16.mxu0 0
  %193 = vmatpush1.bf16.msra.mxu0 0
  %194 = vmatprep.subr.bf16.mxu0 0
  %195 = vmatpush1.bf16.msra.mxu0 0
  %196 = vmatprep.subr.bf16.mxu0 0
  %197 = vmatpush1.bf16.msra.mxu0 0
  %198 = vmatprep.subr.bf16.mxu0 0
  %199 = vmatpush1.bf16.msra.mxu0 0
  %200 = vmatprep.subr.bf16.mxu0 0
  %201 = vmatpush1.bf16.msra.mxu0 0
  %202 = vmatprep.subr.bf16.mxu0 0
  %203 = vmatpush1.bf16.msra.mxu0 0
  %204 = vmatprep.subr.bf16.mxu0 0
  %205 = vmatpush1.bf16.msra.mxu0 0
  %206 = vmatprep.subr.bf16.mxu0 0
  %207 = vmatpush1.bf16.msra.mxu0 0
  %208 = vmatprep.subr.bf16.mxu0 0
  %209 = vmatpush1.bf16.msra.mxu0 0
  %210 = vmatprep.subr.bf16.mxu0 0
  %211 = vmatpush1.bf16.msra.mxu0 0
  %212 = vmatprep.subr.bf16.mxu0 0
  %213 = vmatpush1.bf16.msra.mxu0 0
  %214 = vmatprep.subr.bf16.mxu0 0
  %215 = vmatpush1.bf16.msra.mxu0 0
  %216 = vmatprep.subr.bf16.mxu0 0
  %217 = vmatpush1.bf16.msra.mxu0 0
  %218 = vmatprep.subr.bf16.mxu0 0
  %219 = vmatpush1.bf16.msra.mxu0 0
  %220 = vmatprep.subr.bf16.mxu0 0
  %221 = vmatpush1.bf16.msra.mxu0 0
  %222 = vmatprep.mubr.bf16.mxu0 0
  %223 = vmatmul.mubr.bf16.gmra.mrb[0].mxu0 %v185
  %v224 = vpop.f32.mrb[0].mxu0
  %v225 = vadd.f32 0.0, %v224
  %v226 = vpop.f32.mrb[0].mxu0
  %v227 = vpop.f32.mrb[0].mxu0
  %v228 = vadd.f32 0.0, %v227
  %v229 = vpop.f32.mrb[0].mxu0
  %230 = vmatprep.mubr.bf16.mxu0 0
  %231 = vmatmul.mubr.bf16.gmra.mrb[0].mxu0 %v188
  %v232 = vpop.f32.mrb[0].mxu0
  %v233 = vadd.f32 0.0, %v232
  %v234 = vpop.f32.mrb[0].mxu0
  %v235 = vpop.f32.mrb[0].mxu0
  %v236 = vadd.f32 0.0, %v235
  %v237 = vpop.f32.mrb[0].mxu0
  %238 = vdwg.mxu0
  %v241 = vunpack.c.l.b16 %v173
  %v242 = vunpack.c.l.b16 %v174
  %v243 = vpack.c.b16 %v242, %v241
  %v246 = vsel %vm183, %v171, 0
  %v249 = vsel %vm183, %v172, 0
  %251 = vmatprep.subr.bf16.mxu0 0
  %252 = vmatpush1.bf16.msra.mxu0 %v243
  %253 = vmatprep.subr.bf16.mxu0 0
  %254 = vmatpush1.bf16.msra.mxu0 0
  %255 = vmatprep.subr.bf16.mxu0 0
  %256 = vmatpush1.bf16.msra.mxu0 0
  %257 = vmatprep.subr.bf16.mxu0 0
  %258 = vmatpush1.bf16.msra.mxu0 0
  %259 = vmatprep.subr.bf16.mxu0 0
  %260 = vmatpush1.bf16.msra.mxu0 0
  %261 = vmatprep.subr.bf16.mxu0 0
  %262 = vmatpush1.bf16.msra.mxu0 0
  %263 = vmatprep.subr.bf16.mxu0 0
  %264 = vmatpush1.bf16.msra.mxu0 0
  %265 = vmatprep.subr.bf16.mxu0 0
  %266 = vmatpush1.bf16.msra.mxu0 0
  %267 = vmatprep.subr.bf16.mxu0 0
  %268 = vmatpush1.bf16.msra.mxu0 0
  %269 = vmatprep.subr.bf16.mxu0 0
  %270 = vmatpush1.bf16.msra.mxu0 0
  %271 = vmatprep.subr.bf16.mxu0 0
  %272 = vmatpush1.bf16.msra.mxu0 0
  %273 = vmatprep.subr.bf16.mxu0 0
  %274 = vmatpush1.bf16.msra.mxu0 0
  %275 = vmatprep.subr.bf16.mxu0 0
  %276 = vmatpush1.bf16.msra.mxu0 0
  %277 = vmatprep.subr.bf16.mxu0 0
  %278 = vmatpush1.bf16.msra.mxu0 0
  %279 = vmatprep.subr.bf16.mxu0 0
  %280 = vmatpush1.bf16.msra.mxu0 0
  %281 = vmatprep.subr.bf16.mxu0 0
  %282 = vmatpush1.bf16.msra.mxu0 0
  %283 = vmatprep.mubr.bf16.mxu0 0
  %284 = vmatmul.mubr.bf16.gmra.mrb[0].mxu0 %v246
  %v285 = vpop.f32.mrb[0].mxu0
  %v286 = vadd.f32 %v225, %v285
  %v287 = vpop.f32.mrb[0].mxu0
  %v288 = vpop.f32.mrb[0].mxu0
  %v289 = vadd.f32 %v228, %v288
  %v290 = vpop.f32.mrb[0].mxu0
  %291 = vmatprep.mubr.bf16.mxu0 0
  %292 = vmatmul.mubr.bf16.gmra.mrb[0].mxu0 %v249
  %v293 = vpop.f32.mrb[0].mxu0
  %v294 = vadd.f32 %v233, %v293
  %v295 = vpop.f32.mrb[0].mxu0
  %v296 = vpop.f32.mrb[0].mxu0
  %v297 = vadd.f32 %v236, %v296
  %v298 = vpop.f32.mrb[0].mxu0
  %299 = vdwg.mxu0
  %v300 = vld [vmem:[%s5] sm:$0x1]
  %v302 = vlaneseq
  %v303 = vshrl.u32 %v302, 7
  %v304 = vsub.s32 0, %v303
  %v305 = vrot.slane %v300, %v304
  %v307 = vadd.f32 %v286, %v305
  %v308 = vadd.f32 %v289, %v305
  %v309 = vadd.f32 %v294, %v305
  %v310 = vadd.f32 %v297, %v305
  %v311 = vld [vmem:[%s3] sm:$0xf]
  %v312 = vld [vmem:[%s3 + $0x4] sm:$0xf]
  %v313 = vld [vmem:[%s6] sm:$0x1]
  %v315 = vlaneseq
  %v316 = vshrl.u32 %v315, 7
  %v317 = vsub.s32 0, %v316
  %v318 = vrot.slane %v313, %v317
  %v322 = vunpack.c.l.b16 %v311
  %v323 = vunpack.c.l.b16 %v312
  %v324 = vpack.c.b16 %v323, %v322
  %326 = vmatprep.subr.bf16.mxu0 0
  %327 = vmatpush1.bf16.msra.mxu0 %v324
  %328 = vmatprep.subr.bf16.mxu0 0
  %329 = vmatpush1.bf16.msra.mxu0 0
  %330 = vmatprep.subr.bf16.mxu0 0
  %331 = vmatpush1.bf16.msra.mxu0 0
  %332 = vmatprep.subr.bf16.mxu0 0
  %333 = vmatpush1.bf16.msra.mxu0 0
  %334 = vmatprep.subr.bf16.mxu0 0
  %335 = vmatpush1.bf16.msra.mxu0 0
  %336 = vmatprep.subr.bf16.mxu0 0
  %337 = vmatpush1.bf16.msra.mxu0 0
  %338 = vmatprep.subr.bf16.mxu0 0
  %339 = vmatpush1.bf16.msra.mxu0 0
  %340 = vmatprep.subr.bf16.mxu0 0
  %341 = vmatpush1.bf16.msra.mxu0 0
  %342 = vmatprep.subr.bf16.mxu0 0
  %343 = vmatpush1.bf16.msra.mxu0 0
  %344 = vmatprep.subr.bf16.mxu0 0
  %345 = vmatpush1.bf16.msra.mxu0 0
  %346 = vmatprep.subr.bf16.mxu0 0
  %347 = vmatpush1.bf16.msra.mxu0 0
  %348 = vmatprep.subr.bf16.mxu0 0
  %349 = vmatpush1.bf16.msra.mxu0 0
  %350 = vmatprep.subr.bf16.mxu0 0
  %351 = vmatpush1.bf16.msra.mxu0 0
  %352 = vmatprep.subr.bf16.mxu0 0
  %353 = vmatpush1.bf16.msra.mxu0 0
  %354 = vmatprep.subr.bf16.mxu0 0
  %355 = vmatpush1.bf16.msra.mxu0 0
  %356 = vmatprep.subr.bf16.mxu0 0
  %357 = vmatpush1.bf16.msra.mxu0 0
  %358 = vmatprep.mubr.bf16.mxu0 0
  %359 = vmatmul.mubr.bf16.gmra.mrb[0].mxu0 %v246
  %v360 = vpop.f32.mrb[0].mxu0
  %v361 = vadd.f32 %v318, %v360
  %v362 = vpop.f32.mrb[0].mxu0
  %v363 = vpop.f32.mrb[0].mxu0
  %v364 = vadd.f32 %v318, %v363
  %v365 = vpop.f32.mrb[0].mxu0
  %366 = vmatprep.mubr.bf16.mxu0 0
  %367 = vmatmul.mubr.bf16.gmra.mrb[0].mxu0 %v249
  %v368 = vpop.f32.mrb[0].mxu0
  %v369 = vadd.f32 %v318, %v368
  %v370 = vpop.f32.mrb[0].mxu0
  %v371 = vpop.f32.mrb[0].mxu0
  %v372 = vadd.f32 %v318, %v371
  %v373 = vpop.f32.mrb[0].mxu0
  %374 = vdwg.mxu0
  %v375 = vxor.u32 %v361, 2147483648
  %v376 = vxor.u32 %v364, 2147483648
  %v377 = vxor.u32 %v369, 2147483648
  %v378 = vxor.u32 %v372, 2147483648
  %v379 = vmul.f32 %v375, 1.442695
  %v380 = vpow.pop %v379
  %v381 = vmul.f32 %v376, 1.442695
  %v382 = vpow.pop %v381
  %v383 = vmul.f32 %v377, 1.442695
  %v384 = vpow.pop %v383
  %v385 = vmul.f32 %v378, 1.442695
  %v386 = vpow.pop %v385
  %v387 = vadd.f32 %v380, 1.0
  %v388 = vadd.f32 %v382, 1.0
  %v389 = vadd.f32 %v384, 1.0
  %v390 = vadd.f32 %v386, 1.0
  %v391 = vrcp.pop %v387
  %v392 = vmul.f32 1.0, %v391
  %v393 = vrcp.pop %v388
  %v394 = vmul.f32 1.0, %v393
  %v395 = vrcp.pop %v389
  %v396 = vmul.f32 1.0, %v395
  %v397 = vrcp.pop %v390
  %v398 = vmul.f32 1.0, %v397
  %v399 = vmul.f32 %v307, %v392
  %v400 = vmul.f32 %v308, %v394
  %v401 = vmul.f32 %v309, %v396
  %v402 = vmul.f32 %v310, %v398
  %v403 = vpack.c.bf16 %v400, %v399
  %v404 = vpack.c.bf16 %v402, %v401
  %405 = vmatprep.subr.bf16.mxu0 0
  %406 = vmatpush1.bf16.msra.mxu0 %v403
  %407 = vmatprep.subr.bf16.mxu0 0
  %408 = vmatpush1.bf16.msra.mxu0 %v404
  %409 = vmatprep.subr.bf16.mxu0 0
  %410 = vmatpush1.bf16.msra.mxu0 0
  %411 = vmatprep.subr.bf16.mxu0 0
  %412 = vmatpush1.bf16.msra.mxu0 0
  %413 = vmatprep.subr.bf16.mxu0 0
  %414 = vmatpush1.bf16.msra.mxu0 0
  %415 = vmatprep.subr.bf16.mxu0 0
  %416 = vmatpush1.bf16.msra.mxu0 0
  %417 = vmatprep.subr.bf16.mxu0 0
  %418 = vmatpush1.bf16.msra.mxu0 0
  %419 = vmatprep.subr.bf16.mxu0 0
  %420 = vmatpush1.bf16.msra.mxu0 0
  %421 = vmatprep.subr.bf16.mxu0 0
  %422 = vmatpush1.bf16.msra.mxu0 0
  %423 = vmatprep.subr.bf16.mxu0 0
  %424 = vmatpush1.bf16.msra.mxu0 0
  %425 = vmatprep.subr.bf16.mxu0 0
  %426 = vmatpush1.bf16.msra.mxu0 0
  %427 = vmatprep.subr.bf16.mxu0 0
  %428 = vmatpush1.bf16.msra.mxu0 0
  %429 = vmatprep.subr.bf16.mxu0 0
  %430 = vmatpush1.bf16.msra.mxu0 0
  %431 = vmatprep.subr.bf16.mxu0 0
  %432 = vmatpush1.bf16.msra.mxu0 0
  %433 = vmatprep.subr.bf16.mxu0 0
  %434 = vmatpush1.bf16.msra.mxu0 0
  %435 = vmatprep.subr.bf16.mxu0 0
  %436 = vmatpush1.bf16.msra.mxu0 0
  %437 = vmatprep.mubr.bf16.mxu0 0
  %438 = vmatmul.mubr.bf16.gmra.mrb[0].mxu0 %v117
  %v439 = vpop.f32.mrb[0].mxu0
  %v440 = vadd.f32 0.0, %v439
  %v441 = vpop.f32.mrb[0].mxu0
  %v442 = vpop.f32.mrb[0].mxu0
  %v443 = vadd.f32 0.0, %v442
  %v444 = vpop.f32.mrb[0].mxu0
  %445 = vmatprep.mubr.bf16.mxu0 0
  %446 = vmatmul.mubr.bf16.gmra.mrb[0].mxu0 %v120
  %v447 = vpop.f32.mrb[0].mxu0
  %v448 = vadd.f32 0.0, %v447
  %v449 = vpop.f32.mrb[0].mxu0
  %v450 = vpop.f32.mrb[0].mxu0
  %v451 = vadd.f32 0.0, %v450
  %v452 = vpop.f32.mrb[0].mxu0
  %453 = vdwg.mxu0
  %v454 = vpack.c.bf16 %v443, %v440
  %v455 = vpack.c.bf16 %v451, %v448
  %v456 = vld [vmem:[%s7] sm:$0xf]
  %v457 = vld [vmem:[%s7 + $0x4] sm:$0xf]
  %v458 = vld [vmem:[%s7 + $0x8] sm:$0xf]
  %v459 = vld [vmem:[%s7 + $0xc] sm:$0xf]
  %v460 = vld [vmem:[%s7 + $0x10] sm:$0xf]
  %v461 = vld [vmem:[%s7 + $0x14] sm:$0xf]
  %v462 = vld [vmem:[%s7 + $0x18] sm:$0xf]
  %v463 = vld [vmem:[%s7 + $0x1c] sm:$0xf]
  %v464 = vld [vmem:[%s9] sm:$0xf]
  %v465 = vld [vmem:[%s9 + $0x4] sm:$0xf]
  %v466 = vld [vmem:[%s9 + $0x8] sm:$0xf]
  %v467 = vld [vmem:[%s9 + $0xc] sm:$0xf]
  %v468 = vld [vmem:[%s9 + $0x10] sm:$0xf]
  %v469 = vld [vmem:[%s9 + $0x14] sm:$0xf]
  %v470 = vld [vmem:[%s9 + $0x18] sm:$0xf]
  %v471 = vld [vmem:[%s9 + $0x1c] sm:$0xf]
  %v480 = vunpack.c.l.b16 %v464
  %v481 = vunpack.c.l.b16 %v465
  %v482 = vunpack.c.l.b16 %v466
  %v483 = vunpack.c.l.b16 %v467
  %v484 = vunpack.c.l.b16 %v468
  %v485 = vunpack.c.l.b16 %v469
  %v486 = vunpack.c.l.b16 %v470
  %v487 = vunpack.c.l.b16 %v471
  %v488 = vpack.c.b16 %v481, %v480
  %v489 = vpack.c.b16 %v483, %v482
  %v490 = vpack.c.b16 %v485, %v484
  %v491 = vpack.c.b16 %v487, %v486
  %vm496 = vcmask 523264
  %v498 = vsel %vm496, %v403, 0
  %v501 = vsel %vm496, %v404, 0
  %503 = vmatprep.subr.bf16.mxu0 0
  %504 = vmatpush1.bf16.msra.mxu0 %v488
  %505 = vmatprep.subr.bf16.mxu0 0
  %506 = vmatpush1.bf16.msra.mxu0 %v489
  %507 = vmatprep.subr.bf16.mxu0 0
  %508 = vmatpush1.bf16.msra.mxu0 %v490
  %509 = vmatprep.subr.bf16.mxu0 0
  %510 = vmatpush1.bf16.msra.mxu0 %v491
  %511 = vmatprep.subr.bf16.mxu0 0
  %512 = vmatpush1.bf16.msra.mxu0 0
  %513 = vmatprep.subr.bf16.mxu0 0
  %514 = vmatpush1.bf16.msra.mxu0 0
  %515 = vmatprep.subr.bf16.mxu0 0
  %516 = vmatpush1.bf16.msra.mxu0 0
  %517 = vmatprep.subr.bf16.mxu0 0
  %518 = vmatpush1.bf16.msra.mxu0 0
  %519 = vmatprep.subr.bf16.mxu0 0
  %520 = vmatpush1.bf16.msra.mxu0 0
  %521 = vmatprep.subr.bf16.mxu0 0
  %522 = vmatpush1.bf16.msra.mxu0 0
  %523 = vmatprep.subr.bf16.mxu0 0
  %524 = vmatpush1.bf16.msra.mxu0 0
  %525 = vmatprep.subr.bf16.mxu0 0
  %526 = vmatpush1.bf16.msra.mxu0 0
  %527 = vmatprep.subr.bf16.mxu0 0
  %528 = vmatpush1.bf16.msra.mxu0 0
  %529 = vmatprep.subr.bf16.mxu0 0
  %530 = vmatpush1.bf16.msra.mxu0 0
  %531 = vmatprep.subr.bf16.mxu0 0
  %532 = vmatpush1.bf16.msra.mxu0 0
  %533 = vmatprep.subr.bf16.mxu0 0
  %534 = vmatpush1.bf16.msra.mxu0 0
  %535 = vmatprep.mubr.bf16.mxu0 0
  %536 = vmatmul.mubr.bf16.gmra.mrb[0].mxu0 %v498
  %v537 = vpop.f32.mrb[0].mxu0
  %v538 = vadd.f32 0.0, %v537
  %v539 = vpop.f32.mrb[0].mxu0
  %v540 = vpop.f32.mrb[0].mxu0
  %v541 = vadd.f32 0.0, %v540
  %v542 = vpop.f32.mrb[0].mxu0
  %543 = vmatprep.mubr.bf16.mxu0 0
  %544 = vmatmul.mubr.bf16.gmra.mrb[0].mxu0 %v501
  %v545 = vpop.f32.mrb[0].mxu0
  %v546 = vadd.f32 0.0, %v545
  %v547 = vpop.f32.mrb[0].mxu0
  %v548 = vpop.f32.mrb[0].mxu0
  %v549 = vadd.f32 0.0, %v548
  %v550 = vpop.f32.mrb[0].mxu0
  %551 = vdwg.mxu0
  %v560 = vunpack.c.l.b16 %v456
  %v561 = vunpack.c.l.b16 %v457
  %v562 = vunpack.c.l.b16 %v458
  %v563 = vunpack.c.l.b16 %v459
  %v564 = vunpack.c.l.b16 %v460
  %v565 = vunpack.c.l.b16 %v461
  %v566 = vunpack.c.l.b16 %v462
  %v567 = vunpack.c.l.b16 %v463
  %v568 = vpack.c.b16 %v561, %v560
  %v569 = vpack.c.b16 %v563, %v562
  %v570 = vpack.c.b16 %v565, %v564
  %v571 = vpack.c.b16 %v567, %v566
  %v577 = vsel %vm496, %v454, 0
  %v580 = vsel %vm496, %v455, 0
  %582 = vmatprep.subr.bf16.mxu0 0
  %583 = vmatpush1.bf16.msra.mxu0 %v568
  %584 = vmatprep.subr.bf16.mxu0 0
  %585 = vmatpush1.bf16.msra.mxu0 %v569
  %586 = vmatprep.subr.bf16.mxu0 0
  %587 = vmatpush1.bf16.msra.mxu0 %v570
  %588 = vmatprep.subr.bf16.mxu0 0
  %589 = vmatpush1.bf16.msra.mxu0 %v571
  %590 = vmatprep.subr.bf16.mxu0 0
  %591 = vmatpush1.bf16.msra.mxu0 0
  %592 = vmatprep.subr.bf16.mxu0 0
  %593 = vmatpush1.bf16.msra.mxu0 0
  %594 = vmatprep.subr.bf16.mxu0 0
  %595 = vmatpush1.bf16.msra.mxu0 0
  %596 = vmatprep.subr.bf16.mxu0 0
  %597 = vmatpush1.bf16.msra.mxu0 0
  %598 = vmatprep.subr.bf16.mxu0 0
  %599 = vmatpush1.bf16.msra.mxu0 0
  %600 = vmatprep.subr.bf16.mxu0 0
  %601 = vmatpush1.bf16.msra.mxu0 0
  %602 = vmatprep.subr.bf16.mxu0 0
  %603 = vmatpush1.bf16.msra.mxu0 0
  %604 = vmatprep.subr.bf16.mxu0 0
  %605 = vmatpush1.bf16.msra.mxu0 0
  %606 = vmatprep.subr.bf16.mxu0 0
  %607 = vmatpush1.bf16.msra.mxu0 0
  %608 = vmatprep.subr.bf16.mxu0 0
  %609 = vmatpush1.bf16.msra.mxu0 0
  %610 = vmatprep.subr.bf16.mxu0 0
  %611 = vmatpush1.bf16.msra.mxu0 0
  %612 = vmatprep.subr.bf16.mxu0 0
  %613 = vmatpush1.bf16.msra.mxu0 0
  %614 = vmatprep.mubr.bf16.mxu0 0
  %615 = vmatmul.mubr.bf16.gmra.mrb[0].mxu0 %v577
  %v616 = vpop.f32.mrb[0].mxu0
  %v617 = vadd.f32 %v538, %v616
  %v618 = vpop.f32.mrb[0].mxu0
  %v619 = vpop.f32.mrb[0].mxu0
  %v620 = vadd.f32 %v541, %v619
  %v621 = vpop.f32.mrb[0].mxu0
  %622 = vmatprep.mubr.bf16.mxu0 0
  %623 = vmatmul.mubr.bf16.gmra.mrb[0].mxu0 %v580
  %v624 = vpop.f32.mrb[0].mxu0
  %v625 = vadd.f32 %v546, %v624
  %v626 = vpop.f32.mrb[0].mxu0
  %v627 = vpop.f32.mrb[0].mxu0
  %v628 = vadd.f32 %v549, %v627
  %v629 = vpop.f32.mrb[0].mxu0
  %630 = vdwg.mxu0
  %v631 = vld [vmem:[%s10] sm:$0x1]
  %v633 = vlaneseq
  %v634 = vshrl.u32 %v633, 7
  %v635 = vsub.s32 0, %v634
  %v636 = vrot.slane %v631, %v635
  %v638 = vadd.f32 %v617, %v636
  %v639 = vadd.f32 %v620, %v636
  %v640 = vadd.f32 %v625, %v636
  %v641 = vadd.f32 %v628, %v636
  %v642 = vld [vmem:[%s8] sm:$0xf]
  %v643 = vld [vmem:[%s8 + $0x4] sm:$0xf]
  %v644 = vld [vmem:[%s8 + $0x8] sm:$0xf]
  %v645 = vld [vmem:[%s8 + $0xc] sm:$0xf]
  %v646 = vld [vmem:[%s8 + $0x10] sm:$0xf]
  %v647 = vld [vmem:[%s8 + $0x14] sm:$0xf]
  %v648 = vld [vmem:[%s8 + $0x18] sm:$0xf]
  %v649 = vld [vmem:[%s8 + $0x1c] sm:$0xf]
  %v650 = vld [vmem:[%s11] sm:$0x1]
  %v652 = vlaneseq
  %v653 = vshrl.u32 %v652, 7
  %v654 = vsub.s32 0, %v653
  %v655 = vrot.slane %v650, %v654
  %v665 = vunpack.c.l.b16 %v642
  %v666 = vunpack.c.l.b16 %v643
  %v667 = vunpack.c.l.b16 %v644
  %v668 = vunpack.c.l.b16 %v645
  %v669 = vunpack.c.l.b16 %v646
  %v670 = vunpack.c.l.b16 %v647
  %v671 = vunpack.c.l.b16 %v648
  %v672 = vunpack.c.l.b16 %v649
  %v673 = vpack.c.b16 %v666, %v665
  %v674 = vpack.c.b16 %v668, %v667
  %v675 = vpack.c.b16 %v670, %v669
  %v676 = vpack.c.b16 %v672, %v671
  %681 = vmatprep.subr.bf16.mxu0 0
  %682 = vmatpush1.bf16.msra.mxu0 %v673
  %683 = vmatprep.subr.bf16.mxu0 0
  %684 = vmatpush1.bf16.msra.mxu0 %v674
  %685 = vmatprep.subr.bf16.mxu0 0
  %686 = vmatpush1.bf16.msra.mxu0 %v675
  %687 = vmatprep.subr.bf16.mxu0 0
  %688 = vmatpush1.bf16.msra.mxu0 %v676
  %689 = vmatprep.subr.bf16.mxu0 0
  %690 = vmatpush1.bf16.msra.mxu0 0
  %691 = vmatprep.subr.bf16.mxu0 0
  %692 = vmatpush1.bf16.msra.mxu0 0
  %693 = vmatprep.subr.bf16.mxu0 0
  %694 = vmatpush1.bf16.msra.mxu0 0
  %695 = vmatprep.subr.bf16.mxu0 0
  %696 = vmatpush1.bf16.msra.mxu0 0
  %697 = vmatprep.subr.bf16.mxu0 0
  %698 = vmatpush1.bf16.msra.mxu0 0
  %699 = vmatprep.subr.bf16.mxu0 0
  %700 = vmatpush1.bf16.msra.mxu0 0
  %701 = vmatprep.subr.bf16.mxu0 0
  %702 = vmatpush1.bf16.msra.mxu0 0
  %703 = vmatprep.subr.bf16.mxu0 0
  %704 = vmatpush1.bf16.msra.mxu0 0
  %705 = vmatprep.subr.bf16.mxu0 0
  %706 = vmatpush1.bf16.msra.mxu0 0
  %707 = vmatprep.subr.bf16.mxu0 0
  %708 = vmatpush1.bf16.msra.mxu0 0
  %709 = vmatprep.subr.bf16.mxu0 0
  %710 = vmatpush1.bf16.msra.mxu0 0
  %711 = vmatprep.subr.bf16.mxu0 0
  %712 = vmatpush1.bf16.msra.mxu0 0
  %713 = vmatprep.mubr.bf16.mxu0 0
  %714 = vmatmul.mubr.bf16.gmra.mrb[0].mxu0 %v577
  %v715 = vpop.f32.mrb[0].mxu0
  %v716 = vadd.f32 %v655, %v715
  %v717 = vpop.f32.mrb[0].mxu0
  %v718 = vpop.f32.mrb[0].mxu0
  %v719 = vadd.f32 %v655, %v718
  %v720 = vpop.f32.mrb[0].mxu0
  %721 = vmatprep.mubr.bf16.mxu0 0
  %722 = vmatmul.mubr.bf16.gmra.mrb[0].mxu0 %v580
  %v723 = vpop.f32.mrb[0].mxu0
  %v724 = vadd.f32 %v655, %v723
  %v725 = vpop.f32.mrb[0].mxu0
  %v726 = vpop.f32.mrb[0].mxu0
  %v727 = vadd.f32 %v655, %v726
  %v728 = vpop.f32.mrb[0].mxu0
  %729 = vdwg.mxu0
  %v730 = vxor.u32 %v716, 2147483648
  %v731 = vxor.u32 %v719, 2147483648
  %v732 = vxor.u32 %v724, 2147483648
  %v733 = vxor.u32 %v727, 2147483648
  %v734 = vmul.f32 %v730, 1.442695
  %v735 = vpow.pop %v734
  %v736 = vmul.f32 %v731, 1.442695
  %v737 = vpow.pop %v736
  %v738 = vmul.f32 %v732, 1.442695
  %v739 = vpow.pop %v738
  %v740 = vmul.f32 %v733, 1.442695
  %v741 = vpow.pop %v740
  %v742 = vadd.f32 %v735, 1.0
  %v743 = vadd.f32 %v737, 1.0
  %v744 = vadd.f32 %v739, 1.0
  %v745 = vadd.f32 %v741, 1.0
  %v746 = vrcp.pop %v742
  %v747 = vmul.f32 1.0, %v746
  %v748 = vrcp.pop %v743
  %v749 = vmul.f32 1.0, %v748
  %v750 = vrcp.pop %v744
  %v751 = vmul.f32 1.0, %v750
  %v752 = vrcp.pop %v745
  %v753 = vmul.f32 1.0, %v752
  %v754 = vmul.f32 %v638, %v747
  %v755 = vmul.f32 %v639, %v749
  %v756 = vmul.f32 %v640, %v751
  %v757 = vmul.f32 %v641, %v753
  %v758 = vpack.c.bf16 %v755, %v754
  %v759 = vpack.c.bf16 %v757, %v756
  %v760 = vld [vmem:[%s22] sm:$0xf]
  %v761 = vld [vmem:[%s22 + $0x4] sm:$0xf]
  %v762 = vld [vmem:[%s22 + $0x8] sm:$0xf]
  %v763 = vld [vmem:[%s23] sm:$0xf]
  %v764 = vld [vmem:[%s23 + $0x4] sm:$0x3]
  %v765 = vld [vmem:[%s24] sm:$0xf]
  %v766 = vld [vmem:[%s24 + $0x4] sm:$0xf]
  %v767 = vld [vmem:[%s24 + $0x8] sm:$0xf]
  %s768 = sld [smem:[#allocation2]]
  %vm769 = vcmask 1047600
  %770 = vst.msk [vmem:[%s26] sm:$0xff] %vm769, 0.0
  %771 = vst.msk [vmem:[%s26 + $0x8] sm:$0xff] %vm769, 0.0
  %772 = vst.msk [vmem:[%s26 + $0x10] sm:$0xff] %vm769, 0.0
  %773 = vst.msk [vmem:[%s26 + $0x18] sm:$0xff] %vm769, 0.0
  %774 = vrot.lane.b32.xlu0 %v111, 120
  %v775 = vpop.permute.xlu0 %774
  %776 = vrot.lane.b32.xlu0 %v112, 120
  %v777 = vpop.permute.xlu0 %776
  %780 = vmatprep.subr.bf16.mxu0 0
  %781 = vmatpush1.bf16.msra.mxu0 %v775
  %782 = vmatprep.subr.bf16.mxu0 0
  %783 = vmatpush1.bf16.msra.mxu0 %v777
  %784 = vmatprep.subr.bf16.mxu0 0
  %785 = vmatpush1.bf16.msra.mxu0 0
  %786 = vmatprep.subr.bf16.mxu0 0
  %787 = vmatpush1.bf16.msra.mxu0 0
  %788 = vmatprep.subr.bf16.mxu0 0
  %789 = vmatpush1.bf16.msra.mxu0 0
  %790 = vmatprep.subr.bf16.mxu0 0
  %791 = vmatpush1.bf16.msra.mxu0 0
  %792 = vmatprep.subr.bf16.mxu0 0
  %793 = vmatpush1.bf16.msra.mxu0 0
  %794 = vmatprep.subr.bf16.mxu0 0
  %795 = vmatpush1.bf16.msra.mxu0 0
  %796 = vmatprep.subr.bf16.mxu0 0
  %797 = vmatpush1.bf16.msra.mxu0 0
  %798 = vmatprep.subr.bf16.mxu0 0
  %799 = vmatpush1.bf16.msra.mxu0 0
  %800 = vmatprep.subr.bf16.mxu0 0
  %801 = vmatpush1.bf16.msra.mxu0 0
  %802 = vmatprep.subr.bf16.mxu0 0
  %803 = vmatpush1.bf16.msra.mxu0 0
  %804 = vmatprep.subr.bf16.mxu0 0
  %805 = vmatpush1.bf16.msra.mxu0 0
  %806 = vmatprep.subr.bf16.mxu0 0
  %807 = vmatpush1.bf16.msra.mxu0 0
  %808 = vmatprep.subr.bf16.mxu0 0
  %809 = vmatpush1.bf16.msra.mxu0 0
  %810 = vmatprep.subr.bf16.mxu0 0
  %811 = vmatpush1.bf16.msra.mxu0 0
  %812 = vmatprep.mubr.bf16.mxu0 0
  %813 = vmatmul.mubr.bf16.gmra.mrb[0].mxu0 %v117
  %v814 = vpop.f32.mrb[0].mxu0
  %v815 = vadd.f32 0.0, %v814
  %v816 = vpop.f32.mrb[0].mxu0
  %v817 = vpop.f32.mrb[0].mxu0
  %v818 = vadd.f32 0.0, %v817
  %v819 = vpop.f32.mrb[0].mxu0
  %820 = vmatprep.mubr.bf16.mxu0 0
  %821 = vmatmul.mubr.bf16.gmra.mrb[0].mxu0 %v120
  %v822 = vpop.f32.mrb[0].mxu0
  %v823 = vadd.f32 0.0, %v822
  %v824 = vpop.f32.mrb[0].mxu0
  %v825 = vpop.f32.mrb[0].mxu0
  %v826 = vadd.f32 0.0, %v825
  %v827 = vpop.f32.mrb[0].mxu0
  %828 = vdwg.mxu0
  %v829 = vpack.c.bf16 %v818, %v815
  %v830 = vpack.c.bf16 %v826, %v823
  %v831 = vld [vmem:[%s12] sm:$0xf]
  %v832 = vld [vmem:[%s14] sm:$0xf]
  %vm833 = vcmask 64512
  %v835 = vsel %vm833, %v775, 0
  %v838 = vsel %vm833, %v777, 0
  %vm840 = vcmask 1043456
  %v842 = vsel %vm840, %v832, 0
  %844 = vmatprep.subr.bf16.mxu0 0
  %845 = vmatpush1.bf16.msra.mxu0 %v842
  %846 = vmatprep.subr.bf16.mxu0 0
  %847 = vmatpush1.bf16.msra.mxu0 0
  %848 = vmatprep.subr.bf16.mxu0 0
  %849 = vmatpush1.bf16.msra.mxu0 0
  %850 = vmatprep.subr.bf16.mxu0 0
  %851 = vmatpush1.bf16.msra.mxu0 0
  %852 = vmatprep.subr.bf16.mxu0 0
  %853 = vmatpush1.bf16.msra.mxu0 0
  %854 = vmatprep.subr.bf16.mxu0 0
  %855 = vmatpush1.bf16.msra.mxu0 0
  %856 = vmatprep.subr.bf16.mxu0 0
  %857 = vmatpush1.bf16.msra.mxu0 0
  %858 = vmatprep.subr.bf16.mxu0 0
  %859 = vmatpush1.bf16.msra.mxu0 0
  %860 = vmatprep.subr.bf16.mxu0 0
  %861 = vmatpush1.bf16.msra.mxu0 0
  %862 = vmatprep.subr.bf16.mxu0 0
  %863 = vmatpush1.bf16.msra.mxu0 0
  %864 = vmatprep.subr.bf16.mxu0 0
  %865 = vmatpush1.bf16.msra.mxu0 0
  %866 = vmatprep.subr.bf16.mxu0 0
  %867 = vmatpush1.bf16.msra.mxu0 0
  %868 = vmatprep.subr.bf16.mxu0 0
  %869 = vmatpush1.bf16.msra.mxu0 0
  %870 = vmatprep.subr.bf16.mxu0 0
  %871 = vmatpush1.bf16.msra.mxu0 0
  %872 = vmatprep.subr.bf16.mxu0 0
  %873 = vmatpush1.bf16.msra.mxu0 0
  %874 = vmatprep.subr.bf16.mxu0 0
  %875 = vmatpush1.bf16.msra.mxu0 0
  %876 = vmatprep.mubr.bf16.mxu0 0
  %877 = vmatmul.mubr.bf16.gmra.mrb[0].mxu0 %v835
  %v878 = vpop.f32.mrb[0].mxu0
  %v879 = vadd.f32 0.0, %v878
  %v880 = vpop.f32.mrb[0].mxu0
  %v881 = vpop.f32.mrb[0].mxu0
  %v882 = vadd.f32 0.0, %v881
  %v883 = vpop.f32.mrb[0].mxu0
  %884 = vmatprep.mubr.bf16.mxu0 0
  %885 = vmatmul.mubr.bf16.gmra.mrb[0].mxu0 %v838
  %v886 = vpop.f32.mrb[0].mxu0
  %v887 = vadd.f32 0.0, %v886
  %v888 = vpop.f32.mrb[0].mxu0
  %v889 = vpop.f32.mrb[0].mxu0
  %v890 = vadd.f32 0.0, %v889
  %v891 = vpop.f32.mrb[0].mxu0
  %892 = vdwg.mxu0
  %v894 = vsel %vm833, %v829, 0
  %v897 = vsel %vm833, %v830, 0
  %v900 = vsel %vm840, %v831, 0
  %902 = vmatprep.subr.bf16.mxu0 0
  %903 = vmatpush1.bf16.msra.mxu0 %v900
  %904 = vmatprep.subr.bf16.mxu0 0
  %905 = vmatpush1.bf16.msra.mxu0 0
  %906 = vmatprep.subr.bf16.mxu0 0
  %907 = vmatpush1.bf16.msra.mxu0 0
  %908 = vmatprep.subr.bf16.mxu0 0
  %909 = vmatpush1.bf16.msra.mxu0 0
  %910 = vmatprep.subr.bf16.mxu0 0
  %911 = vmatpush1.bf16.msra.mxu0 0
  %912 = vmatprep.subr.bf16.mxu0 0
  %913 = vmatpush1.bf16.msra.mxu0 0
  %914 = vmatprep.subr.bf16.mxu0 0
  %915 = vmatpush1.bf16.msra.mxu0 0
  %916 = vmatprep.subr.bf16.mxu0 0
  %917 = vmatpush1.bf16.msra.mxu0 0
  %918 = vmatprep.subr.bf16.mxu0 0
  %919 = vmatpush1.bf16.msra.mxu0 0
  %920 = vmatprep.subr.bf16.mxu0 0
  %921 = vmatpush1.bf16.msra.mxu0 0
  %922 = vmatprep.subr.bf16.mxu0 0
  %923 = vmatpush1.bf16.msra.mxu0 0
  %924 = vmatprep.subr.bf16.mxu0 0
  %925 = vmatpush1.bf16.msra.mxu0 0
  %926 = vmatprep.subr.bf16.mxu0 0
  %927 = vmatpush1.bf16.msra.mxu0 0
  %928 = vmatprep.subr.bf16.mxu0 0
  %929 = vmatpush1.bf16.msra.mxu0 0
  %930 = vmatprep.subr.bf16.mxu0 0
  %931 = vmatpush1.bf16.msra.mxu0 0
  %932 = vmatprep.subr.bf16.mxu0 0
  %933 = vmatpush1.bf16.msra.mxu0 0
  %934 = vmatprep.mubr.bf16.mxu0 0
  %935 = vmatmul.mubr.bf16.gmra.mrb[0].mxu0 %v894
  %v936 = vpop.f32.mrb[0].mxu0
  %v937 = vadd.f32 %v879, %v936
  %v938 = vpop.f32.mrb[0].mxu0
  %v939 = vpop.f32.mrb[0].mxu0
  %v940 = vadd.f32 %v882, %v939
  %v941 = vpop.f32.mrb[0].mxu0
  %942 = vmatprep.mubr.bf16.mxu0 0
  %943 = vmatmul.mubr.bf16.gmra.mrb[0].mxu0 %v897
  %v944 = vpop.f32.mrb[0].mxu0
  %v945 = vadd.f32 %v887, %v944
  %v946 = vpop.f32.mrb[0].mxu0
  %v947 = vpop.f32.mrb[0].mxu0
  %v948 = vadd.f32 %v890, %v947
  %v949 = vpop.f32.mrb[0].mxu0
  %950 = vdwg.mxu0
  %v951 = vld [vmem:[%s15] sm:$0x1]
  %v953 = vlaneseq
  %v954 = vshrl.u32 %v953, 7
  %v955 = vsub.s32 0, %v954
  %v956 = vrot.slane %v951, %v955
  %v958 = vadd.f32 %v937, %v956
  %v959 = vadd.f32 %v940, %v956
  %v960 = vadd.f32 %v945, %v956
  %v961 = vadd.f32 %v948, %v956
  %v962 = vld [vmem:[%s13] sm:$0xf]
  %v963 = vld [vmem:[%s16] sm:$0x1]
  %v965 = vlaneseq
  %v966 = vshrl.u32 %v965, 7
  %v967 = vsub.s32 0, %v966
  %v968 = vrot.slane %v963, %v967
  %v971 = vsel %vm840, %v962, 0
  %973 = vmatprep.subr.bf16.mxu0 0
  %974 = vmatpush1.bf16.msra.mxu0 %v971
  %975 = vmatprep.subr.bf16.mxu0 0
  %976 = vmatpush1.bf16.msra.mxu0 0
  %977 = vmatprep.subr.bf16.mxu0 0
  %978 = vmatpush1.bf16.msra.mxu0 0
  %979 = vmatprep.subr.bf16.mxu0 0
  %980 = vmatpush1.bf16.msra.mxu0 0
  %981 = vmatprep.subr.bf16.mxu0 0
  %982 = vmatpush1.bf16.msra.mxu0 0
  %983 = vmatprep.subr.bf16.mxu0 0
  %984 = vmatpush1.bf16.msra.mxu0 0
  %985 = vmatprep.subr.bf16.mxu0 0
  %986 = vmatpush1.bf16.msra.mxu0 0
  %987 = vmatprep.subr.bf16.mxu0 0
  %988 = vmatpush1.bf16.msra.mxu0 0
  %989 = vmatprep.subr.bf16.mxu0 0
  %990 = vmatpush1.bf16.msra.mxu0 0
  %991 = vmatprep.subr.bf16.mxu0 0
  %992 = vmatpush1.bf16.msra.mxu0 0
  %993 = vmatprep.subr.bf16.mxu0 0
  %994 = vmatpush1.bf16.msra.mxu0 0
  %995 = vmatprep.subr.bf16.mxu0 0
  %996 = vmatpush1.bf16.msra.mxu0 0
  %997 = vmatprep.subr.bf16.mxu0 0
  %998 = vmatpush1.bf16.msra.mxu0 0
  %999 = vmatprep.subr.bf16.mxu0 0
  %1000 = vmatpush1.bf16.msra.mxu0 0
  %1001 = vmatprep.subr.bf16.mxu0 0
  %1002 = vmatpush1.bf16.msra.mxu0 0
  %1003 = vmatprep.subr.bf16.mxu0 0
  %1004 = vmatpush1.bf16.msra.mxu0 0
  %1005 = vmatprep.mubr.bf16.mxu0 0
  %1006 = vmatmul.mubr.bf16.gmra.mrb[0].mxu0 %v894
  %v1007 = vpop.f32.mrb[0].mxu0
  %v1008 = vadd.f32 %v968, %v1007
  %v1009 = vpop.f32.mrb[0].mxu0
  %v1010 = vpop.f32.mrb[0].mxu0
  %v1011 = vadd.f32 %v968, %v1010
  %v1012 = vpop.f32.mrb[0].mxu0
  %1013 = vmatprep.mubr.bf16.mxu0 0
  %1014 = vmatmul.mubr.bf16.gmra.mrb[0].mxu0 %v897
  %v1015 = vpop.f32.mrb[0].mxu0
  %v1016 = vadd.f32 %v968, %v1015
  %v1017 = vpop.f32.mrb[0].mxu0
  %v1018 = vpop.f32.mrb[0].mxu0
  %v1019 = vadd.f32 %v968, %v1018
  %v1020 = vpop.f32.mrb[0].mxu0
  %1021 = vdwg.mxu0
  %v1022 = vxor.u32 %v1008, 2147483648
  %v1023 = vxor.u32 %v1011, 2147483648
  %v1024 = vxor.u32 %v1016, 2147483648
  %v1025 = vxor.u32 %v1019, 2147483648
  %v1026 = vmul.f32 %v1022, 1.442695
  %v1027 = vpow.pop %v1026
  %v1028 = vmul.f32 %v1023, 1.442695
  %v1029 = vpow.pop %v1028
  %v1030 = vmul.f32 %v1024, 1.442695
  %v1031 = vpow.pop %v1030
  %v1032 = vmul.f32 %v1025, 1.442695
  %v1033 = vpow.pop %v1032
  %v1034 = vadd.f32 %v1027, 1.0
  %v1035 = vadd.f32 %v1029, 1.0
  %v1036 = vadd.f32 %v1031, 1.0
  %v1037 = vadd.f32 %v1033, 1.0
  %v1038 = vrcp.pop %v1034
  %v1039 = vmul.f32 1.0, %v1038
  %v1040 = vrcp.pop %v1035
  %v1041 = vmul.f32 1.0, %v1040
  %v1042 = vrcp.pop %v1036
  %v1043 = vmul.f32 1.0, %v1042
  %v1044 = vrcp.pop %v1037
  %v1045 = vmul.f32 1.0, %v1044
  %v1046 = vmul.f32 %v958, %v1039
  %v1047 = vmul.f32 %v959, %v1041
  %v1048 = vmul.f32 %v960, %v1043
  %v1049 = vmul.f32 %v961, %v1045
  %v1050 = vpack.c.bf16 %v1047, %v1046
  %v1051 = vpack.c.bf16 %v1049, %v1048
  %1052 = vmatprep.subr.bf16.mxu0 0
  %1053 = vmatpush1.bf16.msra.mxu0 %v1050
  %1054 = vmatprep.subr.bf16.mxu0 0
  %1055 = vmatpush1.bf16.msra.mxu0 %v1051
  %1056 = vmatprep.subr.bf16.mxu0 0
  %1057 = vmatpush1.bf16.msra.mxu0 0
  %1058 = vmatprep.subr.bf16.mxu0 0
  %1059 = vmatpush1.bf16.msra.mxu0 0
  %1060 = vmatprep.subr.bf16.mxu0 0
  %1061 = vmatpush1.bf16.msra.mxu0 0
  %1062 = vmatprep.subr.bf16.mxu0 0
  %1063 = vmatpush1.bf16.msra.mxu0 0
  %1064 = vmatprep.subr.bf16.mxu0 0
  %1065 = vmatpush1.bf16.msra.mxu0 0
  %1066 = vmatprep.subr.bf16.mxu0 0
  %1067 = vmatpush1.bf16.msra.mxu0 0
  %1068 = vmatprep.subr.bf16.mxu0 0
  %1069 = vmatpush1.bf16.msra.mxu0 0
  %1070 = vmatprep.subr.bf16.mxu0 0
  %1071 = vmatpush1.bf16.msra.mxu0 0
  %1072 = vmatprep.subr.bf16.mxu0 0
  %1073 = vmatpush1.bf16.msra.mxu0 0
  %1074 = vmatprep.subr.bf16.mxu0 0
  %1075 = vmatpush1.bf16.msra.mxu0 0
  %1076 = vmatprep.subr.bf16.mxu0 0
  %1077 = vmatpush1.bf16.msra.mxu0 0
  %1078 = vmatprep.subr.bf16.mxu0 0
  %1079 = vmatpush1.bf16.msra.mxu0 0
  %1080 = vmatprep.subr.bf16.mxu0 0
  %1081 = vmatpush1.bf16.msra.mxu0 0
  %1082 = vmatprep.subr.bf16.mxu0 0
  %1083 = vmatpush1.bf16.msra.mxu0 0
  %1084 = vmatprep.mubr.bf16.mxu0 0
  %1085 = vmatmul.mubr.bf16.gmra.mrb[0].mxu0 %v117
  %v1086 = vpop.f32.mrb[0].mxu0
  %v1087 = vadd.f32 0.0, %v1086
  %v1088 = vpop.f32.mrb[0].mxu0
  %v1089 = vpop.f32.mrb[0].mxu0
  %v1090 = vadd.f32 0.0, %v1089
  %v1091 = vpop.f32.mrb[0].mxu0
  %1092 = vmatprep.mubr.bf16.mxu0 0
  %1093 = vmatmul.mubr.bf16.gmra.mrb[0].mxu0 %v120
  %v1094 = vpop.f32.mrb[0].mxu0
  %v1095 = vadd.f32 0.0, %v1094
  %v1096 = vpop.f32.mrb[0].mxu0
  %v1097 = vpop.f32.mrb[0].mxu0
  %v1098 = vadd.f32 0.0, %v1097
  %v1099 = vpop.f32.mrb[0].mxu0
  %1100 = vdwg.mxu0
  %v1101 = vpack.c.bf16 %v1090, %v1087
  %v1102 = vpack.c.bf16 %v1098, %v1095
  %v1103 = vld [vmem:[%s17] sm:$0xf]
  %v1104 = vld [vmem:[%s17 + $0x4] sm:$0xf]
  %v1105 = vld [vmem:[%s17 + $0x8] sm:$0xf]
  %v1106 = vld [vmem:[%s17 + $0xc] sm:$0xf]
  %v1107 = vld [vmem:[%s19] sm:$0xf]
  %v1108 = vld [vmem:[%s19 + $0x4] sm:$0xf]
  %v1109 = vld [vmem:[%s19 + $0x8] sm:$0xf]
  %v1110 = vld [vmem:[%s19 + $0xc] sm:$0xf]
  %v1115 = vunpack.c.l.b16 %v1107
  %v1116 = vunpack.c.l.b16 %v1108
  %v1117 = vunpack.c.l.b16 %v1109
  %v1118 = vunpack.c.l.b16 %v1110
  %v1119 = vpack.c.b16 %v1116, %v1115
  %v1120 = vpack.c.b16 %v1118, %v1117
  %v1124 = vsel %vm115, %v1050, 0
  %v1127 = vsel %vm115, %v1051, 0
  %1129 = vmatprep.subr.bf16.mxu0 0
  %1130 = vmatpush1.bf16.msra.mxu0 %v1119
  %1131 = vmatprep.subr.bf16.mxu0 0
  %1132 = vmatpush1.bf16.msra.mxu0 %v1120
  %1133 = vmatprep.subr.bf16.mxu0 0
  %1134 = vmatpush1.bf16.msra.mxu0 0
  %1135 = vmatprep.subr.bf16.mxu0 0
  %1136 = vmatpush1.bf16.msra.mxu0 0
  %1137 = vmatprep.subr.bf16.mxu0 0
  %1138 = vmatpush1.bf16.msra.mxu0 0
  %1139 = vmatprep.subr.bf16.mxu0 0
  %1140 = vmatpush1.bf16.msra.mxu0 0
  %1141 = vmatprep.subr.bf16.mxu0 0
  %1142 = vmatpush1.bf16.msra.mxu0 0
  %1143 = vmatprep.subr.bf16.mxu0 0
  %1144 = vmatpush1.bf16.msra.mxu0 0
  %1145 = vmatprep.subr.bf16.mxu0 0
  %1146 = vmatpush1.bf16.msra.mxu0 0
  %1147 = vmatprep.subr.bf16.mxu0 0
  %1148 = vmatpush1.bf16.msra.mxu0 0
  %1149 = vmatprep.subr.bf16.mxu0 0
  %1150 = vmatpush1.bf16.msra.mxu0 0
  %1151 = vmatprep.subr.bf16.mxu0 0
  %1152 = vmatpush1.bf16.msra.mxu0 0
  %1153 = vmatprep.subr.bf16.mxu0 0
  %1154 = vmatpush1.bf16.msra.mxu0 0
  %1155 = vmatprep.subr.bf16.mxu0 0
  %1156 = vmatpush1.bf16.msra.mxu0 0
  %1157 = vmatprep.subr.bf16.mxu0 0
  %1158 = vmatpush1.bf16.msra.mxu0 0
  %1159 = vmatprep.subr.bf16.mxu0 0
  %1160 = vmatpush1.bf16.msra.mxu0 0
  %1161 = vmatprep.mubr.bf16.mxu0 0
  %1162 = vmatmul.mubr.bf16.gmra.mrb[0].mxu0 %v1124
  %v1163 = vpop.f32.mrb[0].mxu0
  %v1164 = vadd.f32 0.0, %v1163
  %v1165 = vpop.f32.mrb[0].mxu0
  %v1166 = vpop.f32.mrb[0].mxu0
  %v1167 = vadd.f32 0.0, %v1166
  %v1168 = vpop.f32.mrb[0].mxu0
  %1169 = vmatprep.mubr.bf16.mxu0 0
  %1170 = vmatmul.mubr.bf16.gmra.mrb[0].mxu0 %v1127
  %v1171 = vpop.f32.mrb[0].mxu0
  %v1172 = vadd.f32 0.0, %v1171
  %v1173 = vpop.f32.mrb[0].mxu0
  %v1174 = vpop.f32.mrb[0].mxu0
  %v1175 = vadd.f32 0.0, %v1174
  %v1176 = vpop.f32.mrb[0].mxu0
  %1177 = vdwg.mxu0
  %v1182 = vunpack.c.l.b16 %v1103
  %v1183 = vunpack.c.l.b16 %v1104
  %v1184 = vunpack.c.l.b16 %v1105
  %v1185 = vunpack.c.l.b16 %v1106
  %v1186 = vpack.c.b16 %v1183, %v1182
  %v1187 = vpack.c.b16 %v1185, %v1184
  %v1191 = vsel %vm115, %v1101, 0
  %v1194 = vsel %vm115, %v1102, 0
  %1196 = vmatprep.subr.bf16.mxu0 0
  %1197 = vmatpush1.bf16.msra.mxu0 %v1186
  %1198 = vmatprep.subr.bf16.mxu0 0
  %1199 = vmatpush1.bf16.msra.mxu0 %v1187
  %1200 = vmatprep.subr.bf16.mxu0 0
  %1201 = vmatpush1.bf16.msra.mxu0 0
  %1202 = vmatprep.subr.bf16.mxu0 0
  %1203 = vmatpush1.bf16.msra.mxu0 0
  %1204 = vmatprep.subr.bf16.mxu0 0
  %1205 = vmatpush1.bf16.msra.mxu0 0
  %1206 = vmatprep.subr.bf16.mxu0 0
  %1207 = vmatpush1.bf16.msra.mxu0 0
  %1208 = vmatprep.subr.bf16.mxu0 0
  %1209 = vmatpush1.bf16.msra.mxu0 0
  %1210 = vmatprep.subr.bf16.mxu0 0
  %1211 = vmatpush1.bf16.msra.mxu0 0
  %1212 = vmatprep.subr.bf16.mxu0 0
  %1213 = vmatpush1.bf16.msra.mxu0 0
  %1214 = vmatprep.subr.bf16.mxu0 0
  %1215 = vmatpush1.bf16.msra.mxu0 0
  %1216 = vmatprep.subr.bf16.mxu0 0
  %1217 = vmatpush1.bf16.msra.mxu0 0
  %1218 = vmatprep.subr.bf16.mxu0 0
  %1219 = vmatpush1.bf16.msra.mxu0 0
  %1220 = vmatprep.subr.bf16.mxu0 0
  %1221 = vmatpush1.bf16.msra.mxu0 0
  %1222 = vmatprep.subr.bf16.mxu0 0
  %1223 = vmatpush1.bf16.msra.mxu0 0
  %1224 = vmatprep.subr.bf16.mxu0 0
  %1225 = vmatpush1.bf16.msra.mxu0 0
  %1226 = vmatprep.subr.bf16.mxu0 0
  %1227 = vmatpush1.bf16.msra.mxu0 0
  %1228 = vmatprep.mubr.bf16.mxu0 0
  %1229 = vmatmul.mubr.bf16.gmra.mrb[0].mxu0 %v1191
  %v1230 = vpop.f32.mrb[0].mxu0
  %v1231 = vadd.f32 %v1164, %v1230
  %v1232 = vpop.f32.mrb[0].mxu0
  %v1233 = vpop.f32.mrb[0].mxu0
  %v1234 = vadd.f32 %v1167, %v1233
  %v1235 = vpop.f32.mrb[0].mxu0
  %1236 = vmatprep.mubr.bf16.mxu0 0
  %1237 = vmatmul.mubr.bf16.gmra.mrb[0].mxu0 %v1194
  %v1238 = vpop.f32.mrb[0].mxu0
  %v1239 = vadd.f32 %v1172, %v1238
  %v1240 = vpop.f32.mrb[0].mxu0
  %v1241 = vpop.f32.mrb[0].mxu0
  %v1242 = vadd.f32 %v1175, %v1241
  %v1243 = vpop.f32.mrb[0].mxu0
  %1244 = vdwg.mxu0
  %v1245 = vld [vmem:[%s20] sm:$0x1]
  %v1247 = vlaneseq
  %v1248 = vshrl.u32 %v1247, 7
  %v1249 = vsub.s32 0, %v1248
  %v1250 = vrot.slane %v1245, %v1249
  %v1252 = vadd.f32 %v1231, %v1250
  %v1253 = vadd.f32 %v1234, %v1250
  %v1254 = vadd.f32 %v1239, %v1250
  %v1255 = vadd.f32 %v1242, %v1250
  %v1256 = vld [vmem:[%s18] sm:$0xf]
  %v1257 = vld [vmem:[%s18 + $0x4] sm:$0xf]
  %v1258 = vld [vmem:[%s18 + $0x8] sm:$0xf]
  %v1259 = vld [vmem:[%s18 + $0xc] sm:$0xf]
  %v1260 = vld [vmem:[%s21] sm:$0x1]
  %v1262 = vlaneseq
  %v1263 = vshrl.u32 %v1262, 7
  %v1264 = vsub.s32 0, %v1263
  %v1265 = vrot.slane %v1260, %v1264
  %v1271 = vunpack.c.l.b16 %v1256
  %v1272 = vunpack.c.l.b16 %v1257
  %v1273 = vunpack.c.l.b16 %v1258
  %v1274 = vunpack.c.l.b16 %v1259
  %v1275 = vpack.c.b16 %v1272, %v1271
  %v1276 = vpack.c.b16 %v1274, %v1273
  %1279 = vmatprep.subr.bf16.mxu0 0
  %1280 = vmatpush1.bf16.msra.mxu0 %v1275
  %1281 = vmatprep.subr.bf16.mxu0 0
  %1282 = vmatpush1.bf16.msra.mxu0 %v1276
  %1283 = vmatprep.subr.bf16.mxu0 0
  %1284 = vmatpush1.bf16.msra.mxu0 0
  %1285 = vmatprep.subr.bf16.mxu0 0
  %1286 = vmatpush1.bf16.msra.mxu0 0
  %1287 = vmatprep.subr.bf16.mxu0 0
  %1288 = vmatpush1.bf16.msra.mxu0 0
  %1289 = vmatprep.subr.bf16.mxu0 0
  %1290 = vmatpush1.bf16.msra.mxu0 0
  %1291 = vmatprep.subr.bf16.mxu0 0
  %1292 = vmatpush1.bf16.msra.mxu0 0
  %1293 = vmatprep.subr.bf16.mxu0 0
  %1294 = vmatpush1.bf16.msra.mxu0 0
  %1295 = vmatprep.subr.bf16.mxu0 0
  %1296 = vmatpush1.bf16.msra.mxu0 0
  %1297 = vmatprep.subr.bf16.mxu0 0
  %1298 = vmatpush1.bf16.msra.mxu0 0
  %1299 = vmatprep.subr.bf16.mxu0 0
  %1300 = vmatpush1.bf16.msra.mxu0 0
  %1301 = vmatprep.subr.bf16.mxu0 0
  %1302 = vmatpush1.bf16.msra.mxu0 0
  %1303 = vmatprep.subr.bf16.mxu0 0
  %1304 = vmatpush1.bf16.msra.mxu0 0
  %1305 = vmatprep.subr.bf16.mxu0 0
  %1306 = vmatpush1.bf16.msra.mxu0 0
  %1307 = vmatprep.subr.bf16.mxu0 0
  %1308 = vmatpush1.bf16.msra.mxu0 0
  %1309 = vmatprep.subr.bf16.mxu0 0
  %1310 = vmatpush1.bf16.msra.mxu0 0
  %1311 = vmatprep.mubr.bf16.mxu0 0
  %1312 = vmatmul.mubr.bf16.gmra.mrb[0].mxu0 %v1191
  %v1313 = vpop.f32.mrb[0].mxu0
  %v1314 = vadd.f32 %v1265, %v1313
  %v1315 = vpop.f32.mrb[0].mxu0
  %v1316 = vpop.f32.mrb[0].mxu0
  %v1317 = vadd.f32 %v1265, %v1316
  %v1318 = vpop.f32.mrb[0].mxu0
  %1319 = vmatprep.mubr.bf16.mxu0 0
  %1320 = vmatmul.mubr.bf16.gmra.mrb[0].mxu0 %v1194
  %v1321 = vpop.f32.mrb[0].mxu0
  %v1322 = vadd.f32 %v1265, %v1321
  %v1323 = vpop.f32.mrb[0].mxu0
  %v1324 = vpop.f32.mrb[0].mxu0
  %v1325 = vadd.f32 %v1265, %v1324
  %v1326 = vpop.f32.mrb[0].mxu0
  %1327 = vdwg.mxu0
  %v1328 = vxor.u32 %v1314, 2147483648
  %v1329 = vxor.u32 %v1317, 2147483648
  %v1330 = vxor.u32 %v1322, 2147483648
  %v1331 = vxor.u32 %v1325, 2147483648
  %v1332 = vmul.f32 %v1328, 1.442695
  %v1333 = vpow.pop %v1332
  %v1334 = vmul.f32 %v1329, 1.442695
  %v1335 = vpow.pop %v1334
  %v1336 = vmul.f32 %v1330, 1.442695
  %v1337 = vpow.pop %v1336
  %v1338 = vmul.f32 %v1331, 1.442695
  %v1339 = vpow.pop %v1338
  %v1340 = vadd.f32 %v1333, 1.0
  %v1341 = vadd.f32 %v1335, 1.0
  %v1342 = vadd.f32 %v1337, 1.0
  %v1343 = vadd.f32 %v1339, 1.0
  %v1344 = vrcp.pop %v1340
  %v1345 = vmul.f32 1.0, %v1344
  %v1346 = vrcp.pop %v1341
  %v1347 = vmul.f32 1.0, %v1346
  %v1348 = vrcp.pop %v1342
  %v1349 = vmul.f32 1.0, %v1348
  %v1350 = vrcp.pop %v1343
  %v1351 = vmul.f32 1.0, %v1350
  %v1352 = vmul.f32 %v1252, %v1345
  %v1353 = vmul.f32 %v1253, %v1347
  %v1354 = vmul.f32 %v1254, %v1349
  %v1355 = vmul.f32 %v1255, %v1351
  %v1356 = vpack.c.bf16 %v1353, %v1352
  %v1357 = vpack.c.bf16 %v1355, %v1354
  %1360 = vrot.lane.b32.xlu0 %v1356, 16
  %v1361 = vpop.permute.xlu0 %1360
  %1362 = vrot.lane.b32.xlu0 %v1357, 16
  %v1363 = vpop.permute.xlu0 %1362
  %v1366 = vsel %vm183, %v758, %v1361
  %v1370 = vsel %vm183, %v759, %v1363
  %v1372 = vstv %s768
  %v1376 = vunpack.c.l.b16 %v760
  %v1377 = vunpack.c.l.b16 %v761
  %v1378 = vunpack.c.l.b16 %v762
  %v1379 = vpack.c.b16 %v1377, %v1376
  %v1380 = vpack.c.b16 %v1378, %v1378
  %vm1382 = vcmask 195584
  %v1383 = vsel %vm1382, %v1366, 0
  %v1385 = vsel %vm1382, %v1370, 0
  %v1388 = vsel %vm840, %v1380, 0
  %1390 = vmatprep.subr.bf16.mxu0 0
  %1391 = vmatpush1.bf16.msra.mxu0 %v1379
  %1392 = vmatprep.subr.bf16.mxu0 0
  %1393 = vmatpush1.bf16.msra.mxu0 %v1388
  %1394 = vmatprep.subr.bf16.mxu0 0
  %1395 = vmatpush1.bf16.msra.mxu0 0
  %1396 = vmatprep.subr.bf16.mxu0 0
  %1397 = vmatpush1.bf16.msra.mxu0 0
  %1398 = vmatprep.subr.bf16.mxu0 0
  %1399 = vmatpush1.bf16.msra.mxu0 0
  %1400 = vmatprep.subr.bf16.mxu0 0
  %1401 = vmatpush1.bf16.msra.mxu0 0
  %1402 = vmatprep.subr.bf16.mxu0 0
  %1403 = vmatpush1.bf16.msra.mxu0 0
  %1404 = vmatprep.subr.bf16.mxu0 0
  %1405 = vmatpush1.bf16.msra.mxu0 0
  %1406 = vmatprep.subr.bf16.mxu0 0
  %1407 = vmatpush1.bf16.msra.mxu0 0
  %1408 = vmatprep.subr.bf16.mxu0 0
  %1409 = vmatpush1.bf16.msra.mxu0 0
  %1410 = vmatprep.subr.bf16.mxu0 0
  %1411 = vmatpush1.bf16.msra.mxu0 0
  %1412 = vmatprep.subr.bf16.mxu0 0
  %1413 = vmatpush1.bf16.msra.mxu0 0
  %1414 = vmatprep.subr.bf16.mxu0 0
  %1415 = vmatpush1.bf16.msra.mxu0 0
  %1416 = vmatprep.subr.bf16.mxu0 0
  %1417 = vmatpush1.bf16.msra.mxu0 0
  %1418 = vmatprep.subr.bf16.mxu0 0
  %1419 = vmatpush1.bf16.msra.mxu0 0
  %1420 = vmatprep.subr.bf16.mxu0 0
  %1421 = vmatpush1.bf16.msra.mxu0 0
  %1422 = vmatprep.mubr.bf16.mxu0 0
  %1423 = vmatmul.mubr.bf16.gmra.mrb[0].mxu0 %v1383
  %v1424 = vpop.f32.mrb[0].mxu0
  %v1425 = vadd.f32 %v1372, %v1424
  %v1426 = vpop.f32.mrb[0].mxu0
  %v1427 = vpop.f32.mrb[0].mxu0
  %v1428 = vadd.f32 %v1372, %v1427
  %v1429 = vpop.f32.mrb[0].mxu0
  %1430 = vmatprep.mubr.bf16.mxu0 0
  %1431 = vmatmul.mubr.bf16.gmra.mrb[0].mxu0 %v1385
  %v1432 = vpop.f32.mrb[0].mxu0
  %v1433 = vadd.f32 %v1372, %v1432
  %v1434 = vpop.f32.mrb[0].mxu0
  %v1435 = vpop.f32.mrb[0].mxu0
  %v1436 = vadd.f32 %v1372, %v1435
  %v1437 = vpop.f32.mrb[0].mxu0
  %1438 = vdwg.mxu0
  %v1439 = vtanh.pop %v1425
  %v1440 = vtanh.pop %v1428
  %v1441 = vtanh.pop %v1433
  %v1442 = vtanh.pop %v1436
  %vm1443 = vcmask 97280
  %v1444 = vsel %vm1443, %v1439, -inf
  %1445 = vmax.xlane.f32.xlu0 %v1444
  %v1446 = vpop.xlane.xlu0 %1445
  %v1447 = vsel %vm1443, %v1440, -inf
  %1448 = vmax.xlane.f32.xlu0 %v1447
  %v1449 = vpop.xlane.xlu0 %1448
  %v1450 = vsel %vm1443, %v1441, -inf
  %1451 = vmax.xlane.f32.xlu0 %v1450
  %v1452 = vpop.xlane.xlu0 %1451
  %v1453 = vsel %vm1443, %v1442, -inf
  %1454 = vmax.xlane.f32.xlu0 %v1453
  %v1455 = vpop.xlane.xlu0 %1454
  %v1456 = vsub.f32 %v1439, %v1446
  %v1457 = vsub.f32 %v1440, %v1449
  %v1458 = vsub.f32 %v1441, %v1452
  %v1459 = vsub.f32 %v1442, %v1455
  %v1460 = vmul.f32 %v1456, 1.442695
  %v1461 = vpow.pop %v1460
  %v1462 = vmul.f32 %v1457, 1.442695
  %v1463 = vpow.pop %v1462
  %v1464 = vmul.f32 %v1458, 1.442695
  %v1465 = vpow.pop %v1464
  %v1466 = vmul.f32 %v1459, 1.442695
  %v1467 = vpow.pop %v1466
  %v1468 = vsel %vm1443, %v1461, 0.0
  %1469 = vadd.xlane.f32.xlu0 %v1468
  %v1470 = vpop.xlane.xlu0 %1469
  %v1471 = vsel %vm1443, %v1463, 0.0
  %1472 = vadd.xlane.f32.xlu0 %v1471
  %v1473 = vpop.xlane.xlu0 %1472
  %v1474 = vsel %vm1443, %v1465, 0.0
  %1475 = vadd.xlane.f32.xlu0 %v1474
  %v1476 = vpop.xlane.xlu0 %1475
  %v1477 = vsel %vm1443, %v1467, 0.0
  %1478 = vadd.xlane.f32.xlu0 %v1477
  %v1479 = vpop.xlane.xlu0 %1478
  %v1480 = vrcp.pop %v1470
  %v1481 = vrcp.pop %v1473
  %v1482 = vrcp.pop %v1476
  %v1483 = vrcp.pop %v1479
  %v1484 = vmul.f32 %v1461, %v1480
  %v1485 = vmul.f32 %v1463, %v1481
  %v1486 = vmul.f32 %v1465, %v1482
  %v1487 = vmul.f32 %v1467, %v1483
  %v1488 = vpack.c.bf16 %v1485, %v1484
  %v1489 = vpack.c.bf16 %v1487, %v1486
  %v1492 = vunpack.c.l.b16 %v763
  %v1493 = vunpack.c.l.b16 %v764
  %v1494 = vpack.c.b16 %v1493, %v1492
  %v1496 = vsel %vm1443, %v1488, 0
  %v1499 = vsel %vm1443, %v1489, 0
  %vm1501 = vcmask 1045504
  %v1503 = vsel %vm1501, %v1494, 0
  %1505 = vmatprep.subr.bf16.mxu0 0
  %1506 = vmatpush1.bf16.msra.mxu0 %v1503
  %1507 = vmatprep.subr.bf16.mxu0 0
  %1508 = vmatpush1.bf16.msra.mxu0 0
  %1509 = vmatprep.subr.bf16.mxu0 0
  %1510 = vmatpush1.bf16.msra.mxu0 0
  %1511 = vmatprep.subr.bf16.mxu0 0
  %1512 = vmatpush1.bf16.msra.mxu0 0
  %1513 = vmatprep.subr.bf16.mxu0 0
  %1514 = vmatpush1.bf16.msra.mxu0 0
  %1515 = vmatprep.subr.bf16.mxu0 0
  %1516 = vmatpush1.bf16.msra.mxu0 0
  %1517 = vmatprep.subr.bf16.mxu0 0
  %1518 = vmatpush1.bf16.msra.mxu0 0
  %1519 = vmatprep.subr.bf16.mxu0 0
  %1520 = vmatpush1.bf16.msra.mxu0 0
  %1521 = vmatprep.subr.bf16.mxu0 0
  %1522 = vmatpush1.bf16.msra.mxu0 0
  %1523 = vmatprep.subr.bf16.mxu0 0
  %1524 = vmatpush1.bf16.msra.mxu0 0
  %1525 = vmatprep.subr.bf16.mxu0 0
  %1526 = vmatpush1.bf16.msra.mxu0 0
  %1527 = vmatprep.subr.bf16.mxu0 0
  %1528 = vmatpush1.bf16.msra.mxu0 0
  %1529 = vmatprep.subr.bf16.mxu0 0
  %1530 = vmatpush1.bf16.msra.mxu0 0
  %1531 = vmatprep.subr.bf16.mxu0 0
  %1532 = vmatpush1.bf16.msra.mxu0 0
  %1533 = vmatprep.subr.bf16.mxu0 0
  %1534 = vmatpush1.bf16.msra.mxu0 0
  %1535 = vmatprep.subr.bf16.mxu0 0
  %1536 = vmatpush1.bf16.msra.mxu0 0
  %1537 = vmatprep.mubr.bf16.mxu0 0
  %1538 = vmatmul.mubr.bf16.gmra.mrb[0].mxu0 %v1496
  %v1539 = vpop.f32.mrb[0].mxu0
  %v1540 = vadd.f32 0.0, %v1539
  %v1541 = vpop.f32.mrb[0].mxu0
  %v1542 = vpop.f32.mrb[0].mxu0
  %v1543 = vadd.f32 0.0, %v1542
  %v1544 = vpop.f32.mrb[0].mxu0
  %1545 = vmatprep.mubr.bf16.mxu0 0
  %1546 = vmatmul.mubr.bf16.gmra.mrb[0].mxu0 %v1499
  %v1547 = vpop.f32.mrb[0].mxu0
  %v1548 = vadd.f32 0.0, %v1547
  %v1549 = vpop.f32.mrb[0].mxu0
  %v1550 = vpop.f32.mrb[0].mxu0
  %v1551 = vadd.f32 0.0, %v1550
  %v1552 = vpop.f32.mrb[0].mxu0
  %1553 = vdwg.mxu0
  %v1554 = vunpack.c.l.bf16 %v1366
  %v1555 = vunpack.c.h.bf16 %v1366
  %v1556 = vunpack.c.l.bf16 %v1370
  %v1557 = vunpack.c.h.bf16 %v1370
  %v1558 = vmul.f32 %v1540, %v1554
  %v1559 = vmul.f32 %v1543, %v1555
  %v1560 = vmul.f32 %v1548, %v1556
  %v1561 = vmul.f32 %v1551, %v1557
  %v1562 = vpack.c.bf16 %v1559, %v1558
  %v1563 = vpack.c.bf16 %v1561, %v1560
  %v1567 = vunpack.c.l.b16 %v765
  %v1568 = vunpack.c.l.b16 %v766
  %v1569 = vunpack.c.l.b16 %v767
  %v1570 = vpack.c.b16 %v1568, %v1567
  %v1571 = vpack.c.b16 %v1569, %v1569
  %v1574 = vsel %vm1382, %v1562, 0
  %v1577 = vsel %vm1382, %v1563, 0
  %v1580 = vsel %vm840, %v1571, 0
  %1582 = vmatprep.subr.bf16.mxu0 0
  %1583 = vmatpush1.bf16.msra.mxu0 %v1570
  %1584 = vmatprep.subr.bf16.mxu0 0
  %1585 = vmatpush1.bf16.msra.mxu0 %v1580
  %1586 = vmatprep.subr.bf16.mxu0 0
  %1587 = vmatpush1.bf16.msra.mxu0 0
  %1588 = vmatprep.subr.bf16.mxu0 0
  %1589 = vmatpush1.bf16.msra.mxu0 0
  %1590 = vmatprep.subr.bf16.mxu0 0
  %1591 = vmatpush1.bf16.msra.mxu0 0
  %1592 = vmatprep.subr.bf16.mxu0 0
  %1593 = vmatpush1.bf16.msra.mxu0 0
  %1594 = vmatprep.subr.bf16.mxu0 0
  %1595 = vmatpush1.bf16.msra.mxu0 0
  %1596 = vmatprep.subr.bf16.mxu0 0
  %1597 = vmatpush1.bf16.msra.mxu0 0
  %1598 = vmatprep.subr.bf16.mxu0 0
  %1599 = vmatpush1.bf16.msra.mxu0 0
  %1600 = vmatprep.subr.bf16.mxu0 0
  %1601 = vmatpush1.bf16.msra.mxu0 0
  %1602 = vmatprep.subr.bf16.mxu0 0
  %1603 = vmatpush1.bf16.msra.mxu0 0
  %1604 = vmatprep.subr.bf16.mxu0 0
  %1605 = vmatpush1.bf16.msra.mxu0 0
  %1606 = vmatprep.subr.bf16.mxu0 0
  %1607 = vmatpush1.bf16.msra.mxu0 0
  %1608 = vmatprep.subr.bf16.mxu0 0
  %1609 = vmatpush1.bf16.msra.mxu0 0
  %1610 = vmatprep.subr.bf16.mxu0 0
  %1611 = vmatpush1.bf16.msra.mxu0 0
  %1612 = vmatprep.subr.bf16.mxu0 0
  %1613 = vmatpush1.bf16.msra.mxu0 0
  %1614 = vmatprep.mubr.bf16.mxu0 0
  %1615 = vmatmul.mubr.bf16.gmra.mrb[0].mxu0 %v1574
  %v1616 = vpop.f32.mrb[0].mxu0
  %v1617 = vadd.f32 0.0, %v1616
  %v1618 = vpop.f32.mrb[0].mxu0
  %v1619 = vpop.f32.mrb[0].mxu0
  %v1620 = vadd.f32 0.0, %v1619
  %v1621 = vpop.f32.mrb[0].mxu0
  %1622 = vmatprep.mubr.bf16.mxu0 0
  %1623 = vmatmul.mubr.bf16.gmra.mrb[0].mxu0 %v1577
  %v1624 = vpop.f32.mrb[0].mxu0
  %v1625 = vadd.f32 0.0, %v1624
  %v1626 = vpop.f32.mrb[0].mxu0
  %v1627 = vpop.f32.mrb[0].mxu0
  %v1628 = vadd.f32 0.0, %v1627
  %v1629 = vpop.f32.mrb[0].mxu0
  %1630 = vdwg.mxu0
  %vm1631 = vcmask 15360
  %1632 = vst.msk [vmem:[%s26] sm:$0xff] %vm1631, %v1617
  %1633 = vst.msk [vmem:[%s26 + $0x8] sm:$0xff] %vm1631, %v1620
  %1634 = vst.msk [vmem:[%s26 + $0x10] sm:$0xff] %vm1631, %v1625
  %1635 = vst.msk [vmem:[%s26 + $0x18] sm:$0xff] %vm1631, %v1628
  %v1636 = vpack.c.bf16 %v1620, %v1617
  %v1637 = vpack.c.bf16 %v1628, %v1625
  %1638 = vrot.lane.b32.xlu0 %v111, 118
  %v1639 = vpop.permute.xlu0 %1638
  %1640 = vrot.lane.b32.xlu0 %v112, 118
  %v1641 = vpop.permute.xlu0 %1640
  %1644 = vrot.lane.b32.xlu0 %v1636, 6
  %v1645 = vpop.permute.xlu0 %1644
  %1646 = vrot.lane.b32.xlu0 %v1637, 6
  %v1647 = vpop.permute.xlu0 %1646
  %vm1648 = vcmask 48128
  %v1651 = vsel %vm1648, %v1639, %v1645
  %v1655 = vsel %vm1648, %v1641, %v1647
  %1657 = vmatprep.subr.bf16.mxu0 0
  %1658 = vmatpush1.bf16.msra.mxu0 %v1651
  %1659 = vmatprep.subr.bf16.mxu0 0
  %1660 = vmatpush1.bf16.msra.mxu0 %v1655
  %1661 = vmatprep.subr.bf16.mxu0 0
  %1662 = vmatpush1.bf16.msra.mxu0 0
  %1663 = vmatprep.subr.bf16.mxu0 0
  %1664 = vmatpush1.bf16.msra.mxu0 0
  %1665 = vmatprep.subr.bf16.mxu0 0
  %1666 = vmatpush1.bf16.msra.mxu0 0
  %1667 = vmatprep.subr.bf16.mxu0 0
  %1668 = vmatpush1.bf16.msra.mxu0 0
  %1669 = vmatprep.subr.bf16.mxu0 0
  %1670 = vmatpush1.bf16.msra.mxu0 0
  %1671 = vmatprep.subr.bf16.mxu0 0
  %1672 = vmatpush1.bf16.msra.mxu0 0
  %1673 = vmatprep.subr.bf16.mxu0 0
  %1674 = vmatpush1.bf16.msra.mxu0 0
  %1675 = vmatprep.subr.bf16.mxu0 0
  %1676 = vmatpush1.bf16.msra.mxu0 0
  %1677 = vmatprep.subr.bf16.mxu0 0
  %1678 = vmatpush1.bf16.msra.mxu0 0
  %1679 = vmatprep.subr.bf16.mxu0 0
  %1680 = vmatpush1.bf16.msra.mxu0 0
  %1681 = vmatprep.subr.bf16.mxu0 0
  %1682 = vmatpush1.bf16.msra.mxu0 0
  %1683 = vmatprep.subr.bf16.mxu0 0
  %1684 = vmatpush1.bf16.msra.mxu0 0
  %1685 = vmatprep.subr.bf16.mxu0 0
  %1686 = vmatpush1.bf16.msra.mxu0 0
  %1687 = vmatprep.subr.bf16.mxu0 0
  %1688 = vmatpush1.bf16.msra.mxu0 0
  %1689 = vmatprep.mubr.bf16.mxu0 0
  %1690 = vmatmul.mubr.bf16.gmra.mrb[0].mxu0 %v117
  %v1691 = vpop.f32.mrb[0].mxu0
  %v1692 = vadd.f32 0.0, %v1691
  %v1693 = vpop.f32.mrb[0].mxu0
  %v1694 = vpop.f32.mrb[0].mxu0
  %v1695 = vadd.f32 0.0, %v1694
  %v1696 = vpop.f32.mrb[0].mxu0
  %1697 = vmatprep.mubr.bf16.mxu0 0
  %1698 = vmatmul.mubr.bf16.gmra.mrb[0].mxu0 %v120
  %v1699 = vpop.f32.mrb[0].mxu0
  %v1700 = vadd.f32 0.0, %v1699
  %v1701 = vpop.f32.mrb[0].mxu0
  %v1702 = vpop.f32.mrb[0].mxu0
  %v1703 = vadd.f32 0.0, %v1702
  %v1704 = vpop.f32.mrb[0].mxu0
  %1705 = vdwg.mxu0
  %v1706 = vpack.c.bf16 %v1695, %v1692
  %v1707 = vpack.c.bf16 %v1703, %v1700
  %v1708 = vld [vmem:[%s12] sm:$0xf]
  %v1709 = vld [vmem:[%s14] sm:$0xf]
  %v1710 = vsel %vm833, %v1651, 0
  %v1712 = vsel %vm833, %v1655, 0
  %v1715 = vsel %vm840, %v1709, 0
  %1717 = vmatprep.subr.bf16.mxu0 0
  %1718 = vmatpush1.bf16.msra.mxu0 %v1715
  %1719 = vmatprep.subr.bf16.mxu0 0
  %1720 = vmatpush1.bf16.msra.mxu0 0
  %1721 = vmatprep.subr.bf16.mxu0 0
  %1722 = vmatpush1.bf16.msra.mxu0 0
  %1723 = vmatprep.subr.bf16.mxu0 0
  %1724 = vmatpush1.bf16.msra.mxu0 0
  %1725 = vmatprep.subr.bf16.mxu0 0
  %1726 = vmatpush1.bf16.msra.mxu0 0
  %1727 = vmatprep.subr.bf16.mxu0 0
  %1728 = vmatpush1.bf16.msra.mxu0 0
  %1729 = vmatprep.subr.bf16.mxu0 0
  %1730 = vmatpush1.bf16.msra.mxu0 0
  %1731 = vmatprep.subr.bf16.mxu0 0
  %1732 = vmatpush1.bf16.msra.mxu0 0
  %1733 = vmatprep.subr.bf16.mxu0 0
  %1734 = vmatpush1.bf16.msra.mxu0 0
  %1735 = vmatprep.subr.bf16.mxu0 0
  %1736 = vmatpush1.bf16.msra.mxu0 0
  %1737 = vmatprep.subr.bf16.mxu0 0
  %1738 = vmatpush1.bf16.msra.mxu0 0
  %1739 = vmatprep.subr.bf16.mxu0 0
  %1740 = vmatpush1.bf16.msra.mxu0 0
  %1741 = vmatprep.subr.bf16.mxu0 0
  %1742 = vmatpush1.bf16.msra.mxu0 0
  %1743 = vmatprep.subr.bf16.mxu0 0
  %1744 = vmatpush1.bf16.msra.mxu0 0
  %1745 = vmatprep.subr.bf16.mxu0 0
  %1746 = vmatpush1.bf16.msra.mxu0 0
  %1747 = vmatprep.subr.bf16.mxu0 0
  %1748 = vmatpush1.bf16.msra.mxu0 0
  %1749 = vmatprep.mubr.bf16.mxu0 0
  %1750 = vmatmul.mubr.bf16.gmra.mrb[0].mxu0 %v1710
  %v1751 = vpop.f32.mrb[0].mxu0
  %v1752 = vadd.f32 0.0, %v1751
  %v1753 = vpop.f32.mrb[0].mxu0
  %v1754 = vpop.f32.mrb[0].mxu0
  %v1755 = vadd.f32 0.0, %v1754
  %v1756 = vpop.f32.mrb[0].mxu0
  %1757 = vmatprep.mubr.bf16.mxu0 0
  %1758 = vmatmul.mubr.bf16.gmra.mrb[0].mxu0 %v1712
  %v1759 = vpop.f32.mrb[0].mxu0
  %v1760 = vadd.f32 0.0, %v1759
  %v1761 = vpop.f32.mrb[0].mxu0
  %v1762 = vpop.f32.mrb[0].mxu0
  %v1763 = vadd.f32 0.0, %v1762
  %v1764 = vpop.f32.mrb[0].mxu0
  %1765 = vdwg.mxu0
  %v1767 = vsel %vm833, %v1706, 0
  %v1770 = vsel %vm833, %v1707, 0
  %v1773 = vsel %vm840, %v1708, 0
  %1775 = vmatprep.subr.bf16.mxu0 0
  %1776 = vmatpush1.bf16.msra.mxu0 %v1773
  %1777 = vmatprep.subr.bf16.mxu0 0
  %1778 = vmatpush1.bf16.msra.mxu0 0
  %1779 = vmatprep.subr.bf16.mxu0 0
  %1780 = vmatpush1.bf16.msra.mxu0 0
  %1781 = vmatprep.subr.bf16.mxu0 0
  %1782 = vmatpush1.bf16.msra.mxu0 0
  %1783 = vmatprep.subr.bf16.mxu0 0
  %1784 = vmatpush1.bf16.msra.mxu0 0
  %1785 = vmatprep.subr.bf16.mxu0 0
  %1786 = vmatpush1.bf16.msra.mxu0 0
  %1787 = vmatprep.subr.bf16.mxu0 0
  %1788 = vmatpush1.bf16.msra.mxu0 0
  %1789 = vmatprep.subr.bf16.mxu0 0
  %1790 = vmatpush1.bf16.msra.mxu0 0
  %1791 = vmatprep.subr.bf16.mxu0 0
  %1792 = vmatpush1.bf16.msra.mxu0 0
  %1793 = vmatprep.subr.bf16.mxu0 0
  %1794 = vmatpush1.bf16.msra.mxu0 0
  %1795 = vmatprep.subr.bf16.mxu0 0
  %1796 = vmatpush1.bf16.msra.mxu0 0
  %1797 = vmatprep.subr.bf16.mxu0 0
  %1798 = vmatpush1.bf16.msra.mxu0 0
  %1799 = vmatprep.subr.bf16.mxu0 0
  %1800 = vmatpush1.bf16.msra.mxu0 0
  %1801 = vmatprep.subr.bf16.mxu0 0
  %1802 = vmatpush1.bf16.msra.mxu0 0
  %1803 = vmatprep.subr.bf16.mxu0 0
  %1804 = vmatpush1.bf16.msra.mxu0 0
  %1805 = vmatprep.subr.bf16.mxu0 0
  %1806 = vmatpush1.bf16.msra.mxu0 0
  %1807 = vmatprep.mubr.bf16.mxu0 0
  %1808 = vmatmul.mubr.bf16.gmra.mrb[0].mxu0 %v1767
  %v1809 = vpop.f32.mrb[0].mxu0
  %v1810 = vadd.f32 %v1752, %v1809
  %v1811 = vpop.f32.mrb[0].mxu0
  %v1812 = vpop.f32.mrb[0].mxu0
  %v1813 = vadd.f32 %v1755, %v1812
  %v1814 = vpop.f32.mrb[0].mxu0
  %1815 = vmatprep.mubr.bf16.mxu0 0
  %1816 = vmatmul.mubr.bf16.gmra.mrb[0].mxu0 %v1770
  %v1817 = vpop.f32.mrb[0].mxu0
  %v1818 = vadd.f32 %v1760, %v1817
  %v1819 = vpop.f32.mrb[0].mxu0
  %v1820 = vpop.f32.mrb[0].mxu0
  %v1821 = vadd.f32 %v1763, %v1820
  %v1822 = vpop.f32.mrb[0].mxu0
  %1823 = vdwg.mxu0
  %v1824 = vld [vmem:[%s15] sm:$0x1]
  %v1826 = vlaneseq
  %v1827 = vshrl.u32 %v1826, 7
  %v1828 = vsub.s32 0, %v1827
  %v1829 = vrot.slane %v1824, %v1828
  %v1831 = vadd.f32 %v1810, %v1829
  %v1832 = vadd.f32 %v1813, %v1829
  %v1833 = vadd.f32 %v1818, %v1829
  %v1834 = vadd.f32 %v1821, %v1829
  %v1835 = vld [vmem:[%s13] sm:$0xf]
  %v1836 = vld [vmem:[%s16] sm:$0x1]
  %v1838 = vlaneseq
  %v1839 = vshrl.u32 %v1838, 7
  %v1840 = vsub.s32 0, %v1839
  %v1841 = vrot.slane %v1836, %v1840
  %v1844 = vsel %vm840, %v1835, 0
  %1846 = vmatprep.subr.bf16.mxu0 0
  %1847 = vmatpush1.bf16.msra.mxu0 %v1844
  %1848 = vmatprep.subr.bf16.mxu0 0
  %1849 = vmatpush1.bf16.msra.mxu0 0
  %1850 = vmatprep.subr.bf16.mxu0 0
  %1851 = vmatpush1.bf16.msra.mxu0 0
  %1852 = vmatprep.subr.bf16.mxu0 0
  %1853 = vmatpush1.bf16.msra.mxu0 0
  %1854 = vmatprep.subr.bf16.mxu0 0
  %1855 = vmatpush1.bf16.msra.mxu0 0
  %1856 = vmatprep.subr.bf16.mxu0 0
  %1857 = vmatpush1.bf16.msra.mxu0 0
  %1858 = vmatprep.subr.bf16.mxu0 0
  %1859 = vmatpush1.bf16.msra.mxu0 0
  %1860 = vmatprep.subr.bf16.mxu0 0
  %1861 = vmatpush1.bf16.msra.mxu0 0
  %1862 = vmatprep.subr.bf16.mxu0 0
  %1863 = vmatpush1.bf16.msra.mxu0 0
  %1864 = vmatprep.subr.bf16.mxu0 0
  %1865 = vmatpush1.bf16.msra.mxu0 0
  %1866 = vmatprep.subr.bf16.mxu0 0
  %1867 = vmatpush1.bf16.msra.mxu0 0
  %1868 = vmatprep.subr.bf16.mxu0 0
  %1869 = vmatpush1.bf16.msra.mxu0 0
  %1870 = vmatprep.subr.bf16.mxu0 0
  %1871 = vmatpush1.bf16.msra.mxu0 0
  %1872 = vmatprep.subr.bf16.mxu0 0
  %1873 = vmatpush1.bf16.msra.mxu0 0
  %1874 = vmatprep.subr.bf16.mxu0 0
  %1875 = vmatpush1.bf16.msra.mxu0 0
  %1876 = vmatprep.subr.bf16.mxu0 0
  %1877 = vmatpush1.bf16.msra.mxu0 0
  %1878 = vmatprep.mubr.bf16.mxu0 0
  %1879 = vmatmul.mubr.bf16.gmra.mrb[0].mxu0 %v1767
  %v1880 = vpop.f32.mrb[0].mxu0
  %v1881 = vadd.f32 %v1841, %v1880
  %v1882 = vpop.f32.mrb[0].mxu0
  %v1883 = vpop.f32.mrb[0].mxu0
  %v1884 = vadd.f32 %v1841, %v1883
  %v1885 = vpop.f32.mrb[0].mxu0
  %1886 = vmatprep.mubr.bf16.mxu0 0
  %1887 = vmatmul.mubr.bf16.gmra.mrb[0].mxu0 %v1770
  %v1888 = vpop.f32.mrb[0].mxu0
  %v1889 = vadd.f32 %v1841, %v1888
  %v1890 = vpop.f32.mrb[0].mxu0
  %v1891 = vpop.f32.mrb[0].mxu0
  %v1892 = vadd.f32 %v1841, %v1891
  %v1893 = vpop.f32.mrb[0].mxu0
  %1894 = vdwg.mxu0
  %v1895 = vxor.u32 %v1881, 2147483648
  %v1896 = vxor.u32 %v1884, 2147483648
  %v1897 = vxor.u32 %v1889, 2147483648
  %v1898 = vxor.u32 %v1892, 2147483648
  %v1899 = vmul.f32 %v1895, 1.442695
  %v1900 = vpow.pop %v1899
  %v1901 = vmul.f32 %v1896, 1.442695
  %v1902 = vpow.pop %v1901
  %v1903 = vmul.f32 %v1897, 1.442695
  %v1904 = vpow.pop %v1903
  %v1905 = vmul.f32 %v1898, 1.442695
  %v1906 = vpow.pop %v1905
  %v1907 = vadd.f32 %v1900, 1.0
  %v1908 = vadd.f32 %v1902, 1.0
  %v1909 = vadd.f32 %v1904, 1.0
  %v1910 = vadd.f32 %v1906, 1.0
  %v1911 = vrcp.pop %v1907
  %v1912 = vmul.f32 1.0, %v1911
  %v1913 = vrcp.pop %v1908
  %v1914 = vmul.f32 1.0, %v1913
  %v1915 = vrcp.pop %v1909
  %v1916 = vmul.f32 1.0, %v1915
  %v1917 = vrcp.pop %v1910
  %v1918 = vmul.f32 1.0, %v1917
  %v1919 = vmul.f32 %v1831, %v1912
  %v1920 = vmul.f32 %v1832, %v1914
  %v1921 = vmul.f32 %v1833, %v1916
  %v1922 = vmul.f32 %v1834, %v1918
  %v1923 = vpack.c.bf16 %v1920, %v1919
  %v1924 = vpack.c.bf16 %v1922, %v1921
  %1925 = vmatprep.subr.bf16.mxu0 0
  %1926 = vmatpush1.bf16.msra.mxu0 %v1923
  %1927 = vmatprep.subr.bf16.mxu0 0
  %1928 = vmatpush1.bf16.msra.mxu0 %v1924
  %1929 = vmatprep.subr.bf16.mxu0 0
  %1930 = vmatpush1.bf16.msra.mxu0 0
  %1931 = vmatprep.subr.bf16.mxu0 0
  %1932 = vmatpush1.bf16.msra.mxu0 0
  %1933 = vmatprep.subr.bf16.mxu0 0
  %1934 = vmatpush1.bf16.msra.mxu0 0
  %1935 = vmatprep.subr.bf16.mxu0 0
  %1936 = vmatpush1.bf16.msra.mxu0 0
  %1937 = vmatprep.subr.bf16.mxu0 0
  %1938 = vmatpush1.bf16.msra.mxu0 0
  %1939 = vmatprep.subr.bf16.mxu0 0
  %1940 = vmatpush1.bf16.msra.mxu0 0
  %1941 = vmatprep.subr.bf16.mxu0 0
  %1942 = vmatpush1.bf16.msra.mxu0 0
  %1943 = vmatprep.subr.bf16.mxu0 0
  %1944 = vmatpush1.bf16.msra.mxu0 0
  %1945 = vmatprep.subr.bf16.mxu0 0
  %1946 = vmatpush1.bf16.msra.mxu0 0
  %1947 = vmatprep.subr.bf16.mxu0 0
  %1948 = vmatpush1.bf16.msra.mxu0 0
  %1949 = vmatprep.subr.bf16.mxu0 0
  %1950 = vmatpush1.bf16.msra.mxu0 0
  %1951 = vmatprep.subr.bf16.mxu0 0
  %1952 = vmatpush1.bf16.msra.mxu0 0
  %1953 = vmatprep.subr.bf16.mxu0 0
  %1954 = vmatpush1.bf16.msra.mxu0 0
  %1955 = vmatprep.subr.bf16.mxu0 0
  %1956 = vmatpush1.bf16.msra.mxu0 0
  %1957 = vmatprep.mubr.bf16.mxu0 0
  %1958 = vmatmul.mubr.bf16.gmra.mrb[0].mxu0 %v117
  %v1959 = vpop.f32.mrb[0].mxu0
  %v1960 = vadd.f32 0.0, %v1959
  %v1961 = vpop.f32.mrb[0].mxu0
  %v1962 = vpop.f32.mrb[0].mxu0
  %v1963 = vadd.f32 0.0, %v1962
  %v1964 = vpop.f32.mrb[0].mxu0
  %1965 = vmatprep.mubr.bf16.mxu0 0
  %1966 = vmatmul.mubr.bf16.gmra.mrb[0].mxu0 %v120
  %v1967 = vpop.f32.mrb[0].mxu0
  %v1968 = vadd.f32 0.0, %v1967
  %v1969 = vpop.f32.mrb[0].mxu0
  %v1970 = vpop.f32.mrb[0].mxu0
  %v1971 = vadd.f32 0.0, %v1970
  %v1972 = vpop.f32.mrb[0].mxu0
  %1973 = vdwg.mxu0
  %v1974 = vpack.c.bf16 %v1963, %v1960
  %v1975 = vpack.c.bf16 %v1971, %v1968
  %v1976 = vld [vmem:[%s17] sm:$0xf]
  %v1977 = vld [vmem:[%s17 + $0x4] sm:$0xf]
  %v1978 = vld [vmem:[%s17 + $0x8] sm:$0xf]
  %v1979 = vld [vmem:[%s17 + $0xc] sm:$0xf]
  %v1980 = vld [vmem:[%s19] sm:$0xf]
  %v1981 = vld [vmem:[%s19 + $0x4] sm:$0xf]
  %v1982 = vld [vmem:[%s19 + $0x8] sm:$0xf]
  %v1983 = vld [vmem:[%s19 + $0xc] sm:$0xf]
  %v1988 = vunpack.c.l.b16 %v1980
  %v1989 = vunpack.c.l.b16 %v1981
  %v1990 = vunpack.c.l.b16 %v1982
  %v1991 = vunpack.c.l.b16 %v1983
  %v1992 = vpack.c.b16 %v1989, %v1988
  %v1993 = vpack.c.b16 %v1991, %v1990
  %v1997 = vsel %vm115, %v1923, 0
  %v2000 = vsel %vm115, %v1924, 0
  %2002 = vmatprep.subr.bf16.mxu0 0
  %2003 = vmatpush1.bf16.msra.mxu0 %v1992
  %2004 = vmatprep.subr.bf16.mxu0 0
  %2005 = vmatpush1.bf16.msra.mxu0 %v1993
  %2006 = vmatprep.subr.bf16.mxu0 0
  %2007 = vmatpush1.bf16.msra.mxu0 0
  %2008 = vmatprep.subr.bf16.mxu0 0
  %2009 = vmatpush1.bf16.msra.mxu0 0
  %2010 = vmatprep.subr.bf16.mxu0 0
  %2011 = vmatpush1.bf16.msra.mxu0 0
  %2012 = vmatprep.subr.bf16.mxu0 0
  %2013 = vmatpush1.bf16.msra.mxu0 0
  %2014 = vmatprep.subr.bf16.mxu0 0
  %2015 = vmatpush1.bf16.msra.mxu0 0
  %2016 = vmatprep.subr.bf16.mxu0 0
  %2017 = vmatpush1.bf16.msra.mxu0 0
  %2018 = vmatprep.subr.bf16.mxu0 0
  %2019 = vmatpush1.bf16.msra.mxu0 0
  %2020 = vmatprep.subr.bf16.mxu0 0
  %2021 = vmatpush1.bf16.msra.mxu0 0
  %2022 = vmatprep.subr.bf16.mxu0 0
  %2023 = vmatpush1.bf16.msra.mxu0 0
  %2024 = vmatprep.subr.bf16.mxu0 0
  %2025 = vmatpush1.bf16.msra.mxu0 0
  %2026 = vmatprep.subr.bf16.mxu0 0
  %2027 = vmatpush1.bf16.msra.mxu0 0
  %2028 = vmatprep.subr.bf16.mxu0 0
  %2029 = vmatpush1.bf16.msra.mxu0 0
  %2030 = vmatprep.subr.bf16.mxu0 0
  %2031 = vmatpush1.bf16.msra.mxu0 0
  %2032 = vmatprep.subr.bf16.mxu0 0
  %2033 = vmatpush1.bf16.msra.mxu0 0
  %2034 = vmatprep.mubr.bf16.mxu0 0
  %2035 = vmatmul.mubr.bf16.gmra.mrb[0].mxu0 %v1997
  %v2036 = vpop.f32.mrb[0].mxu0
  %v2037 = vadd.f32 0.0, %v2036
  %v2038 = vpop.f32.mrb[0].mxu0
  %v2039 = vpop.f32.mrb[0].mxu0
  %v2040 = vadd.f32 0.0, %v2039
  %v2041 = vpop.f32.mrb[0].mxu0
  %2042 = vmatprep.mubr.bf16.mxu0 0
  %2043 = vmatmul.mubr.bf16.gmra.mrb[0].mxu0 %v2000
  %v2044 = vpop.f32.mrb[0].mxu0
  %v2045 = vadd.f32 0.0, %v2044
  %v2046 = vpop.f32.mrb[0].mxu0
  %v2047 = vpop.f32.mrb[0].mxu0
  %v2048 = vadd.f32 0.0, %v2047
  %v2049 = vpop.f32.mrb[0].mxu0
  %2050 = vdwg.mxu0
  %v2055 = vunpack.c.l.b16 %v1976
  %v2056 = vunpack.c.l.b16 %v1977
  %v2057 = vunpack.c.l.b16 %v1978
  %v2058 = vunpack.c.l.b16 %v1979
  %v2059 = vpack.c.b16 %v2056, %v2055
  %v2060 = vpack.c.b16 %v2058, %v2057
  %v2064 = vsel %vm115, %v1974, 0
  %v2067 = vsel %vm115, %v1975, 0
  %2069 = vmatprep.subr.bf16.mxu0 0
  %2070 = vmatpush1.bf16.msra.mxu0 %v2059
  %2071 = vmatprep.subr.bf16.mxu0 0
  %2072 = vmatpush1.bf16.msra.mxu0 %v2060
  %2073 = vmatprep.subr.bf16.mxu0 0
  %2074 = vmatpush1.bf16.msra.mxu0 0
  %2075 = vmatprep.subr.bf16.mxu0 0
  %2076 = vmatpush1.bf16.msra.mxu0 0
  %2077 = vmatprep.subr.bf16.mxu0 0
  %2078 = vmatpush1.bf16.msra.mxu0 0
  %2079 = vmatprep.subr.bf16.mxu0 0
  %2080 = vmatpush1.bf16.msra.mxu0 0
  %2081 = vmatprep.subr.bf16.mxu0 0
  %2082 = vmatpush1.bf16.msra.mxu0 0
  %2083 = vmatprep.subr.bf16.mxu0 0
  %2084 = vmatpush1.bf16.msra.mxu0 0
  %2085 = vmatprep.subr.bf16.mxu0 0
  %2086 = vmatpush1.bf16.msra.mxu0 0
  %2087 = vmatprep.subr.bf16.mxu0 0
  %2088 = vmatpush1.bf16.msra.mxu0 0
  %2089 = vmatprep.subr.bf16.mxu0 0
  %2090 = vmatpush1.bf16.msra.mxu0 0
  %2091 = vmatprep.subr.bf16.mxu0 0
  %2092 = vmatpush1.bf16.msra.mxu0 0
  %2093 = vmatprep.subr.bf16.mxu0 0
  %2094 = vmatpush1.bf16.msra.mxu0 0
  %2095 = vmatprep.subr.bf16.mxu0 0
  %2096 = vmatpush1.bf16.msra.mxu0 0
  %2097 = vmatprep.subr.bf16.mxu0 0
  %2098 = vmatpush1.bf16.msra.mxu0 0
  %2099 = vmatprep.subr.bf16.mxu0 0
  %2100 = vmatpush1.bf16.msra.mxu0 0
  %2101 = vmatprep.mubr.bf16.mxu0 0
  %2102 = vmatmul.mubr.bf16.gmra.mrb[0].mxu0 %v2064
  %v2103 = vpop.f32.mrb[0].mxu0
  %v2104 = vadd.f32 %v2037, %v2103
  %v2105 = vpop.f32.mrb[0].mxu0
  %v2106 = vpop.f32.mrb[0].mxu0
  %v2107 = vadd.f32 %v2040, %v2106
  %v2108 = vpop.f32.mrb[0].mxu0
  %2109 = vmatprep.mubr.bf16.mxu0 0
  %2110 = vmatmul.mubr.bf16.gmra.mrb[0].mxu0 %v2067
  %v2111 = vpop.f32.mrb[0].mxu0
  %v2112 = vadd.f32 %v2045, %v2111
  %v2113 = vpop.f32.mrb[0].mxu0
  %v2114 = vpop.f32.mrb[0].mxu0
  %v2115 = vadd.f32 %v2048, %v2114
  %v2116 = vpop.f32.mrb[0].mxu0
  %2117 = vdwg.mxu0
  %v2118 = vld [vmem:[%s20] sm:$0x1]
  %v2120 = vlaneseq
  %v2121 = vshrl.u32 %v2120, 7
  %v2122 = vsub.s32 0, %v2121
  %v2123 = vrot.slane %v2118, %v2122
  %v2125 = vadd.f32 %v2104, %v2123
  %v2126 = vadd.f32 %v2107, %v2123
  %v2127 = vadd.f32 %v2112, %v2123
  %v2128 = vadd.f32 %v2115, %v2123
  %v2129 = vld [vmem:[%s18] sm:$0xf]
  %v2130 = vld [vmem:[%s18 + $0x4] sm:$0xf]
  %v2131 = vld [vmem:[%s18 + $0x8] sm:$0xf]
  %v2132 = vld [vmem:[%s18 + $0xc] sm:$0xf]
  %v2133 = vld [vmem:[%s21] sm:$0x1]
  %v2135 = vlaneseq
  %v2136 = vshrl.u32 %v2135, 7
  %v2137 = vsub.s32 0, %v2136
  %v2138 = vrot.slane %v2133, %v2137
  %v2144 = vunpack.c.l.b16 %v2129
  %v2145 = vunpack.c.l.b16 %v2130
  %v2146 = vunpack.c.l.b16 %v2131
  %v2147 = vunpack.c.l.b16 %v2132
  %v2148 = vpack.c.b16 %v2145, %v2144
  %v2149 = vpack.c.b16 %v2147, %v2146
  %2152 = vmatprep.subr.bf16.mxu0 0
  %2153 = vmatpush1.bf16.msra.mxu0 %v2148
  %2154 = vmatprep.subr.bf16.mxu0 0
  %2155 = vmatpush1.bf16.msra.mxu0 %v2149
  %2156 = vmatprep.subr.bf16.mxu0 0
  %2157 = vmatpush1.bf16.msra.mxu0 0
  %2158 = vmatprep.subr.bf16.mxu0 0
  %2159 = vmatpush1.bf16.msra.mxu0 0
  %2160 = vmatprep.subr.bf16.mxu0 0
  %2161 = vmatpush1.bf16.msra.mxu0 0
  %2162 = vmatprep.subr.bf16.mxu0 0
  %2163 = vmatpush1.bf16.msra.mxu0 0
  %2164 = vmatprep.subr.bf16.mxu0 0
  %2165 = vmatpush1.bf16.msra.mxu0 0
  %2166 = vmatprep.subr.bf16.mxu0 0
  %2167 = vmatpush1.bf16.msra.mxu0 0
  %2168 = vmatprep.subr.bf16.mxu0 0
  %2169 = vmatpush1.bf16.msra.mxu0 0
  %2170 = vmatprep.subr.bf16.mxu0 0
  %2171 = vmatpush1.bf16.msra.mxu0 0
  %2172 = vmatprep.subr.bf16.mxu0 0
  %2173 = vmatpush1.bf16.msra.mxu0 0
  %2174 = vmatprep.subr.bf16.mxu0 0
  %2175 = vmatpush1.bf16.msra.mxu0 0
  %2176 = vmatprep.subr.bf16.mxu0 0
  %2177 = vmatpush1.bf16.msra.mxu0 0
  %2178 = vmatprep.subr.bf16.mxu0 0
  %2179 = vmatpush1.bf16.msra.mxu0 0
  %2180 = vmatprep.subr.bf16.mxu0 0
  %2181 = vmatpush1.bf16.msra.mxu0 0
  %2182 = vmatprep.subr.bf16.mxu0 0
  %2183 = vmatpush1.bf16.msra.mxu0 0
  %2184 = vmatprep.mubr.bf16.mxu0 0
  %2185 = vmatmul.mubr.bf16.gmra.mrb[0].mxu0 %v2064
  %v2186 = vpop.f32.mrb[0].mxu0
  %v2187 = vadd.f32 %v2138, %v2186
  %v2188 = vpop.f32.mrb[0].mxu0
  %v2189 = vpop.f32.mrb[0].mxu0
  %v2190 = vadd.f32 %v2138, %v2189
  %v2191 = vpop.f32.mrb[0].mxu0
  %2192 = vmatprep.mubr.bf16.mxu0 0
  %2193 = vmatmul.mubr.bf16.gmra.mrb[0].mxu0 %v2067
  %v2194 = vpop.f32.mrb[0].mxu0
  %v2195 = vadd.f32 %v2138, %v2194
  %v2196 = vpop.f32.mrb[0].mxu0
  %v2197 = vpop.f32.mrb[0].mxu0
  %v2198 = vadd.f32 %v2138, %v2197
  %v2199 = vpop.f32.mrb[0].mxu0
  %2200 = vdwg.mxu0
  %v2201 = vxor.u32 %v2187, 2147483648
  %v2202 = vxor.u32 %v2190, 2147483648
  %v2203 = vxor.u32 %v2195, 2147483648
  %v2204 = vxor.u32 %v2198, 2147483648
  %v2205 = vmul.f32 %v2201, 1.442695
  %v2206 = vpow.pop %v2205
  %v2207 = vmul.f32 %v2202, 1.442695
  %v2208 = vpow.pop %v2207
  %v2209 = vmul.f32 %v2203, 1.442695
  %v2210 = vpow.pop %v2209
  %v2211 = vmul.f32 %v2204, 1.442695
  %v2212 = vpow.pop %v2211
  %v2213 = vadd.f32 %v2206, 1.0
  %v2214 = vadd.f32 %v2208, 1.0
  %v2215 = vadd.f32 %v2210, 1.0
  %v2216 = vadd.f32 %v2212, 1.0
  %v2217 = vrcp.pop %v2213
  %v2218 = vmul.f32 1.0, %v2217
  %v2219 = vrcp.pop %v2214
  %v2220 = vmul.f32 1.0, %v2219
  %v2221 = vrcp.pop %v2215
  %v2222 = vmul.f32 1.0, %v2221
  %v2223 = vrcp.pop %v2216
  %v2224 = vmul.f32 1.0, %v2223
  %v2225 = vmul.f32 %v2125, %v2218
  %v2226 = vmul.f32 %v2126, %v2220
  %v2227 = vmul.f32 %v2127, %v2222
  %v2228 = vmul.f32 %v2128, %v2224
  %v2229 = vpack.c.bf16 %v2226, %v2225
  %v2230 = vpack.c.bf16 %v2228, %v2227
  %2233 = vrot.lane.b32.xlu0 %v2229, 16
  %v2234 = vpop.permute.xlu0 %2233
  %2235 = vrot.lane.b32.xlu0 %v2230, 16
  %v2236 = vpop.permute.xlu0 %2235
  %v2238 = vsel %vm183, %v758, %v2234
  %v2241 = vsel %vm183, %v759, %v2236
  %v2243 = vsel %vm1382, %v2238, 0
  %v2245 = vsel %vm1382, %v2241, 0
  %2247 = vmatprep.subr.bf16.mxu0 0
  %2248 = vmatpush1.bf16.msra.mxu0 %v1379
  %2249 = vmatprep.subr.bf16.mxu0 0
  %2250 = vmatpush1.bf16.msra.mxu0 %v1388
  %2251 = vmatprep.subr.bf16.mxu0 0
  %2252 = vmatpush1.bf16.msra.mxu0 0
  %2253 = vmatprep.subr.bf16.mxu0 0
  %2254 = vmatpush1.bf16.msra.mxu0 0
  %2255 = vmatprep.subr.bf16.mxu0 0
  %2256 = vmatpush1.bf16.msra.mxu0 0
  %2257 = vmatprep.subr.bf16.mxu0 0
  %2258 = vmatpush1.bf16.msra.mxu0 0
  %2259 = vmatprep.subr.bf16.mxu0 0
  %2260 = vmatpush1.bf16.msra.mxu0 0
  %2261 = vmatprep.subr.bf16.mxu0 0
  %2262 = vmatpush1.bf16.msra.mxu0 0
  %2263 = vmatprep.subr.bf16.mxu0 0
  %2264 = vmatpush1.bf16.msra.mxu0 0
  %2265 = vmatprep.subr.bf16.mxu0 0
  %2266 = vmatpush1.bf16.msra.mxu0 0
  %2267 = vmatprep.subr.bf16.mxu0 0
  %2268 = vmatpush1.bf16.msra.mxu0 0
  %2269 = vmatprep.subr.bf16.mxu0 0
  %2270 = vmatpush1.bf16.msra.mxu0 0
  %2271 = vmatprep.subr.bf16.mxu0 0
  %2272 = vmatpush1.bf16.msra.mxu0 0
  %2273 = vmatprep.subr.bf16.mxu0 0
  %2274 = vmatpush1.bf16.msra.mxu0 0
  %2275 = vmatprep.subr.bf16.mxu0 0
  %2276 = vmatpush1.bf16.msra.mxu0 0
  %2277 = vmatprep.subr.bf16.mxu0 0
  %2278 = vmatpush1.bf16.msra.mxu0 0
  %2279 = vmatprep.mubr.bf16.mxu0 0
  %2280 = vmatmul.mubr.bf16.gmra.mrb[0].mxu0 %v2243
  %v2281 = vpop.f32.mrb[0].mxu0
  %v2282 = vadd.f32 %v1372, %v2281
  %v2283 = vpop.f32.mrb[0].mxu0
  %v2284 = vpop.f32.mrb[0].mxu0
  %v2285 = vadd.f32 %v1372, %v2284
  %v2286 = vpop.f32.mrb[0].mxu0
  %2287 = vmatprep.mubr.bf16.mxu0 0
  %2288 = vmatmul.mubr.bf16.gmra.mrb[0].mxu0 %v2245
  %v2289 = vpop.f32.mrb[0].mxu0
  %v2290 = vadd.f32 %v1372, %v2289
  %v2291 = vpop.f32.mrb[0].mxu0
  %v2292 = vpop.f32.mrb[0].mxu0
  %v2293 = vadd.f32 %v1372, %v2292
  %v2294 = vpop.f32.mrb[0].mxu0
  %2295 = vdwg.mxu0
  %v2296 = vtanh.pop %v2282
  %v2297 = vtanh.pop %v2285
  %v2298 = vtanh.pop %v2290
  %v2299 = vtanh.pop %v2293
  %v2300 = vsel %vm1443, %v2296, -inf
  %2301 = vmax.xlane.f32.xlu0 %v2300
  %v2302 = vpop.xlane.xlu0 %2301
  %v2303 = vsel %vm1443, %v2297, -inf
  %2304 = vmax.xlane.f32.xlu0 %v2303
  %v2305 = vpop.xlane.xlu0 %2304
  %v2306 = vsel %vm1443, %v2298, -inf
  %2307 = vmax.xlane.f32.xlu0 %v2306
  %v2308 = vpop.xlane.xlu0 %2307
  %v2309 = vsel %vm1443, %v2299, -inf
  %2310 = vmax.xlane.f32.xlu0 %v2309
  %v2311 = vpop.xlane.xlu0 %2310
  %v2312 = vsub.f32 %v2296, %v2302
  %v2313 = vsub.f32 %v2297, %v2305
  %v2314 = vsub.f32 %v2298, %v2308
  %v2315 = vsub.f32 %v2299, %v2311
  %v2316 = vmul.f32 %v2312, 1.442695
  %v2317 = vpow.pop %v2316
  %v2318 = vmul.f32 %v2313, 1.442695
  %v2319 = vpow.pop %v2318
  %v2320 = vmul.f32 %v2314, 1.442695
  %v2321 = vpow.pop %v2320
  %v2322 = vmul.f32 %v2315, 1.442695
  %v2323 = vpow.pop %v2322
  %v2324 = vsel %vm1443, %v2317, 0.0
  %2325 = vadd.xlane.f32.xlu0 %v2324
  %v2326 = vpop.xlane.xlu0 %2325
  %v2327 = vsel %vm1443, %v2319, 0.0
  %2328 = vadd.xlane.f32.xlu0 %v2327
  %v2329 = vpop.xlane.xlu0 %2328
  %v2330 = vsel %vm1443, %v2321, 0.0
  %2331 = vadd.xlane.f32.xlu0 %v2330
  %v2332 = vpop.xlane.xlu0 %2331
  %v2333 = vsel %vm1443, %v2323, 0.0
  %2334 = vadd.xlane.f32.xlu0 %v2333
  %v2335 = vpop.xlane.xlu0 %2334
  %v2336 = vrcp.pop %v2326
  %v2337 = vrcp.pop %v2329
  %v2338 = vrcp.pop %v2332
  %v2339 = vrcp.pop %v2335
  %v2340 = vmul.f32 %v2317, %v2336
  %v2341 = vmul.f32 %v2319, %v2337
  %v2342 = vmul.f32 %v2321, %v2338
  %v2343 = vmul.f32 %v2323, %v2339
  %v2344 = vpack.c.bf16 %v2341, %v2340
  %v2345 = vpack.c.bf16 %v2343, %v2342
  %v2347 = vsel %vm1443, %v2344, 0
  %v2350 = vsel %vm1443, %v2345, 0
  %2352 = vmatprep.subr.bf16.mxu0 0
  %2353 = vmatpush1.bf16.msra.mxu0 %v1503
  %2354 = vmatprep.subr.bf16.mxu0 0
  %2355 = vmatpush1.bf16.msra.mxu0 0
  %2356 = vmatprep.subr.bf16.mxu0 0
  %2357 = vmatpush1.bf16.msra.mxu0 0
  %2358 = vmatprep.subr.bf16.mxu0 0
  %2359 = vmatpush1.bf16.msra.mxu0 0
  %2360 = vmatprep.subr.bf16.mxu0 0
  %2361 = vmatpush1.bf16.msra.mxu0 0
  %2362 = vmatprep.subr.bf16.mxu0 0
  %2363 = vmatpush1.bf16.msra.mxu0 0
  %2364 = vmatprep.subr.bf16.mxu0 0
  %2365 = vmatpush1.bf16.msra.mxu0 0
  %2366 = vmatprep.subr.bf16.mxu0 0
  %2367 = vmatpush1.bf16.msra.mxu0 0
  %2368 = vmatprep.subr.bf16.mxu0 0
  %2369 = vmatpush1.bf16.msra.mxu0 0
  %2370 = vmatprep.subr.bf16.mxu0 0
  %2371 = vmatpush1.bf16.msra.mxu0 0
  %2372 = vmatprep.subr.bf16.mxu0 0
  %2373 = vmatpush1.bf16.msra.mxu0 0
  %2374 = vmatprep.subr.bf16.mxu0 0
  %2375 = vmatpush1.bf16.msra.mxu0 0
  %2376 = vmatprep.subr.bf16.mxu0 0
  %2377 = vmatpush1.bf16.msra.mxu0 0
  %2378 = vmatprep.subr.bf16.mxu0 0
  %2379 = vmatpush1.bf16.msra.mxu0 0
  %2380 = vmatprep.subr.bf16.mxu0 0
  %2381 = vmatpush1.bf16.msra.mxu0 0
  %2382 = vmatprep.subr.bf16.mxu0 0
  %2383 = vmatpush1.bf16.msra.mxu0 0
  %2384 = vmatprep.mubr.bf16.mxu0 0
  %2385 = vmatmul.mubr.bf16.gmra.mrb[0].mxu0 %v2347
  %v2386 = vpop.f32.mrb[0].mxu0
  %v2387 = vadd.f32 0.0, %v2386
  %v2388 = vpop.f32.mrb[0].mxu0
  %v2389 = vpop.f32.mrb[0].mxu0
  %v2390 = vadd.f32 0.0, %v2389
  %v2391 = vpop.f32.mrb[0].mxu0
  %2392 = vmatprep.mubr.bf16.mxu0 0
  %2393 = vmatmul.mubr.bf16.gmra.mrb[0].mxu0 %v2350
  %v2394 = vpop.f32.mrb[0].mxu0
  %v2395 = vadd.f32 0.0, %v2394
  %v2396 = vpop.f32.mrb[0].mxu0
  %v2397 = vpop.f32.mrb[0].mxu0
  %v2398 = vadd.f32 0.0, %v2397
  %v2399 = vpop.f32.mrb[0].mxu0
  %2400 = vdwg.mxu0
  %v2401 = vunpack.c.l.bf16 %v2238
  %v2402 = vunpack.c.h.bf16 %v2238
  %v2403 = vunpack.c.l.bf16 %v2241
  %v2404 = vunpack.c.h.bf16 %v2241
  %v2405 = vmul.f32 %v2387, %v2401
  %v2406 = vmul.f32 %v2390, %v2402
  %v2407 = vmul.f32 %v2395, %v2403
  %v2408 = vmul.f32 %v2398, %v2404
  %v2409 = vpack.c.bf16 %v2406, %v2405
  %v2410 = vpack.c.bf16 %v2408, %v2407
  %v2412 = vsel %vm1382, %v2409, 0
  %v2415 = vsel %vm1382, %v2410, 0
  %2417 = vmatprep.subr.bf16.mxu0 0
  %2418 = vmatpush1.bf16.msra.mxu0 %v1570
  %2419 = vmatprep.subr.bf16.mxu0 0
  %2420 = vmatpush1.bf16.msra.mxu0 %v1580
  %2421 = vmatprep.subr.bf16.mxu0 0
  %2422 = vmatpush1.bf16.msra.mxu0 0
  %2423 = vmatprep.subr.bf16.mxu0 0
  %2424 = vmatpush1.bf16.msra.mxu0 0
  %2425 = vmatprep.subr.bf16.mxu0 0
  %2426 = vmatpush1.bf16.msra.mxu0 0
  %2427 = vmatprep.subr.bf16.mxu0 0
  %2428 = vmatpush1.bf16.msra.mxu0 0
  %2429 = vmatprep.subr.bf16.mxu0 0
  %2430 = vmatpush1.bf16.msra.mxu0 0
  %2431 = vmatprep.subr.bf16.mxu0 0
  %2432 = vmatpush1.bf16.msra.mxu0 0
  %2433 = vmatprep.subr.bf16.mxu0 0
  %2434 = vmatpush1.bf16.msra.mxu0 0
  %2435 = vmatprep.subr.bf16.mxu0 0
  %2436 = vmatpush1.bf16.msra.mxu0 0
  %2437 = vmatprep.subr.bf16.mxu0 0
  %2438 = vmatpush1.bf16.msra.mxu0 0
  %2439 = vmatprep.subr.bf16.mxu0 0
  %2440 = vmatpush1.bf16.msra.mxu0 0
  %2441 = vmatprep.subr.bf16.mxu0 0
  %2442 = vmatpush1.bf16.msra.mxu0 0
  %2443 = vmatprep.subr.bf16.mxu0 0
  %2444 = vmatpush1.bf16.msra.mxu0 0
  %2445 = vmatprep.subr.bf16.mxu0 0
  %2446 = vmatpush1.bf16.msra.mxu0 0
  %2447 = vmatprep.subr.bf16.mxu0 0
  %2448 = vmatpush1.bf16.msra.mxu0 0
  %2449 = vmatprep.mubr.bf16.mxu0 0
  %2450 = vmatmul.mubr.bf16.gmra.mrb[0].mxu0 %v2412
  %v2451 = vpop.f32.mrb[0].mxu0
  %v2452 = vadd.f32 0.0, %v2451
  %v2453 = vpop.f32.mrb[0].mxu0
  %v2454 = vpop.f32.mrb[0].mxu0
  %v2455 = vadd.f32 0.0, %v2454
  %v2456 = vpop.f32.mrb[0].mxu0
  %2457 = vmatprep.mubr.bf16.mxu0 0
  %2458 = vmatmul.mubr.bf16.gmra.mrb[0].mxu0 %v2415
  %v2459 = vpop.f32.mrb[0].mxu0
  %v2460 = vadd.f32 0.0, %v2459
  %v2461 = vpop.f32.mrb[0].mxu0
  %v2462 = vpop.f32.mrb[0].mxu0
  %v2463 = vadd.f32 0.0, %v2462
  %v2464 = vpop.f32.mrb[0].mxu0
  %2465 = vdwg.mxu0
  %2470 = vrot.lane.b32.xlu0 %v2452, 2
  %v2471 = vpop.permute.xlu0 %2470
  %2472 = vrot.lane.b32.xlu0 %v2455, 2
  %v2473 = vpop.permute.xlu0 %2472
  %2474 = vrot.lane.b32.xlu0 %v2460, 2
  %v2475 = vpop.permute.xlu0 %2474
  %2476 = vrot.lane.b32.xlu0 %v2463, 2
  %v2477 = vpop.permute.xlu0 %2476
  %vm2482 = vcmask 31760
  %2483 = vst.msk [vmem:[%s26] sm:$0xff] %vm2482, %v2471
  %2484 = vst.msk [vmem:[%s26 + $0x8] sm:$0xff] %vm2482, %v2473
  %2485 = vst.msk [vmem:[%s26 + $0x10] sm:$0xff] %vm2482, %v2475
  %2486 = vst.msk [vmem:[%s26 + $0x18] sm:$0xff] %vm2482, %v2477
  %v2487 = vpack.c.bf16 %v2455, %v2452
  %v2488 = vpack.c.bf16 %v2463, %v2460
  %2491 = vrot.lane.b32.xlu0 %v1651, 126
  %v2492 = vpop.permute.xlu0 %2491
  %2493 = vrot.lane.b32.xlu0 %v1655, 126
  %v2494 = vpop.permute.xlu0 %2493
  %2497 = vrot.lane.b32.xlu0 %v2487, 6
  %v2498 = vpop.permute.xlu0 %2497
  %2499 = vrot.lane.b32.xlu0 %v2488, 6
  %v2500 = vpop.permute.xlu0 %2499
  %v2503 = vsel %vm1648, %v2492, %v2498
  %v2507 = vsel %vm1648, %v2494, %v2500
  %2509 = vmatprep.subr.bf16.mxu0 0
  %2510 = vmatpush1.bf16.msra.mxu0 %v2503
  %2511 = vmatprep.subr.bf16.mxu0 0
  %2512 = vmatpush1.bf16.msra.mxu0 %v2507
  %2513 = vmatprep.subr.bf16.mxu0 0
  %2514 = vmatpush1.bf16.msra.mxu0 0
  %2515 = vmatprep.subr.bf16.mxu0 0
  %2516 = vmatpush1.bf16.msra.mxu0 0
  %2517 = vmatprep.subr.bf16.mxu0 0
  %2518 = vmatpush1.bf16.msra.mxu0 0
  %2519 = vmatprep.subr.bf16.mxu0 0
  %2520 = vmatpush1.bf16.msra.mxu0 0
  %2521 = vmatprep.subr.bf16.mxu0 0
  %2522 = vmatpush1.bf16.msra.mxu0 0
  %2523 = vmatprep.subr.bf16.mxu0 0
  %2524 = vmatpush1.bf16.msra.mxu0 0
  %2525 = vmatprep.subr.bf16.mxu0 0
  %2526 = vmatpush1.bf16.msra.mxu0 0
  %2527 = vmatprep.subr.bf16.mxu0 0
  %2528 = vmatpush1.bf16.msra.mxu0 0
  %2529 = vmatprep.subr.bf16.mxu0 0
  %2530 = vmatpush1.bf16.msra.mxu0 0
  %2531 = vmatprep.subr.bf16.mxu0 0
  %2532 = vmatpush1.bf16.msra.mxu0 0
  %2533 = vmatprep.subr.bf16.mxu0 0
  %2534 = vmatpush1.bf16.msra.mxu0 0
  %2535 = vmatprep.subr.bf16.mxu0 0
  %2536 = vmatpush1.bf16.msra.mxu0 0
  %2537 = vmatprep.subr.bf16.mxu0 0
  %2538 = vmatpush1.bf16.msra.mxu0 0
  %2539 = vmatprep.subr.bf16.mxu0 0
  %2540 = vmatpush1.bf16.msra.mxu0 0
  %2541 = vmatprep.mubr.bf16.mxu0 0
  %2542 = vmatmul.mubr.bf16.gmra.mrb[0].mxu0 %v117
  %v2543 = vpop.f32.mrb[0].mxu0
  %v2544 = vadd.f32 0.0, %v2543
  %v2545 = vpop.f32.mrb[0].mxu0
  %v2546 = vpop.f32.mrb[0].mxu0
  %v2547 = vadd.f32 0.0, %v2546
  %v2548 = vpop.f32.mrb[0].mxu0
  %2549 = vmatprep.mubr.bf16.mxu0 0
  %2550 = vmatmul.mubr.bf16.gmra.mrb[0].mxu0 %v120
  %v2551 = vpop.f32.mrb[0].mxu0
  %v2552 = vadd.f32 0.0, %v2551
  %v2553 = vpop.f32.mrb[0].mxu0
  %v2554 = vpop.f32.mrb[0].mxu0
  %v2555 = vadd.f32 0.0, %v2554
  %v2556 = vpop.f32.mrb[0].mxu0
  %2557 = vdwg.mxu0
  %v2558 = vpack.c.bf16 %v2547, %v2544
  %v2559 = vpack.c.bf16 %v2555, %v2552
  %v2560 = vld [vmem:[%s12] sm:$0xf]
  %v2561 = vld [vmem:[%s14] sm:$0xf]
  %v2562 = vsel %vm833, %v2503, 0
  %v2564 = vsel %vm833, %v2507, 0
  %v2567 = vsel %vm840, %v2561, 0
  %2569 = vmatprep.subr.bf16.mxu0 0
  %2570 = vmatpush1.bf16.msra.mxu0 %v2567
  %2571 = vmatprep.subr.bf16.mxu0 0
  %2572 = vmatpush1.bf16.msra.mxu0 0
  %2573 = vmatprep.subr.bf16.mxu0 0
  %2574 = vmatpush1.bf16.msra.mxu0 0
  %2575 = vmatprep.subr.bf16.mxu0 0
  %2576 = vmatpush1.bf16.msra.mxu0 0
  %2577 = vmatprep.subr.bf16.mxu0 0
  %2578 = vmatpush1.bf16.msra.mxu0 0
  %2579 = vmatprep.subr.bf16.mxu0 0
  %2580 = vmatpush1.bf16.msra.mxu0 0
  %2581 = vmatprep.subr.bf16.mxu0 0
  %2582 = vmatpush1.bf16.msra.mxu0 0
  %2583 = vmatprep.subr.bf16.mxu0 0
  %2584 = vmatpush1.bf16.msra.mxu0 0
  %2585 = vmatprep.subr.bf16.mxu0 0
  %2586 = vmatpush1.bf16.msra.mxu0 0
  %2587 = vmatprep.subr.bf16.mxu0 0
  %2588 = vmatpush1.bf16.msra.mxu0 0
  %2589 = vmatprep.subr.bf16.mxu0 0
  %2590 = vmatpush1.bf16.msra.mxu0 0
  %2591 = vmatprep.subr.bf16.mxu0 0
  %2592 = vmatpush1.bf16.msra.mxu0 0
  %2593 = vmatprep.subr.bf16.mxu0 0
  %2594 = vmatpush1.bf16.msra.mxu0 0
  %2595 = vmatprep.subr.bf16.mxu0 0
  %2596 = vmatpush1.bf16.msra.mxu0 0
  %2597 = vmatprep.subr.bf16.mxu0 0
  %2598 = vmatpush1.bf16.msra.mxu0 0
  %2599 = vmatprep.subr.bf16.mxu0 0
  %2600 = vmatpush1.bf16.msra.mxu0 0
  %2601 = vmatprep.mubr.bf16.mxu0 0
  %2602 = vmatmul.mubr.bf16.gmra.mrb[0].mxu0 %v2562
  %v2603 = vpop.f32.mrb[0].mxu0
  %v2604 = vadd.f32 0.0, %v2603
  %v2605 = vpop.f32.mrb[0].mxu0
  %v2606 = vpop.f32.mrb[0].mxu0
  %v2607 = vadd.f32 0.0, %v2606
  %v2608 = vpop.f32.mrb[0].mxu0
  %2609 = vmatprep.mubr.bf16.mxu0 0
  %2610 = vmatmul.mubr.bf16.gmra.mrb[0].mxu0 %v2564
  %v2611 = vpop.f32.mrb[0].mxu0
  %v2612 = vadd.f32 0.0, %v2611
  %v2613 = vpop.f32.mrb[0].mxu0
  %v2614 = vpop.f32.mrb[0].mxu0
  %v2615 = vadd.f32 0.0, %v2614
  %v2616 = vpop.f32.mrb[0].mxu0
  %2617 = vdwg.mxu0
  %v2619 = vsel %vm833, %v2558, 0
  %v2622 = vsel %vm833, %v2559, 0
  %v2625 = vsel %vm840, %v2560, 0
  %2627 = vmatprep.subr.bf16.mxu0 0
  %2628 = vmatpush1.bf16.msra.mxu0 %v2625
  %2629 = vmatprep.subr.bf16.mxu0 0
  %2630 = vmatpush1.bf16.msra.mxu0 0
  %2631 = vmatprep.subr.bf16.mxu0 0
  %2632 = vmatpush1.bf16.msra.mxu0 0
  %2633 = vmatprep.subr.bf16.mxu0 0
  %2634 = vmatpush1.bf16.msra.mxu0 0
  %2635 = vmatprep.subr.bf16.mxu0 0
  %2636 = vmatpush1.bf16.msra.mxu0 0
  %2637 = vmatprep.subr.bf16.mxu0 0
  %2638 = vmatpush1.bf16.msra.mxu0 0
  %2639 = vmatprep.subr.bf16.mxu0 0
  %2640 = vmatpush1.bf16.msra.mxu0 0
  %2641 = vmatprep.subr.bf16.mxu0 0
  %2642 = vmatpush1.bf16.msra.mxu0 0
  %2643 = vmatprep.subr.bf16.mxu0 0
  %2644 = vmatpush1.bf16.msra.mxu0 0
  %2645 = vmatprep.subr.bf16.mxu0 0
  %2646 = vmatpush1.bf16.msra.mxu0 0
  %2647 = vmatprep.subr.bf16.mxu0 0
  %2648 = vmatpush1.bf16.msra.mxu0 0
  %2649 = vmatprep.subr.bf16.mxu0 0
  %2650 = vmatpush1.bf16.msra.mxu0 0
  %2651 = vmatprep.subr.bf16.mxu0 0
  %2652 = vmatpush1.bf16.msra.mxu0 0
  %2653 = vmatprep.subr.bf16.mxu0 0
  %2654 = vmatpush1.bf16.msra.mxu0 0
  %2655 = vmatprep.subr.bf16.mxu0 0
  %2656 = vmatpush1.bf16.msra.mxu0 0
  %2657 = vmatprep.subr.bf16.mxu0 0
  %2658 = vmatpush1.bf16.msra.mxu0 0
  %2659 = vmatprep.mubr.bf16.mxu0 0
  %2660 = vmatmul.mubr.bf16.gmra.mrb[0].mxu0 %v2619
  %v2661 = vpop.f32.mrb[0].mxu0
  %v2662 = vadd.f32 %v2604, %v2661
  %v2663 = vpop.f32.mrb[0].mxu0
  %v2664 = vpop.f32.mrb[0].mxu0
  %v2665 = vadd.f32 %v2607, %v2664
  %v2666 = vpop.f32.mrb[0].mxu0
  %2667 = vmatprep.mubr.bf16.mxu0 0
  %2668 = vmatmul.mubr.bf16.gmra.mrb[0].mxu0 %v2622
  %v2669 = vpop.f32.mrb[0].mxu0
  %v2670 = vadd.f32 %v2612, %v2669
  %v2671 = vpop.f32.mrb[0].mxu0
  %v2672 = vpop.f32.mrb[0].mxu0
  %v2673 = vadd.f32 %v2615, %v2672
  %v2674 = vpop.f32.mrb[0].mxu0
  %2675 = vdwg.mxu0
  %v2676 = vld [vmem:[%s15] sm:$0x1]
  %v2678 = vlaneseq
  %v2679 = vshrl.u32 %v2678, 7
  %v2680 = vsub.s32 0, %v2679
  %v2681 = vrot.slane %v2676, %v2680
  %v2683 = vadd.f32 %v2662, %v2681
  %v2684 = vadd.f32 %v2665, %v2681
  %v2685 = vadd.f32 %v2670, %v2681
  %v2686 = vadd.f32 %v2673, %v2681
  %v2687 = vld [vmem:[%s13] sm:$0xf]
  %v2688 = vld [vmem:[%s16] sm:$0x1]
  %v2690 = vlaneseq
  %v2691 = vshrl.u32 %v2690, 7
  %v2692 = vsub.s32 0, %v2691
  %v2693 = vrot.slane %v2688, %v2692
  %v2696 = vsel %vm840, %v2687, 0
  %2698 = vmatprep.subr.bf16.mxu0 0
  %2699 = vmatpush1.bf16.msra.mxu0 %v2696
  %2700 = vmatprep.subr.bf16.mxu0 0
  %2701 = vmatpush1.bf16.msra.mxu0 0
  %2702 = vmatprep.subr.bf16.mxu0 0
  %2703 = vmatpush1.bf16.msra.mxu0 0
  %2704 = vmatprep.subr.bf16.mxu0 0
  %2705 = vmatpush1.bf16.msra.mxu0 0
  %2706 = vmatprep.subr.bf16.mxu0 0
  %2707 = vmatpush1.bf16.msra.mxu0 0
  %2708 = vmatprep.subr.bf16.mxu0 0
  %2709 = vmatpush1.bf16.msra.mxu0 0
  %2710 = vmatprep.subr.bf16.mxu0 0
  %2711 = vmatpush1.bf16.msra.mxu0 0
  %2712 = vmatprep.subr.bf16.mxu0 0
  %2713 = vmatpush1.bf16.msra.mxu0 0
  %2714 = vmatprep.subr.bf16.mxu0 0
  %2715 = vmatpush1.bf16.msra.mxu0 0
  %2716 = vmatprep.subr.bf16.mxu0 0
  %2717 = vmatpush1.bf16.msra.mxu0 0
  %2718 = vmatprep.subr.bf16.mxu0 0
  %2719 = vmatpush1.bf16.msra.mxu0 0
  %2720 = vmatprep.subr.bf16.mxu0 0
  %2721 = vmatpush1.bf16.msra.mxu0 0
  %2722 = vmatprep.subr.bf16.mxu0 0
  %2723 = vmatpush1.bf16.msra.mxu0 0
  %2724 = vmatprep.subr.bf16.mxu0 0
  %2725 = vmatpush1.bf16.msra.mxu0 0
  %2726 = vmatprep.subr.bf16.mxu0 0
  %2727 = vmatpush1.bf16.msra.mxu0 0
  %2728 = vmatprep.subr.bf16.mxu0 0
  %2729 = vmatpush1.bf16.msra.mxu0 0
  %2730 = vmatprep.mubr.bf16.mxu0 0
  %2731 = vmatmul.mubr.bf16.gmra.mrb[0].mxu0 %v2619
  %v2732 = vpop.f32.mrb[0].mxu0
  %v2733 = vadd.f32 %v2693, %v2732
  %v2734 = vpop.f32.mrb[0].mxu0
  %v2735 = vpop.f32.mrb[0].mxu0
  %v2736 = vadd.f32 %v2693, %v2735
  %v2737 = vpop.f32.mrb[0].mxu0
  %2738 = vmatprep.mubr.bf16.mxu0 0
  %2739 = vmatmul.mubr.bf16.gmra.mrb[0].mxu0 %v2622
  %v2740 = vpop.f32.mrb[0].mxu0
  %v2741 = vadd.f32 %v2693, %v2740
  %v2742 = vpop.f32.mrb[0].mxu0
  %v2743 = vpop.f32.mrb[0].mxu0
  %v2744 = vadd.f32 %v2693, %v2743
  %v2745 = vpop.f32.mrb[0].mxu0
  %2746 = vdwg.mxu0
  %v2747 = vxor.u32 %v2733, 2147483648
  %v2748 = vxor.u32 %v2736, 2147483648
  %v2749 = vxor.u32 %v2741, 2147483648
  %v2750 = vxor.u32 %v2744, 2147483648
  %v2751 = vmul.f32 %v2747, 1.442695
  %v2752 = vpow.pop %v2751
  %v2753 = vmul.f32 %v2748, 1.442695
  %v2754 = vpow.pop %v2753
  %v2755 = vmul.f32 %v2749, 1.442695
  %v2756 = vpow.pop %v2755
  %v2757 = vmul.f32 %v2750, 1.442695
  %v2758 = vpow.pop %v2757
  %v2759 = vadd.f32 %v2752, 1.0
  %v2760 = vadd.f32 %v2754, 1.0
  %v2761 = vadd.f32 %v2756, 1.0
  %v2762 = vadd.f32 %v2758, 1.0
  %v2763 = vrcp.pop %v2759
  %v2764 = vmul.f32 1.0, %v2763
  %v2765 = vrcp.pop %v2760
  %v2766 = vmul.f32 1.0, %v2765
  %v2767 = vrcp.pop %v2761
  %v2768 = vmul.f32 1.0, %v2767
  %v2769 = vrcp.pop %v2762
  %v2770 = vmul.f32 1.0, %v2769
  %v2771 = vmul.f32 %v2683, %v2764
  %v2772 = vmul.f32 %v2684, %v2766
  %v2773 = vmul.f32 %v2685, %v2768
  %v2774 = vmul.f32 %v2686, %v2770
  %v2775 = vpack.c.bf16 %v2772, %v2771
  %v2776 = vpack.c.bf16 %v2774, %v2773
  %2777 = vmatprep.subr.bf16.mxu0 0
  %2778 = vmatpush1.bf16.msra.mxu0 %v2775
  %2779 = vmatprep.subr.bf16.mxu0 0
  %2780 = vmatpush1.bf16.msra.mxu0 %v2776
  %2781 = vmatprep.subr.bf16.mxu0 0
  %2782 = vmatpush1.bf16.msra.mxu0 0
  %2783 = vmatprep.subr.bf16.mxu0 0
  %2784 = vmatpush1.bf16.msra.mxu0 0
  %2785 = vmatprep.subr.bf16.mxu0 0
  %2786 = vmatpush1.bf16.msra.mxu0 0
  %2787 = vmatprep.subr.bf16.mxu0 0
  %2788 = vmatpush1.bf16.msra.mxu0 0
  %2789 = vmatprep.subr.bf16.mxu0 0
  %2790 = vmatpush1.bf16.msra.mxu0 0
  %2791 = vmatprep.subr.bf16.mxu0 0
  %2792 = vmatpush1.bf16.msra.mxu0 0
  %2793 = vmatprep.subr.bf16.mxu0 0
  %2794 = vmatpush1.bf16.msra.mxu0 0
  %2795 = vmatprep.subr.bf16.mxu0 0
  %2796 = vmatpush1.bf16.msra.mxu0 0
  %2797 = vmatprep.subr.bf16.mxu0 0
  %2798 = vmatpush1.bf16.msra.mxu0 0
  %2799 = vmatprep.subr.bf16.mxu0 0
  %2800 = vmatpush1.bf16.msra.mxu0 0
  %2801 = vmatprep.subr.bf16.mxu0 0
  %2802 = vmatpush1.bf16.msra.mxu0 0
  %2803 = vmatprep.subr.bf16.mxu0 0
  %2804 = vmatpush1.bf16.msra.mxu0 0
  %2805 = vmatprep.subr.bf16.mxu0 0
  %2806 = vmatpush1.bf16.msra.mxu0 0
  %2807 = vmatprep.subr.bf16.mxu0 0
  %2808 = vmatpush1.bf16.msra.mxu0 0
  %2809 = vmatprep.mubr.bf16.mxu0 0
  %2810 = vmatmul.mubr.bf16.gmra.mrb[0].mxu0 %v117
  %v2811 = vpop.f32.mrb[0].mxu0
  %v2812 = vadd.f32 0.0, %v2811
  %v2813 = vpop.f32.mrb[0].mxu0
  %v2814 = vpop.f32.mrb[0].mxu0
  %v2815 = vadd.f32 0.0, %v2814
  %v2816 = vpop.f32.mrb[0].mxu0
  %2817 = vmatprep.mubr.bf16.mxu0 0
  %2818 = vmatmul.mubr.bf16.gmra.mrb[0].mxu0 %v120
  %v2819 = vpop.f32.mrb[0].mxu0
  %v2820 = vadd.f32 0.0, %v2819
  %v2821 = vpop.f32.mrb[0].mxu0
  %v2822 = vpop.f32.mrb[0].mxu0
  %v2823 = vadd.f32 0.0, %v2822
  %v2824 = vpop.f32.mrb[0].mxu0
  %2825 = vdwg.mxu0
  %v2826 = vpack.c.bf16 %v2815, %v2812
  %v2827 = vpack.c.bf16 %v2823, %v2820
  %v2828 = vld [vmem:[%s17] sm:$0xf]
  %v2829 = vld [vmem:[%s17 + $0x4] sm:$0xf]
  %v2830 = vld [vmem:[%s17 + $0x8] sm:$0xf]
  %v2831 = vld [vmem:[%s17 + $0xc] sm:$0xf]
  %v2832 = vld [vmem:[%s19] sm:$0xf]
  %v2833 = vld [vmem:[%s19 + $0x4] sm:$0xf]
  %v2834 = vld [vmem:[%s19 + $0x8] sm:$0xf]
  %v2835 = vld [vmem:[%s19 + $0xc] sm:$0xf]
  %v2840 = vunpack.c.l.b16 %v2832
  %v2841 = vunpack.c.l.b16 %v2833
  %v2842 = vunpack.c.l.b16 %v2834
  %v2843 = vunpack.c.l.b16 %v2835
  %v2844 = vpack.c.b16 %v2841, %v2840
  %v2845 = vpack.c.b16 %v2843, %v2842
  %v2849 = vsel %vm115, %v2775, 0
  %v2852 = vsel %vm115, %v2776, 0
  %2854 = vmatprep.subr.bf16.mxu0 0
  %2855 = vmatpush1.bf16.msra.mxu0 %v2844
  %2856 = vmatprep.subr.bf16.mxu0 0
  %2857 = vmatpush1.bf16.msra.mxu0 %v2845
  %2858 = vmatprep.subr.bf16.mxu0 0
  %2859 = vmatpush1.bf16.msra.mxu0 0
  %2860 = vmatprep.subr.bf16.mxu0 0
  %2861 = vmatpush1.bf16.msra.mxu0 0
  %2862 = vmatprep.subr.bf16.mxu0 0
  %2863 = vmatpush1.bf16.msra.mxu0 0
  %2864 = vmatprep.subr.bf16.mxu0 0
  %2865 = vmatpush1.bf16.msra.mxu0 0
  %2866 = vmatprep.subr.bf16.mxu0 0
  %2867 = vmatpush1.bf16.msra.mxu0 0
  %2868 = vmatprep.subr.bf16.mxu0 0
  %2869 = vmatpush1.bf16.msra.mxu0 0
  %2870 = vmatprep.subr.bf16.mxu0 0
  %2871 = vmatpush1.bf16.msra.mxu0 0
  %2872 = vmatprep.subr.bf16.mxu0 0
  %2873 = vmatpush1.bf16.msra.mxu0 0
  %2874 = vmatprep.subr.bf16.mxu0 0
  %2875 = vmatpush1.bf16.msra.mxu0 0
  %2876 = vmatprep.subr.bf16.mxu0 0
  %2877 = vmatpush1.bf16.msra.mxu0 0
  %2878 = vmatprep.subr.bf16.mxu0 0
  %2879 = vmatpush1.bf16.msra.mxu0 0
  %2880 = vmatprep.subr.bf16.mxu0 0
  %2881 = vmatpush1.bf16.msra.mxu0 0
  %2882 = vmatprep.subr.bf16.mxu0 0
  %2883 = vmatpush1.bf16.msra.mxu0 0
  %2884 = vmatprep.subr.bf16.mxu0 0
  %2885 = vmatpush1.bf16.msra.mxu0 0
  %2886 = vmatprep.mubr.bf16.mxu0 0
  %2887 = vmatmul.mubr.bf16.gmra.mrb[0].mxu0 %v2849
  %v2888 = vpop.f32.mrb[0].mxu0
  %v2889 = vadd.f32 0.0, %v2888
  %v2890 = vpop.f32.mrb[0].mxu0
  %v2891 = vpop.f32.mrb[0].mxu0
  %v2892 = vadd.f32 0.0, %v2891
  %v2893 = vpop.f32.mrb[0].mxu0
  %2894 = vmatprep.mubr.bf16.mxu0 0
  %2895 = vmatmul.mubr.bf16.gmra.mrb[0].mxu0 %v2852
  %v2896 = vpop.f32.mrb[0].mxu0
  %v2897 = vadd.f32 0.0, %v2896
  %v2898 = vpop.f32.mrb[0].mxu0
  %v2899 = vpop.f32.mrb[0].mxu0
  %v2900 = vadd.f32 0.0, %v2899
  %v2901 = vpop.f32.mrb[0].mxu0
  %2902 = vdwg.mxu0
  %v2907 = vunpack.c.l.b16 %v2828
  %v2908 = vunpack.c.l.b16 %v2829
  %v2909 = vunpack.c.l.b16 %v2830
  %v2910 = vunpack.c.l.b16 %v2831
  %v2911 = vpack.c.b16 %v2908, %v2907
  %v2912 = vpack.c.b16 %v2910, %v2909
  %v2916 = vsel %vm115, %v2826, 0
  %v2919 = vsel %vm115, %v2827, 0
  %2921 = vmatprep.subr.bf16.mxu0 0
  %2922 = vmatpush1.bf16.msra.mxu0 %v2911
  %2923 = vmatprep.subr.bf16.mxu0 0
  %2924 = vmatpush1.bf16.msra.mxu0 %v2912
  %2925 = vmatprep.subr.bf16.mxu0 0
  %2926 = vmatpush1.bf16.msra.mxu0 0
  %2927 = vmatprep.subr.bf16.mxu0 0
  %2928 = vmatpush1.bf16.msra.mxu0 0
  %2929 = vmatprep.subr.bf16.mxu0 0
  %2930 = vmatpush1.bf16.msra.mxu0 0
  %2931 = vmatprep.subr.bf16.mxu0 0
  %2932 = vmatpush1.bf16.msra.mxu0 0
  %2933 = vmatprep.subr.bf16.mxu0 0
  %2934 = vmatpush1.bf16.msra.mxu0 0
  %2935 = vmatprep.subr.bf16.mxu0 0
  %2936 = vmatpush1.bf16.msra.mxu0 0
  %2937 = vmatprep.subr.bf16.mxu0 0
  %2938 = vmatpush1.bf16.msra.mxu0 0
  %2939 = vmatprep.subr.bf16.mxu0 0
  %2940 = vmatpush1.bf16.msra.mxu0 0
  %2941 = vmatprep.subr.bf16.mxu0 0
  %2942 = vmatpush1.bf16.msra.mxu0 0
  %2943 = vmatprep.subr.bf16.mxu0 0
  %2944 = vmatpush1.bf16.msra.mxu0 0
  %2945 = vmatprep.subr.bf16.mxu0 0
  %2946 = vmatpush1.bf16.msra.mxu0 0
  %2947 = vmatprep.subr.bf16.mxu0 0
  %2948 = vmatpush1.bf16.msra.mxu0 0
  %2949 = vmatprep.subr.bf16.mxu0 0
  %2950 = vmatpush1.bf16.msra.mxu0 0
  %2951 = vmatprep.subr.bf16.mxu0 0
  %2952 = vmatpush1.bf16.msra.mxu0 0
  %2953 = vmatprep.mubr.bf16.mxu0 0
  %2954 = vmatmul.mubr.bf16.gmra.mrb[0].mxu0 %v2916
  %v2955 = vpop.f32.mrb[0].mxu0
  %v2956 = vadd.f32 %v2889, %v2955
  %v2957 = vpop.f32.mrb[0].mxu0
  %v2958 = vpop.f32.mrb[0].mxu0
  %v2959 = vadd.f32 %v2892, %v2958
  %v2960 = vpop.f32.mrb[0].mxu0
  %2961 = vmatprep.mubr.bf16.mxu0 0
  %2962 = vmatmul.mubr.bf16.gmra.mrb[0].mxu0 %v2919
  %v2963 = vpop.f32.mrb[0].mxu0
  %v2964 = vadd.f32 %v2897, %v2963
  %v2965 = vpop.f32.mrb[0].mxu0
  %v2966 = vpop.f32.mrb[0].mxu0
  %v2967 = vadd.f32 %v2900, %v2966
  %v2968 = vpop.f32.mrb[0].mxu0
  %2969 = vdwg.mxu0
  %v2970 = vld [vmem:[%s20] sm:$0x1]
  %v2972 = vlaneseq
  %v2973 = vshrl.u32 %v2972, 7
  %v2974 = vsub.s32 0, %v2973
  %v2975 = vrot.slane %v2970, %v2974
  %v2977 = vadd.f32 %v2956, %v2975
  %v2978 = vadd.f32 %v2959, %v2975
  %v2979 = vadd.f32 %v2964, %v2975
  %v2980 = vadd.f32 %v2967, %v2975
  %v2981 = vld [vmem:[%s18] sm:$0xf]
  %v2982 = vld [vmem:[%s18 + $0x4] sm:$0xf]
  %v2983 = vld [vmem:[%s18 + $0x8] sm:$0xf]
  %v2984 = vld [vmem:[%s18 + $0xc] sm:$0xf]
  %v2985 = vld [vmem:[%s21] sm:$0x1]
  %v2987 = vlaneseq
  %v2988 = vshrl.u32 %v2987, 7
  %v2989 = vsub.s32 0, %v2988
  %v2990 = vrot.slane %v2985, %v2989
  %v2996 = vunpack.c.l.b16 %v2981
  %v2997 = vunpack.c.l.b16 %v2982
  %v2998 = vunpack.c.l.b16 %v2983
  %v2999 = vunpack.c.l.b16 %v2984
  %v3000 = vpack.c.b16 %v2997, %v2996
  %v3001 = vpack.c.b16 %v2999, %v2998
  %3004 = vmatprep.subr.bf16.mxu0 0
  %3005 = vmatpush1.bf16.msra.mxu0 %v3000
  %3006 = vmatprep.subr.bf16.mxu0 0
  %3007 = vmatpush1.bf16.msra.mxu0 %v3001
  %3008 = vmatprep.subr.bf16.mxu0 0
  %3009 = vmatpush1.bf16.msra.mxu0 0
  %3010 = vmatprep.subr.bf16.mxu0 0
  %3011 = vmatpush1.bf16.msra.mxu0 0
  %3012 = vmatprep.subr.bf16.mxu0 0
  %3013 = vmatpush1.bf16.msra.mxu0 0
  %3014 = vmatprep.subr.bf16.mxu0 0
  %3015 = vmatpush1.bf16.msra.mxu0 0
  %3016 = vmatprep.subr.bf16.mxu0 0
  %3017 = vmatpush1.bf16.msra.mxu0 0
  %3018 = vmatprep.subr.bf16.mxu0 0
  %3019 = vmatpush1.bf16.msra.mxu0 0
  %3020 = vmatprep.subr.bf16.mxu0 0
  %3021 = vmatpush1.bf16.msra.mxu0 0
  %3022 = vmatprep.subr.bf16.mxu0 0
  %3023 = vmatpush1.bf16.msra.mxu0 0
  %3024 = vmatprep.subr.bf16.mxu0 0
  %3025 = vmatpush1.bf16.msra.mxu0 0
  %3026 = vmatprep.subr.bf16.mxu0 0
  %3027 = vmatpush1.bf16.msra.mxu0 0
  %3028 = vmatprep.subr.bf16.mxu0 0
  %3029 = vmatpush1.bf16.msra.mxu0 0
  %3030 = vmatprep.subr.bf16.mxu0 0
  %3031 = vmatpush1.bf16.msra.mxu0 0
  %3032 = vmatprep.subr.bf16.mxu0 0
  %3033 = vmatpush1.bf16.msra.mxu0 0
  %3034 = vmatprep.subr.bf16.mxu0 0
  %3035 = vmatpush1.bf16.msra.mxu0 0
  %3036 = vmatprep.mubr.bf16.mxu0 0
  %3037 = vmatmul.mubr.bf16.gmra.mrb[0].mxu0 %v2916
  %v3038 = vpop.f32.mrb[0].mxu0
  %v3039 = vadd.f32 %v2990, %v3038
  %v3040 = vpop.f32.mrb[0].mxu0
  %v3041 = vpop.f32.mrb[0].mxu0
  %v3042 = vadd.f32 %v2990, %v3041
  %v3043 = vpop.f32.mrb[0].mxu0
  %3044 = vmatprep.mubr.bf16.mxu0 0
  %3045 = vmatmul.mubr.bf16.gmra.mrb[0].mxu0 %v2919
  %v3046 = vpop.f32.mrb[0].mxu0
  %v3047 = vadd.f32 %v2990, %v3046
  %v3048 = vpop.f32.mrb[0].mxu0
  %v3049 = vpop.f32.mrb[0].mxu0
  %v3050 = vadd.f32 %v2990, %v3049
  %v3051 = vpop.f32.mrb[0].mxu0
  %3052 = vdwg.mxu0
  %v3053 = vxor.u32 %v3039, 2147483648
  %v3054 = vxor.u32 %v3042, 2147483648
  %v3055 = vxor.u32 %v3047, 2147483648
  %v3056 = vxor.u32 %v3050, 2147483648
  %v3057 = vmul.f32 %v3053, 1.442695
  %v3058 = vpow.pop %v3057
  %v3059 = vmul.f32 %v3054, 1.442695
  %v3060 = vpow.pop %v3059
  %v3061 = vmul.f32 %v3055, 1.442695
  %v3062 = vpow.pop %v3061
  %v3063 = vmul.f32 %v3056, 1.442695
  %v3064 = vpow.pop %v3063
  %v3065 = vadd.f32 %v3058, 1.0
  %v3066 = vadd.f32 %v3060, 1.0
  %v3067 = vadd.f32 %v3062, 1.0
  %v3068 = vadd.f32 %v3064, 1.0
  %v3069 = vrcp.pop %v3065
  %v3070 = vmul.f32 1.0, %v3069
  %v3071 = vrcp.pop %v3066
  %v3072 = vmul.f32 1.0, %v3071
  %v3073 = vrcp.pop %v3067
  %v3074 = vmul.f32 1.0, %v3073
  %v3075 = vrcp.pop %v3068
  %v3076 = vmul.f32 1.0, %v3075
  %v3077 = vmul.f32 %v2977, %v3070
  %v3078 = vmul.f32 %v2978, %v3072
  %v3079 = vmul.f32 %v2979, %v3074
  %v3080 = vmul.f32 %v2980, %v3076
  %v3081 = vpack.c.bf16 %v3078, %v3077
  %v3082 = vpack.c.bf16 %v3080, %v3079
  %3085 = vrot.lane.b32.xlu0 %v3081, 16
  %v3086 = vpop.permute.xlu0 %3085
  %3087 = vrot.lane.b32.xlu0 %v3082, 16
  %v3088 = vpop.permute.xlu0 %3087
  %v3090 = vsel %vm183, %v758, %v3086
  %v3093 = vsel %vm183, %v759, %v3088
  %v3095 = vsel %vm1382, %v3090, 0
  %v3097 = vsel %vm1382, %v3093, 0
  %3099 = vmatprep.subr.bf16.mxu0 0
  %3100 = vmatpush1.bf16.msra.mxu0 %v1379
  %3101 = vmatprep.subr.bf16.mxu0 0
  %3102 = vmatpush1.bf16.msra.mxu0 %v1388
  %3103 = vmatprep.subr.bf16.mxu0 0
  %3104 = vmatpush1.bf16.msra.mxu0 0
  %3105 = vmatprep.subr.bf16.mxu0 0
  %3106 = vmatpush1.bf16.msra.mxu0 0
  %3107 = vmatprep.subr.bf16.mxu0 0
  %3108 = vmatpush1.bf16.msra.mxu0 0
  %3109 = vmatprep.subr.bf16.mxu0 0
  %3110 = vmatpush1.bf16.msra.mxu0 0
  %3111 = vmatprep.subr.bf16.mxu0 0
  %3112 = vmatpush1.bf16.msra.mxu0 0
  %3113 = vmatprep.subr.bf16.mxu0 0
  %3114 = vmatpush1.bf16.msra.mxu0 0
  %3115 = vmatprep.subr.bf16.mxu0 0
  %3116 = vmatpush1.bf16.msra.mxu0 0
  %3117 = vmatprep.subr.bf16.mxu0 0
  %3118 = vmatpush1.bf16.msra.mxu0 0
  %3119 = vmatprep.subr.bf16.mxu0 0
  %3120 = vmatpush1.bf16.msra.mxu0 0
  %3121 = vmatprep.subr.bf16.mxu0 0
  %3122 = vmatpush1.bf16.msra.mxu0 0
  %3123 = vmatprep.subr.bf16.mxu0 0
  %3124 = vmatpush1.bf16.msra.mxu0 0
  %3125 = vmatprep.subr.bf16.mxu0 0
  %3126 = vmatpush1.bf16.msra.mxu0 0
  %3127 = vmatprep.subr.bf16.mxu0 0
  %3128 = vmatpush1.bf16.msra.mxu0 0
  %3129 = vmatprep.subr.bf16.mxu0 0
  %3130 = vmatpush1.bf16.msra.mxu0 0
  %3131 = vmatprep.mubr.bf16.mxu0 0
  %3132 = vmatmul.mubr.bf16.gmra.mrb[0].mxu0 %v3095
  %v3133 = vpop.f32.mrb[0].mxu0
  %v3134 = vadd.f32 %v1372, %v3133
  %v3135 = vpop.f32.mrb[0].mxu0
  %v3136 = vpop.f32.mrb[0].mxu0
  %v3137 = vadd.f32 %v1372, %v3136
  %v3138 = vpop.f32.mrb[0].mxu0
  %3139 = vmatprep.mubr.bf16.mxu0 0
  %3140 = vmatmul.mubr.bf16.gmra.mrb[0].mxu0 %v3097
  %v3141 = vpop.f32.mrb[0].mxu0
  %v3142 = vadd.f32 %v1372, %v3141
  %v3143 = vpop.f32.mrb[0].mxu0
  %v3144 = vpop.f32.mrb[0].mxu0
  %v3145 = vadd.f32 %v1372, %v3144
  %v3146 = vpop.f32.mrb[0].mxu0
  %3147 = vdwg.mxu0
  %v3148 = vtanh.pop %v3134
  %v3149 = vtanh.pop %v3137
  %v3150 = vtanh.pop %v3142
  %v3151 = vtanh.pop %v3145
  %v3152 = vsel %vm1443, %v3148, -inf
  %3153 = vmax.xlane.f32.xlu0 %v3152
  %v3154 = vpop.xlane.xlu0 %3153
  %v3155 = vsel %vm1443, %v3149, -inf
  %3156 = vmax.xlane.f32.xlu0 %v3155
  %v3157 = vpop.xlane.xlu0 %3156
  %v3158 = vsel %vm1443, %v3150, -inf
  %3159 = vmax.xlane.f32.xlu0 %v3158
  %v3160 = vpop.xlane.xlu0 %3159
  %v3161 = vsel %vm1443, %v3151, -inf
  %3162 = vmax.xlane.f32.xlu0 %v3161
  %v3163 = vpop.xlane.xlu0 %3162
  %v3164 = vsub.f32 %v3148, %v3154
  %v3165 = vsub.f32 %v3149, %v3157
  %v3166 = vsub.f32 %v3150, %v3160
  %v3167 = vsub.f32 %v3151, %v3163
  %v3168 = vmul.f32 %v3164, 1.442695
  %v3169 = vpow.pop %v3168
  %v3170 = vmul.f32 %v3165, 1.442695
  %v3171 = vpow.pop %v3170
  %v3172 = vmul.f32 %v3166, 1.442695
  %v3173 = vpow.pop %v3172
  %v3174 = vmul.f32 %v3167, 1.442695
  %v3175 = vpow.pop %v3174
  %v3176 = vsel %vm1443, %v3169, 0.0
  %3177 = vadd.xlane.f32.xlu0 %v3176
  %v3178 = vpop.xlane.xlu0 %3177
  %v3179 = vsel %vm1443, %v3171, 0.0
  %3180 = vadd.xlane.f32.xlu0 %v3179
  %v3181 = vpop.xlane.xlu0 %3180
  %v3182 = vsel %vm1443, %v3173, 0.0
  %3183 = vadd.xlane.f32.xlu0 %v3182
  %v3184 = vpop.xlane.xlu0 %3183
  %v3185 = vsel %vm1443, %v3175, 0.0
  %3186 = vadd.xlane.f32.xlu0 %v3185
  %v3187 = vpop.xlane.xlu0 %3186
  %v3188 = vrcp.pop %v3178
  %v3189 = vrcp.pop %v3181
  %v3190 = vrcp.pop %v3184
  %v3191 = vrcp.pop %v3187
  %v3192 = vmul.f32 %v3169, %v3188
  %v3193 = vmul.f32 %v3171, %v3189
  %v3194 = vmul.f32 %v3173, %v3190
  %v3195 = vmul.f32 %v3175, %v3191
  %v3196 = vpack.c.bf16 %v3193, %v3192
  %v3197 = vpack.c.bf16 %v3195, %v3194
  %v3199 = vsel %vm1443, %v3196, 0
  %v3202 = vsel %vm1443, %v3197, 0
  %3204 = vmatprep.subr.bf16.mxu0 0
  %3205 = vmatpush1.bf16.msra.mxu0 %v1503
  %3206 = vmatprep.subr.bf16.mxu0 0
  %3207 = vmatpush1.bf16.msra.mxu0 0
  %3208 = vmatprep.subr.bf16.mxu0 0
  %3209 = vmatpush1.bf16.msra.mxu0 0
  %3210 = vmatprep.subr.bf16.mxu0 0
  %3211 = vmatpush1.bf16.msra.mxu0 0
  %3212 = vmatprep.subr.bf16.mxu0 0
  %3213 = vmatpush1.bf16.msra.mxu0 0
  %3214 = vmatprep.subr.bf16.mxu0 0
  %3215 = vmatpush1.bf16.msra.mxu0 0
  %3216 = vmatprep.subr.bf16.mxu0 0
  %3217 = vmatpush1.bf16.msra.mxu0 0
  %3218 = vmatprep.subr.bf16.mxu0 0
  %3219 = vmatpush1.bf16.msra.mxu0 0
  %3220 = vmatprep.subr.bf16.mxu0 0
  %3221 = vmatpush1.bf16.msra.mxu0 0
  %3222 = vmatprep.subr.bf16.mxu0 0
  %3223 = vmatpush1.bf16.msra.mxu0 0
  %3224 = vmatprep.subr.bf16.mxu0 0
  %3225 = vmatpush1.bf16.msra.mxu0 0
  %3226 = vmatprep.subr.bf16.mxu0 0
  %3227 = vmatpush1.bf16.msra.mxu0 0
  %3228 = vmatprep.subr.bf16.mxu0 0
  %3229 = vmatpush1.bf16.msra.mxu0 0
  %3230 = vmatprep.subr.bf16.mxu0 0
  %3231 = vmatpush1.bf16.msra.mxu0 0
  %3232 = vmatprep.subr.bf16.mxu0 0
  %3233 = vmatpush1.bf16.msra.mxu0 0
  %3234 = vmatprep.subr.bf16.mxu0 0
  %3235 = vmatpush1.bf16.msra.mxu0 0
  %3236 = vmatprep.mubr.bf16.mxu0 0
  %3237 = vmatmul.mubr.bf16.gmra.mrb[0].mxu0 %v3199
  %v3238 = vpop.f32.mrb[0].mxu0
  %v3239 = vadd.f32 0.0, %v3238
  %v3240 = vpop.f32.mrb[0].mxu0
  %v3241 = vpop.f32.mrb[0].mxu0
  %v3242 = vadd.f32 0.0, %v3241
  %v3243 = vpop.f32.mrb[0].mxu0
  %3244 = vmatprep.mubr.bf16.mxu0 0
  %3245 = vmatmul.mubr.bf16.gmra.mrb[0].mxu0 %v3202
  %v3246 = vpop.f32.mrb[0].mxu0
  %v3247 = vadd.f32 0.0, %v3246
  %v3248 = vpop.f32.mrb[0].mxu0
  %v3249 = vpop.f32.mrb[0].mxu0
  %v3250 = vadd.f32 0.0, %v3249
  %v3251 = vpop.f32.mrb[0].mxu0
  %3252 = vdwg.mxu0
  %v3253 = vunpack.c.l.bf16 %v3090
  %v3254 = vunpack.c.h.bf16 %v3090
  %v3255 = vunpack.c.l.bf16 %v3093
  %v3256 = vunpack.c.h.bf16 %v3093
  %v3257 = vmul.f32 %v3239, %v3253
  %v3258 = vmul.f32 %v3242, %v3254
  %v3259 = vmul.f32 %v3247, %v3255
  %v3260 = vmul.f32 %v3250, %v3256
  %v3261 = vpack.c.bf16 %v3258, %v3257
  %v3262 = vpack.c.bf16 %v3260, %v3259
  %v3264 = vsel %vm1382, %v3261, 0
  %v3267 = vsel %vm1382, %v3262, 0
  %3269 = vmatprep.subr.bf16.mxu0 0
  %3270 = vmatpush1.bf16.msra.mxu0 %v1570
  %3271 = vmatprep.subr.bf16.mxu0 0
  %3272 = vmatpush1.bf16.msra.mxu0 %v1580
  %3273 = vmatprep.subr.bf16.mxu0 0
  %3274 = vmatpush1.bf16.msra.mxu0 0
  %3275 = vmatprep.subr.bf16.mxu0 0
  %3276 = vmatpush1.bf16.msra.mxu0 0
  %3277 = vmatprep.subr.bf16.mxu0 0
  %3278 = vmatpush1.bf16.msra.mxu0 0
  %3279 = vmatprep.subr.bf16.mxu0 0
  %3280 = vmatpush1.bf16.msra.mxu0 0
  %3281 = vmatprep.subr.bf16.mxu0 0
  %3282 = vmatpush1.bf16.msra.mxu0 0
  %3283 = vmatprep.subr.bf16.mxu0 0
  %3284 = vmatpush1.bf16.msra.mxu0 0
  %3285 = vmatprep.subr.bf16.mxu0 0
  %3286 = vmatpush1.bf16.msra.mxu0 0
  %3287 = vmatprep.subr.bf16.mxu0 0
  %3288 = vmatpush1.bf16.msra.mxu0 0
  %3289 = vmatprep.subr.bf16.mxu0 0
  %3290 = vmatpush1.bf16.msra.mxu0 0
  %3291 = vmatprep.subr.bf16.mxu0 0
  %3292 = vmatpush1.bf16.msra.mxu0 0
  %3293 = vmatprep.subr.bf16.mxu0 0
  %3294 = vmatpush1.bf16.msra.mxu0 0
  %3295 = vmatprep.subr.bf16.mxu0 0
  %3296 = vmatpush1.bf16.msra.mxu0 0
  %3297 = vmatprep.subr.bf16.mxu0 0
  %3298 = vmatpush1.bf16.msra.mxu0 0
  %3299 = vmatprep.subr.bf16.mxu0 0
  %3300 = vmatpush1.bf16.msra.mxu0 0
  %3301 = vmatprep.mubr.bf16.mxu0 0
  %3302 = vmatmul.mubr.bf16.gmra.mrb[0].mxu0 %v3264
  %v3303 = vpop.f32.mrb[0].mxu0
  %v3304 = vadd.f32 0.0, %v3303
  %v3305 = vpop.f32.mrb[0].mxu0
  %v3306 = vpop.f32.mrb[0].mxu0
  %v3307 = vadd.f32 0.0, %v3306
  %v3308 = vpop.f32.mrb[0].mxu0
  %3309 = vmatprep.mubr.bf16.mxu0 0
  %3310 = vmatmul.mubr.bf16.gmra.mrb[0].mxu0 %v3267
  %v3311 = vpop.f32.mrb[0].mxu0
  %v3312 = vadd.f32 0.0, %v3311
  %v3313 = vpop.f32.mrb[0].mxu0
  %v3314 = vpop.f32.mrb[0].mxu0
  %v3315 = vadd.f32 0.0, %v3314
  %v3316 = vpop.f32.mrb[0].mxu0
  %3317 = vdwg.mxu0
  %3322 = vrot.lane.b32.xlu0 %v3304, 4
  %v3323 = vpop.permute.xlu0 %3322
  %3324 = vrot.lane.b32.xlu0 %v3307, 4
  %v3325 = vpop.permute.xlu0 %3324
  %3326 = vrot.lane.b32.xlu0 %v3312, 4
  %v3327 = vpop.permute.xlu0 %3326
  %3328 = vrot.lane.b32.xlu0 %v3315, 4
  %v3329 = vpop.permute.xlu0 %3328
  %vm3334 = vcmask 48160
  %3335 = vst.msk [vmem:[%s26] sm:$0xff] %vm3334, %v3323
  %3336 = vst.msk [vmem:[%s26 + $0x8] sm:$0xff] %vm3334, %v3325
  %3337 = vst.msk [vmem:[%s26 + $0x10] sm:$0xff] %vm3334, %v3327
  %3338 = vst.msk [vmem:[%s26 + $0x18] sm:$0xff] %vm3334, %v3329
  // Predicated region
  $region106: #{_lambda_.1} parent=0 // pred_check
    _
  $region107: #{_lambda_.1} parent=0 // pred_check_branch
    %3340 = sbr.rel (0) target = $region109
  $region108: #{_lambda_.1} parent=0 // pred_region
    _
  $region109: #{_lambda_.1} parent=0 // pred_fallthru
    _
  // Predicated region
  $region110: #{_lambda_.1} parent=0 // pred_check
    _
  $region111: #{_lambda_.1} parent=0 // pred_check_branch
    %3342 = sbr.rel (0) target = $region113
  $region112: #{_lambda_.1} parent=0 // pred_region
    _
  $region113: #{_lambda_.1} parent=0 // pred_fallthru
    _

</llo_original>
